<compile_context>
chip_gen: v7x
topology: tpu7x:2x2x1
jax: 0.10.0
libtpu: 0.0.40
codegen_flags: <defaults>
</compile_context>

<pallas_src>
import jax
import jax.numpy as jnp
import numpy as np
from jax.experimental import pallas as pl
from jax.experimental.pallas import tpu as pltpu

_COUT = 20        # conv out-channels, fixed by the torch module
_COUT_PAD = 32    # padded so every conv output / bias / fc3 slice is lane-friendly


# ----------------------------------------------------------------------------
# Shared layout of the packed constants slab (used by pack_params + kernel)
# ----------------------------------------------------------------------------
def _layout(static_size, dynamic_size, hidden_size, grid_x, grid_y):
    SD = static_size + dynamic_size
    N = grid_x * grid_y
    C1 = 2 * hidden_size                       # conv1 input channels
    RB = ((SD + 7) // 8) * 8                   # row of b_enc (first 8-aligned row >= SD)
    CM0 = C1 + _COUT_PAD                       # cmask column start
    CW = ((CM0 + 5 + 127) // 128) * 128        # consts slab width (lane padded)
    assert N >= RB + 4, "grid too small for the packed scalar rows"
    assert C1 >= _COUT_PAD, "hidden_size must be >= 16 for this packing"
    return SD, N, C1, RB, CM0, CW


# ----------------------------------------------------------------------------
# Pallas kernel
# ----------------------------------------------------------------------------
def _make_kernel(static_size, dynamic_size, hidden_size, grid_x, grid_y):
    SD, N, C1, RB, CM0, CW = _layout(static_size, dynamic_size, hidden_size,
                                     grid_x, grid_y)
    GY = grid_y
    OP = _COUT_PAD
    f32 = jnp.float32

    def _shift_pos(v, s):
        # v'[p] = v[(p + s) mod N]; wrapped values are killed by the column mask.
        return v if s % N == 0 else pltpu.roll(v, (-s) % N, axis=0)

    def _conv5x5_relu(x, w_ref, k0, cin, bias, cmask, acc_ref):
        """ReLU(Conv2d(5x5, stride 1, SAME)) on x (N, cin); out padded to OP.

        The im2col patch is *virtual*: the 5 horizontal (dx) taps are built
        once as a lane-dense (N, 5*cin) register slab (4 sub-tile sublane rolls
        + 4 column-mask multiplies), and the 5 vertical (dy) taps are realised
        by row-slicing that slab and accumulating each K-chunk matmul into a
        row-offset window of acc_ref.  Border zeros fall out of the row ranges
        (dy) and the precomputed column masks (dx) -- no stores, no compares.
        """
        taps = []
        for dx in range(-2, 3):
            xc = _shift_pos(x, dx)
            if dx != 0:
                xc = xc * cmask[:, dx + 2:dx + 3]
            taps.append(xc)
        slab = jnp.concatenate(taps, axis=1)                     # (N, 5*cin)
        KC = 5 * cin

        # dy = 0 chunk initialises the accumulator (bias folded in).
        acc_ref[...] = bias + jnp.dot(slab,
                                      w_ref[k0 + 2 * KC:k0 + 3 * KC, :],
                                      preferred_element_type=f32)
        # Remaining dy chunks: row-sliced K-chunk matmuls, accumulated at a
        # row offset (multiples of GY -> tile-aligned for the 8x8 grid).
        for dy in (-2, -1, 1, 2):
            lo = max(0, -dy * GY)
            hi = N - max(0, dy * GY)
            if hi <= lo:
                continue
            s0 = max(0, dy * GY)
            part = jnp.dot(slab[s0:s0 + hi - lo, :],
                           w_ref[k0 + (dy + 2) * KC:k0 + (dy + 3) * KC, :],
                           preferred_element_type=f32)
            acc_ref[lo:hi, :] += part
        return jnp.maximum(acc_ref[...], 0.0)

    def kernel(feat_ref, w_conv_ref, c_ref, out_ref, acc_ref):
        cmask = c_ref[0:N, CM0:CM0 + 5]                          # (N, 5) 0/1 masks

        # Fused encoders: block-diagonal (S+D, 2H) weight reproduces
        # torch.cat((static_hidden, dynamic_hidden), dim=0) per position.
        w_enc = c_ref[0:SD, 0:C1]
        b_enc = c_ref[RB:RB + 1, 0:C1]
        hidden = jnp.dot(feat_ref[...], w_enc,
                         preferred_element_type=f32) + b_enc     # (N, 2H)

        # conv1 (2H -> 20, padded to 32) + ReLU.
        b1 = c_ref[RB + 1:RB + 2, 0:OP]
        out1 = _conv5x5_relu(hidden, w_conv_ref, 0, C1, b1, cmask, acc_ref)

        # conv2 (20 -> 20; padded input channels are exact zeros with zero
        # weight rows) + ReLU.
        b2 = c_ref[RB + 2:RB + 3, 0:OP]
        out2 = _conv5x5_relu(out1, w_conv_ref, 25 * C1, OP, b2, cmask, acc_ref)

        # fc3: Linear(20*N, 1).  fc3_w was repacked to (N, 20->32) so an
        # elementwise mul + full reduce matches torch's channel-major flatten.
        w3 = c_ref[0:N, C1:C1 + OP]
        b3 = c_ref[RB + 3:RB + 4, 0:1]
        out_ref[...] = jnp.sum(out2 * w3, keepdims=True) + b3

    return kernel


# ----------------------------------------------------------------------------
# One-time parameter packing (hoisted out of the per-call path)
# ----------------------------------------------------------------------------
def pack_params(params, static_size, dynamic_size, hidden_size, grid_x, grid_y):
    S, D, H, GX, GY = static_size, dynamic_size, hidden_size, grid_x, grid_y
    SD, N, C1, RB, CM0, CW = _layout(S, D, H, GX, GY)
    f32 = np.float32

    def _np(x):
        return np.asarray(x, dtype=f32)

    # 5x5 conv weights, packed (kh, kw, in, out) so that the kernel's
    # dy-chunk / dx-lane order lines up: row = (kh*5 + kw)*cin + c.
    w1 = _np(params["fc1_w"]).transpose(2, 3, 1, 0).reshape(25 * C1, _COUT)
    w1 = np.pad(w1, ((0, 0), (0, _COUT_PAD - _COUT)))            # (25*C1, 32)
    w2 = _np(params["fc2_w"]).transpose(2, 3, 1, 0)              # (5, 5, 20, 20)
    w2 = np.pad(w2, ((0, 0), (0, 0),
                     (0, _COUT_PAD - _COUT), (0, _COUT_PAD - _COUT)))
    w2 = w2.reshape(25 * _COUT_PAD, _COUT_PAD)                   # (800, 32)
    w_conv = np.concatenate([w1, w2], axis=0)                    # (25*(C1+32), 32)

    # Constants slab: encoder weights/bias, conv biases, fc3 weight/bias and
    # the 5 horizontal border masks, all in one (N, CW) array.
    consts = np.zeros((N, CW), f32)
    consts[0:S, 0:H] = _np(params["enc_s_w"])[:, :, 0].T         # block-diag w_enc
    consts[S:SD, H:C1] = _np(params["enc_d_w"])[:, :, 0].T
    consts[RB, 0:H] = _np(params["enc_s_b"])
    consts[RB, H:C1] = _np(params["enc_d_b"])
    consts[RB + 1, 0:_COUT] = _np(params["fc1_b"])
    consts[RB + 2, 0:_COUT] = _np(params["fc2_b"])
    consts[RB + 3, 0] = _np(params["fc3_b"])[0]
    # fc3 weight: torch flatten index is o*N + p  ->  repack to (p, o).
    w3 = _np(params["fc3_w"]).reshape(_COUT, GX, GY).transpose(1, 2, 0)
    consts[:, C1:C1 + _COUT] = w3.reshape(N, _COUT)
    # 0/1 column masks for the 5 horizontal kernel offsets.
    col = np.arange(N) % GY
    for dx in range(-2, 3):
        consts[:, CM0 + dx + 2] = ((col + dx >= 0) & (col + dx < GY)).astype(f32)

    return {"w_conv": jnp.asarray(w_conv), "consts": jnp.asarray(consts)}


# ----------------------------------------------------------------------------
# Per-call forward (jitted; minimal glue + one pallas_call)
# ----------------------------------------------------------------------------
def _forward_impl(static, dynamic, packed, hidden_size, grid_x, grid_y):
    S, D = static.shape[1], dynamic.shape[1]
    SD, N, C1, RB, CM0, CW = _layout(S, D, hidden_size, grid_x, grid_y)
    assert static.shape == (1, S, N) and dynamic.shape == (1, D, N)
    f32 = jnp.float32

    # Channels-last features with static & dynamic fused on the lane axis.
    feat = jnp.concatenate([jnp.transpose(static[0]),
                            jnp.transpose(dynamic[0])], axis=1).astype(f32)  # (N, S+D)

    kernel = _make_kernel(S, D, hidden_size, grid_x, grid_y)
    out = pl.pallas_call(
        kernel,
        out_shape=jax.ShapeDtypeStruct((1, 1), f32),
        in_specs=[pl.BlockSpec(memory_space=pltpu.MemorySpace.VMEM)] * 3,
        out_specs=pl.BlockSpec(memory_space=pltpu.MemorySpace.VMEM),
        scratch_shapes=[pltpu.VMEM((N, _COUT_PAD), f32)],        # conv accumulator
    )(feat, packed["w_conv"], packed["consts"])
    return out  # (1, 1), same shape as the torch module's output


state_critic_forward = jax.jit(_forward_impl, static_argnums=(3, 4, 5))


# ----------------------------------------------------------------------------
# Deterministic parameter init (shapes match the PyTorch module __init__)
# ----------------------------------------------------------------------------
def _xavier(key, shape, fan_in, fan_out):
    bound = float(np.sqrt(6.0 / (fan_in + fan_out)))
    return jax.random.uniform(key, shape, jnp.float32, -bound, bound)


def init_params(key, static_size, dynamic_size, hidden_size, grid_size):
    ks = jax.random.split(key, 10)
    H = hidden_size
    return {
        "enc_s_w": _xavier(ks[0], (H, static_size, 1), static_size, H),
        "enc_s_b": 0.01 * jax.random.normal(ks[1], (H,), jnp.float32),
        "enc_d_w": _xavier(ks[2], (H, dynamic_size, 1), dynamic_size, H),
        "enc_d_b": 0.01 * jax.random.normal(ks[3], (H,), jnp.float32),
        "fc1_w": _xavier(ks[4], (20, 2 * H, 5, 5), 2 * H * 25, 20 * 25),
        "fc1_b": 0.01 * jax.random.normal(ks[5], (20,), jnp.float32),
        "fc2_w": _xavier(ks[6], (20, 20, 5, 5), 20 * 25, 20 * 25),
        "fc2_b": 0.01 * jax.random.normal(ks[7], (20,), jnp.float32),
        "fc3_w": _xavier(ks[8], (1, 20 * grid_size), 20 * grid_size, 1),
        "fc3_b": 0.01 * jax.random.normal(ks[9], (1,), jnp.float32),
    }


# ----------------------------------------------------------------------------
# Pure-JAX reference (mirrors the PyTorch forward) for correctness checking
# ----------------------------------------------------------------------------
def reference_forward(static, dynamic, params, hidden_size, grid_x, grid_y):
    hp = jax.lax.Precision.HIGHEST
    H, GX, GY = hidden_size, grid_x, grid_y
    sh = jnp.einsum("hs,bsn->bhn", params["enc_s_w"][:, :, 0], static,
                    precision=hp) + params["enc_s_b"][None, :, None]
    dh = jnp.einsum("hs,bsn->bhn", params["enc_d_w"][:, :, 0], dynamic,
                    precision=hp) + params["enc_d_b"][None, :, None]
    sh = sh.reshape(H, GX, GY)
    dh = dh.reshape(H, GX, GY)
    hidden = jnp.concatenate([sh, dh], axis=0)[None]             # (1, 2H, GX, GY)
    dn = ("NCHW", "OIHW", "NCHW")
    out = jax.lax.conv_general_dilated(hidden, params["fc1_w"], (1, 1), "SAME",
                                       dimension_numbers=dn, precision=hp)
    out = jnp.maximum(out + params["fc1_b"][None, :, None, None], 0.0)
    out = jax.lax.conv_general_dilated(out, params["fc2_w"], (1, 1), "SAME",
                                       dimension_numbers=dn, precision=hp)
    out = jnp.maximum(out + params["fc2_b"][None, :, None, None], 0.0)
    flat = out.reshape(1, -1)
    return jnp.dot(flat, params["fc3_w"].T, precision=hp) + params["fc3_b"][None, :]


if __name__ == "__main__":
    static_size, dynamic_size = 4, 3
    hidden_size = 32
    grid_x, grid_y = 8, 8
    grid_size = grid_x * grid_y

    key = jax.random.PRNGKey(0)
    k_s, k_d, k_p = jax.random.split(key, 3)
    static = jax.random.normal(k_s, (1, static_size, grid_size), jnp.float32)
    dynamic = jax.random.normal(k_d, (1, dynamic_size, grid_size), jnp.float32)
    params = init_params(k_p, static_size, dynamic_size, hidden_size, grid_size)

    # One-time packing (opt 4): never in the per-call path.
    packed = pack_params(params, static_size, dynamic_size,
                         hidden_size, grid_x, grid_y)

    out = state_critic_forward(static, dynamic, packed,
                               hidden_size, grid_x, grid_y)
    out = jax.block_until_ready(out)

    ref = reference_forward(static, dynamic, params,
                            hidden_size, grid_x, grid_y)

    # Tolerance note: all in-kernel math is f32 with f32 accumulation, but the
    # MXU emulates f32 multiplies with bf16 passes whose pass count can differ
    # between the Mosaic matmul path (kernel) and the XLA convolution path
    # (reference), so a small numeric gap is expected even though both sides
    # are nominally f32.
    np.testing.assert_allclose(np.asarray(out), np.asarray(ref),
                               rtol=2e-2, atol=2e-2)
    print("KERNEL_OK")
</pallas_src>

<mosaic_0001>
module attributes {stable_mosaic.version = 11 : i64} {
  func.func @kernel(%arg0: memref<64x7xf32, #tpu.memory_space<vmem>>, %arg1: memref<2400x32xf32, #tpu.memory_space<vmem>>, %arg2: memref<64x128xf32, #tpu.memory_space<vmem>>, %arg3: memref<1x1xf32, #tpu.memory_space<vmem>>, %arg4: memref<64x32xf32, #tpu.memory_space<vmem>>) attributes {dimension_semantics = [], scalar_prefetch = 0 : i64, scratch_operands = 1 : i64, tpu.core_type = #tpu.core_type<tc>} {
    %c0 = arith.constant 0 : index
    %c96 = arith.constant 96 : index
    %0 = vector.load %arg2[%c0, %c96] : memref<64x128xf32, #tpu.memory_space<vmem>>, vector<64x5xf32>
    %c0_0 = arith.constant 0 : index
    %c0_1 = arith.constant 0 : index
    %1 = vector.load %arg2[%c0_0, %c0_1] : memref<64x128xf32, #tpu.memory_space<vmem>>, vector<7x64xf32>
    %c8 = arith.constant 8 : index
    %c0_2 = arith.constant 0 : index
    %2 = vector.load %arg2[%c8, %c0_2] : memref<64x128xf32, #tpu.memory_space<vmem>>, vector<1x64xf32>
    %c0_3 = arith.constant 0 : index
    %c0_4 = arith.constant 0 : index
    %3 = vector.load %arg0[%c0_3, %c0_4] : memref<64x7xf32, #tpu.memory_space<vmem>>, vector<64x7xf32>
    %cst = arith.constant dense<0.000000e+00> : vector<64x64xf32>
    %4 = tpu.matmul %3, %1, %cst {dimension_numbers = #tpu.dot_dimension_numbers<[1], [0], [0], [1], [0, 0, 1, 1], [], []>} : vector<64x7xf32>, vector<7x64xf32>, vector<64x64xf32> -> vector<64x64xf32>
    %5 = vector.broadcast %2 : vector<1x64xf32> to vector<64x64xf32>
    %6 = arith.addf %4, %5 : vector<64x64xf32>
    %c9 = arith.constant 9 : index
    %c0_5 = arith.constant 0 : index
    %7 = vector.load %arg2[%c9, %c0_5] : memref<64x128xf32, #tpu.memory_space<vmem>>, vector<1x32xf32>
    %c2_i32 = arith.constant 2 : i32
    %8 = tpu.dynamic_rotate %6 by %c2_i32 dim 0 : vector<64x64xf32>, i32 -> vector<64x64xf32>
    %9 = vector.extract_strided_slice %0 {offsets = [0, 0], sizes = [64, 1], strides = [1, 1]} : vector<64x5xf32> to vector<64x1xf32>
    %10 = vector.broadcast %9 : vector<64x1xf32> to vector<64x64xf32>
    %11 = arith.mulf %8, %10 : vector<64x64xf32>
    %c1_i32 = arith.constant 1 : i32
    %12 = tpu.dynamic_rotate %6 by %c1_i32 dim 0 : vector<64x64xf32>, i32 -> vector<64x64xf32>
    %13 = vector.extract_strided_slice %0 {offsets = [0, 1], sizes = [64, 1], strides = [1, 1]} : vector<64x5xf32> to vector<64x1xf32>
    %14 = vector.broadcast %13 : vector<64x1xf32> to vector<64x64xf32>
    %15 = arith.mulf %12, %14 : vector<64x64xf32>
    %c63_i32 = arith.constant 63 : i32
    %16 = tpu.dynamic_rotate %6 by %c63_i32 dim 0 : vector<64x64xf32>, i32 -> vector<64x64xf32>
    %17 = vector.extract_strided_slice %0 {offsets = [0, 3], sizes = [64, 1], strides = [1, 1]} : vector<64x5xf32> to vector<64x1xf32>
    %18 = vector.broadcast %17 : vector<64x1xf32> to vector<64x64xf32>
    %19 = arith.mulf %16, %18 : vector<64x64xf32>
    %c62_i32 = arith.constant 62 : i32
    %20 = tpu.dynamic_rotate %6 by %c62_i32 dim 0 : vector<64x64xf32>, i32 -> vector<64x64xf32>
    %21 = vector.extract_strided_slice %0 {offsets = [0, 4], sizes = [64, 1], strides = [1, 1]} : vector<64x5xf32> to vector<64x1xf32>
    %22 = vector.broadcast %21 : vector<64x1xf32> to vector<64x64xf32>
    %23 = arith.mulf %20, %22 : vector<64x64xf32>
    %24 = tpu.concatenate %11, %15, %6, %19, %23 in 1 : vector<64x64xf32>, vector<64x64xf32>, vector<64x64xf32>, vector<64x64xf32>, vector<64x64xf32> -> vector<64x320xf32>
    %c640 = arith.constant 640 : index
    %c0_6 = arith.constant 0 : index
    %25 = vector.load %arg1[%c640, %c0_6] : memref<2400x32xf32, #tpu.memory_space<vmem>>, vector<320x32xf32>
    %cst_7 = arith.constant dense<0.000000e+00> : vector<64x32xf32>
    %26 = tpu.matmul %24, %25, %cst_7 {dimension_numbers = #tpu.dot_dimension_numbers<[1], [0], [0], [1], [0, 0, 1, 1], [], []>} : vector<64x320xf32>, vector<320x32xf32>, vector<64x32xf32> -> vector<64x32xf32>
    %27 = vector.broadcast %7 : vector<1x32xf32> to vector<64x32xf32>
    %28 = arith.addf %27, %26 : vector<64x32xf32>
    %c0_8 = arith.constant 0 : index
    %c0_9 = arith.constant 0 : index
    %29 = vector.load %arg4[%c0_8, %c0_9] : memref<64x32xf32, #tpu.memory_space<vmem>>, vector<64x32xf32>
    tpu.vector_store %arg4[%c0_8, %c0_9], %28 {strides = array<i32>} : memref<64x32xf32, #tpu.memory_space<vmem>>, vector<64x32xf32>,
    %30 = vector.extract_strided_slice %24 {offsets = [0, 0], sizes = [48, 320], strides = [1, 1]} : vector<64x320xf32> to vector<48x320xf32>
    %c0_10 = arith.constant 0 : index
    %c0_11 = arith.constant 0 : index
    %31 = vector.load %arg1[%c0_10, %c0_11] : memref<2400x32xf32, #tpu.memory_space<vmem>>, vector<320x32xf32>
    %cst_12 = arith.constant dense<0.000000e+00> : vector<48x32xf32>
    %32 = tpu.matmul %30, %31, %cst_12 {dimension_numbers = #tpu.dot_dimension_numbers<[1], [0], [0], [1], [0, 0, 1, 1], [], []>} : vector<48x320xf32>, vector<320x32xf32>, vector<48x32xf32> -> vector<48x32xf32>
    %c16 = arith.constant 16 : index
    %c0_13 = arith.constant 0 : index
    %33 = vector.load %arg4[%c16, %c0_13] : memref<64x32xf32, #tpu.memory_space<vmem>>, vector<48x32xf32>
    %34 = arith.addf %33, %32 : vector<48x32xf32>
    %c16_14 = arith.constant 16 : index
    %c0_15 = arith.constant 0 : index
    %35 = vector.load %arg4[%c16_14, %c0_15] : memref<64x32xf32, #tpu.memory_space<vmem>>, vector<48x32xf32>
    tpu.vector_store %arg4[%c16_14, %c0_15], %34 {strides = array<i32>} : memref<64x32xf32, #tpu.memory_space<vmem>>, vector<48x32xf32>,
    %36 = vector.extract_strided_slice %24 {offsets = [0, 0], sizes = [56, 320], strides = [1, 1]} : vector<64x320xf32> to vector<56x320xf32>
    %c320 = arith.constant 320 : index
    %c0_16 = arith.constant 0 : index
    %37 = vector.load %arg1[%c320, %c0_16] : memref<2400x32xf32, #tpu.memory_space<vmem>>, vector<320x32xf32>
    %cst_17 = arith.constant dense<0.000000e+00> : vector<56x32xf32>
    %38 = tpu.matmul %36, %37, %cst_17 {dimension_numbers = #tpu.dot_dimension_numbers<[1], [0], [0], [1], [0, 0, 1, 1], [], []>} : vector<56x320xf32>, vector<320x32xf32>, vector<56x32xf32> -> vector<56x32xf32>
    %c8_18 = arith.constant 8 : index
    %c0_19 = arith.constant 0 : index
    %39 = vector.load %arg4[%c8_18, %c0_19] : memref<64x32xf32, #tpu.memory_space<vmem>>, vector<56x32xf32>
    %40 = arith.addf %39, %38 : vector<56x32xf32>
    %c8_20 = arith.constant 8 : index
    %c0_21 = arith.constant 0 : index
    %41 = vector.load %arg4[%c8_20, %c0_21] : memref<64x32xf32, #tpu.memory_space<vmem>>, vector<56x32xf32>
    tpu.vector_store %arg4[%c8_20, %c0_21], %40 {strides = array<i32>} : memref<64x32xf32, #tpu.memory_space<vmem>>, vector<56x32xf32>,
    %42 = vector.extract_strided_slice %24 {offsets = [8, 0], sizes = [56, 320], strides = [1, 1]} : vector<64x320xf32> to vector<56x320xf32>
    %c960 = arith.constant 960 : index
    %c0_22 = arith.constant 0 : index
    %43 = vector.load %arg1[%c960, %c0_22] : memref<2400x32xf32, #tpu.memory_space<vmem>>, vector<320x32xf32>
    %cst_23 = arith.constant dense<0.000000e+00> : vector<56x32xf32>
    %44 = tpu.matmul %42, %43, %cst_23 {dimension_numbers = #tpu.dot_dimension_numbers<[1], [0], [0], [1], [0, 0, 1, 1], [], []>} : vector<56x320xf32>, vector<320x32xf32>, vector<56x32xf32> -> vector<56x32xf32>
    %c0_24 = arith.constant 0 : index
    %c0_25 = arith.constant 0 : index
    %45 = vector.load %arg4[%c0_24, %c0_25] : memref<64x32xf32, #tpu.memory_space<vmem>>, vector<56x32xf32>
    %46 = arith.addf %45, %44 : vector<56x32xf32>
    %c0_26 = arith.constant 0 : index
    %c0_27 = arith.constant 0 : index
    %47 = vector.load %arg4[%c0_26, %c0_27] : memref<64x32xf32, #tpu.memory_space<vmem>>, vector<56x32xf32>
    tpu.vector_store %arg4[%c0_26, %c0_27], %46 {strides = array<i32>} : memref<64x32xf32, #tpu.memory_space<vmem>>, vector<56x32xf32>,
    %48 = vector.extract_strided_slice %24 {offsets = [16, 0], sizes = [48, 320], strides = [1, 1]} : vector<64x320xf32> to vector<48x320xf32>
    %c1280 = arith.constant 1280 : index
    %c0_28 = arith.constant 0 : index
    %49 = vector.load %arg1[%c1280, %c0_28] : memref<2400x32xf32, #tpu.memory_space<vmem>>, vector<320x32xf32>
    %cst_29 = arith.constant dense<0.000000e+00> : vector<48x32xf32>
    %50 = tpu.matmul %48, %49, %cst_29 {dimension_numbers = #tpu.dot_dimension_numbers<[1], [0], [0], [1], [0, 0, 1, 1], [], []>} : vector<48x320xf32>, vector<320x32xf32>, vector<48x32xf32> -> vector<48x32xf32>
    %c0_30 = arith.constant 0 : index
    %c0_31 = arith.constant 0 : index
    %51 = vector.load %arg4[%c0_30, %c0_31] : memref<64x32xf32, #tpu.memory_space<vmem>>, vector<48x32xf32>
    %52 = arith.addf %51, %50 : vector<48x32xf32>
    %c0_32 = arith.constant 0 : index
    %c0_33 = arith.constant 0 : index
    %53 = vector.load %arg4[%c0_32, %c0_33] : memref<64x32xf32, #tpu.memory_space<vmem>>, vector<48x32xf32>
    tpu.vector_store %arg4[%c0_32, %c0_33], %52 {strides = array<i32>} : memref<64x32xf32, #tpu.memory_space<vmem>>, vector<48x32xf32>,
    %c0_34 = arith.constant 0 : index
    %c0_35 = arith.constant 0 : index
    %54 = vector.load %arg4[%c0_34, %c0_35] : memref<64x32xf32, #tpu.memory_space<vmem>>, vector<64x32xf32>
    %cst_36 = arith.constant 0.000000e+00 : f32
    %55 = vector.broadcast %cst_36 : f32 to vector<64x32xf32>
    %56 = arith.maximumf %54, %55 : vector<64x32xf32>
    %c10 = arith.constant 10 : index
    %c0_37 = arith.constant 0 : index
    %57 = vector.load %arg2[%c10, %c0_37] : memref<64x128xf32, #tpu.memory_space<vmem>>, vector<1x32xf32>
    %c2_i32_38 = arith.constant 2 : i32
    %58 = tpu.dynamic_rotate %56 by %c2_i32_38 dim 0 : vector<64x32xf32>, i32 -> vector<64x32xf32>
    %59 = vector.extract_strided_slice %0 {offsets = [0, 0], sizes = [64, 1], strides = [1, 1]} : vector<64x5xf32> to vector<64x1xf32>
    %60 = vector.broadcast %59 : vector<64x1xf32> to vector<64x32xf32>
    %61 = arith.mulf %58, %60 : vector<64x32xf32>
    %c1_i32_39 = arith.constant 1 : i32
    %62 = tpu.dynamic_rotate %56 by %c1_i32_39 dim 0 : vector<64x32xf32>, i32 -> vector<64x32xf32>
    %63 = vector.extract_strided_slice %0 {offsets = [0, 1], sizes = [64, 1], strides = [1, 1]} : vector<64x5xf32> to vector<64x1xf32>
    %64 = vector.broadcast %63 : vector<64x1xf32> to vector<64x32xf32>
    %65 = arith.mulf %62, %64 : vector<64x32xf32>
    %c63_i32_40 = arith.constant 63 : i32
    %66 = tpu.dynamic_rotate %56 by %c63_i32_40 dim 0 : vector<64x32xf32>, i32 -> vector<64x32xf32>
    %67 = vector.extract_strided_slice %0 {offsets = [0, 3], sizes = [64, 1], strides = [1, 1]} : vector<64x5xf32> to vector<64x1xf32>
    %68 = vector.broadcast %67 : vector<64x1xf32> to vector<64x32xf32>
    %69 = arith.mulf %66, %68 : vector<64x32xf32>
    %c62_i32_41 = arith.constant 62 : i32
    %70 = tpu.dynamic_rotate %56 by %c62_i32_41 dim 0 : vector<64x32xf32>, i32 -> vector<64x32xf32>
    %71 = vector.extract_strided_slice %0 {offsets = [0, 4], sizes = [64, 1], strides = [1, 1]} : vector<64x5xf32> to vector<64x1xf32>
    %72 = vector.broadcast %71 : vector<64x1xf32> to vector<64x32xf32>
    %73 = arith.mulf %70, %72 : vector<64x32xf32>
    %74 = tpu.concatenate %61, %65, %56, %69, %73 in 1 : vector<64x32xf32>, vector<64x32xf32>, vector<64x32xf32>, vector<64x32xf32>, vector<64x32xf32> -> vector<64x160xf32>
    %c1920 = arith.constant 1920 : index
    %c0_42 = arith.constant 0 : index
    %75 = vector.load %arg1[%c1920, %c0_42] : memref<2400x32xf32, #tpu.memory_space<vmem>>, vector<160x32xf32>
    %cst_43 = arith.constant dense<0.000000e+00> : vector<64x32xf32>
    %76 = tpu.matmul %74, %75, %cst_43 {dimension_numbers = #tpu.dot_dimension_numbers<[1], [0], [0], [1], [0, 0, 1, 1], [], []>} : vector<64x160xf32>, vector<160x32xf32>, vector<64x32xf32> -> vector<64x32xf32>
    %77 = vector.broadcast %57 : vector<1x32xf32> to vector<64x32xf32>
    %78 = arith.addf %77, %76 : vector<64x32xf32>
    %c0_44 = arith.constant 0 : index
    %c0_45 = arith.constant 0 : index
    %79 = vector.load %arg4[%c0_44, %c0_45] : memref<64x32xf32, #tpu.memory_space<vmem>>, vector<64x32xf32>
    tpu.vector_store %arg4[%c0_44, %c0_45], %78 {strides = array<i32>} : memref<64x32xf32, #tpu.memory_space<vmem>>, vector<64x32xf32>,
    %80 = vector.extract_strided_slice %74 {offsets = [0, 0], sizes = [48, 160], strides = [1, 1]} : vector<64x160xf32> to vector<48x160xf32>
    %c1600 = arith.constant 1600 : index
    %c0_46 = arith.constant 0 : index
    %81 = vector.load %arg1[%c1600, %c0_46] : memref<2400x32xf32, #tpu.memory_space<vmem>>, vector<160x32xf32>
    %cst_47 = arith.constant dense<0.000000e+00> : vector<48x32xf32>
    %82 = tpu.matmul %80, %81, %cst_47 {dimension_numbers = #tpu.dot_dimension_numbers<[1], [0], [0], [1], [0, 0, 1, 1], [], []>} : vector<48x160xf32>, vector<160x32xf32>, vector<48x32xf32> -> vector<48x32xf32>
    %c16_48 = arith.constant 16 : index
    %c0_49 = arith.constant 0 : index
    %83 = vector.load %arg4[%c16_48, %c0_49] : memref<64x32xf32, #tpu.memory_space<vmem>>, vector<48x32xf32>
    %84 = arith.addf %83, %82 : vector<48x32xf32>
    %c16_50 = arith.constant 16 : index
    %c0_51 = arith.constant 0 : index
    %85 = vector.load %arg4[%c16_50, %c0_51] : memref<64x32xf32, #tpu.memory_space<vmem>>, vector<48x32xf32>
    tpu.vector_store %arg4[%c16_50, %c0_51], %84 {strides = array<i32>} : memref<64x32xf32, #tpu.memory_space<vmem>>, vector<48x32xf32>,
    %86 = vector.extract_strided_slice %74 {offsets = [0, 0], sizes = [56, 160], strides = [1, 1]} : vector<64x160xf32> to vector<56x160xf32>
    %c1760 = arith.constant 1760 : index
    %c0_52 = arith.constant 0 : index
    %87 = vector.load %arg1[%c1760, %c0_52] : memref<2400x32xf32, #tpu.memory_space<vmem>>, vector<160x32xf32>
    %cst_53 = arith.constant dense<0.000000e+00> : vector<56x32xf32>
    %88 = tpu.matmul %86, %87, %cst_53 {dimension_numbers = #tpu.dot_dimension_numbers<[1], [0], [0], [1], [0, 0, 1, 1], [], []>} : vector<56x160xf32>, vector<160x32xf32>, vector<56x32xf32> -> vector<56x32xf32>
    %c8_54 = arith.constant 8 : index
    %c0_55 = arith.constant 0 : index
    %89 = vector.load %arg4[%c8_54, %c0_55] : memref<64x32xf32, #tpu.memory_space<vmem>>, vector<56x32xf32>
    %90 = arith.addf %89, %88 : vector<56x32xf32>
    %c8_56 = arith.constant 8 : index
    %c0_57 = arith.constant 0 : index
    %91 = vector.load %arg4[%c8_56, %c0_57] : memref<64x32xf32, #tpu.memory_space<vmem>>, vector<56x32xf32>
    tpu.vector_store %arg4[%c8_56, %c0_57], %90 {strides = array<i32>} : memref<64x32xf32, #tpu.memory_space<vmem>>, vector<56x32xf32>,
    %92 = vector.extract_strided_slice %74 {offsets = [8, 0], sizes = [56, 160], strides = [1, 1]} : vector<64x160xf32> to vector<56x160xf32>
    %c2080 = arith.constant 2080 : index
    %c0_58 = arith.constant 0 : index
    %93 = vector.load %arg1[%c2080, %c0_58] : memref<2400x32xf32, #tpu.memory_space<vmem>>, vector<160x32xf32>
    %cst_59 = arith.constant dense<0.000000e+00> : vector<56x32xf32>
    %94 = tpu.matmul %92, %93, %cst_59 {dimension_numbers = #tpu.dot_dimension_numbers<[1], [0], [0], [1], [0, 0, 1, 1], [], []>} : vector<56x160xf32>, vector<160x32xf32>, vector<56x32xf32> -> vector<56x32xf32>
    %c0_60 = arith.constant 0 : index
    %c0_61 = arith.constant 0 : index
    %95 = vector.load %arg4[%c0_60, %c0_61] : memref<64x32xf32, #tpu.memory_space<vmem>>, vector<56x32xf32>
    %96 = arith.addf %95, %94 : vector<56x32xf32>
    %c0_62 = arith.constant 0 : index
    %c0_63 = arith.constant 0 : index
    %97 = vector.load %arg4[%c0_62, %c0_63] : memref<64x32xf32, #tpu.memory_space<vmem>>, vector<56x32xf32>
    tpu.vector_store %arg4[%c0_62, %c0_63], %96 {strides = array<i32>} : memref<64x32xf32, #tpu.memory_space<vmem>>, vector<56x32xf32>,
    %98 = vector.extract_strided_slice %74 {offsets = [16, 0], sizes = [48, 160], strides = [1, 1]} : vector<64x160xf32> to vector<48x160xf32>
    %c2240 = arith.constant 2240 : index
    %c0_64 = arith.constant 0 : index
    %99 = vector.load %arg1[%c2240, %c0_64] : memref<2400x32xf32, #tpu.memory_space<vmem>>, vector<160x32xf32>
    %cst_65 = arith.constant dense<0.000000e+00> : vector<48x32xf32>
    %100 = tpu.matmul %98, %99, %cst_65 {dimension_numbers = #tpu.dot_dimension_numbers<[1], [0], [0], [1], [0, 0, 1, 1], [], []>} : vector<48x160xf32>, vector<160x32xf32>, vector<48x32xf32> -> vector<48x32xf32>
    %c0_66 = arith.constant 0 : index
    %c0_67 = arith.constant 0 : index
    %101 = vector.load %arg4[%c0_66, %c0_67] : memref<64x32xf32, #tpu.memory_space<vmem>>, vector<48x32xf32>
    %102 = arith.addf %101, %100 : vector<48x32xf32>
    %c0_68 = arith.constant 0 : index
    %c0_69 = arith.constant 0 : index
    %103 = vector.load %arg4[%c0_68, %c0_69] : memref<64x32xf32, #tpu.memory_space<vmem>>, vector<48x32xf32>
    tpu.vector_store %arg4[%c0_68, %c0_69], %102 {strides = array<i32>} : memref<64x32xf32, #tpu.memory_space<vmem>>, vector<48x32xf32>,
    %c0_70 = arith.constant 0 : index
    %c0_71 = arith.constant 0 : index
    %104 = vector.load %arg4[%c0_70, %c0_71] : memref<64x32xf32, #tpu.memory_space<vmem>>, vector<64x32xf32>
    %cst_72 = arith.constant 0.000000e+00 : f32
    %105 = vector.broadcast %cst_72 : f32 to vector<64x32xf32>
    %106 = arith.maximumf %104, %105 : vector<64x32xf32>
    %c0_73 = arith.constant 0 : index
    %c64 = arith.constant 64 : index
    %107 = vector.load %arg2[%c0_73, %c64] : memref<64x128xf32, #tpu.memory_space<vmem>>, vector<64x32xf32>
    %c11 = arith.constant 11 : index
    %c0_74 = arith.constant 0 : index
    %108 = vector.load %arg2[%c11, %c0_74] : memref<64x128xf32, #tpu.memory_space<vmem>>, vector<1x1xf32>
    %109 = arith.mulf %106, %107 : vector<64x32xf32>
    %110 = vector.shape_cast %109 : vector<64x32xf32> to vector<1x64x32xf32>
    %cst_75 = arith.constant dense<0.000000e+00> : vector<1xf32>
    %111 = vector.multi_reduction <add>, %110, %cst_75 [1, 2] : vector<1x64x32xf32> to vector<1xf32>
    %112 = vector.shape_cast %111 : vector<1xf32> to vector<1x1x1xf32>
    %113 = vector.extract %112[0, 0, 0] : f32 from vector<1x1x1xf32>
    %114 = vector.broadcast %113 : f32 to vector<1x1xf32>
    %115 = arith.addf %114, %108 : vector<1x1xf32>
    %c0_76 = arith.constant 0 : index
    %c0_77 = arith.constant 0 : index
    %116 = vector.load %arg3[%c0_76, %c0_77] : memref<1x1xf32, #tpu.memory_space<vmem>>, vector<1x1xf32>
    tpu.vector_store %arg3[%c0_76, %c0_77], %115 {strides = array<i32>} : memref<1x1xf32, #tpu.memory_space<vmem>>, vector<1x1xf32>,
    return
  }
}

</mosaic_0001>

<llo_original>
// kernel: _forward_impl.1
$region0: #{_forward_impl.1}
  #allocation0 [shape = 'u32[]', space=smem, size = 0x4, offset = 0x4, fixed_abs, tag = 'smem constant byte address 0x4 - core index']
  #allocation1 [shape = 'u32[144,128]{1,0:T(1,128)}', space=vmem, size = 0x12000, scoped, tag = 'internal scratch']
  #allocation2 [shape = 'f32[64,32]{1,0:T(8,128)}', space=vmem, size = 0x8000, scoped, tag = 'scratch operand']
  %s0 = inlined_call_operand.vmem [shape: f32[64,7], index: 0, kind: input, shape index: {}]
  %s1 = inlined_call_operand.vmem [shape: f32[2400,32], index: 1, kind: input, shape index: {}]
  %s2 = inlined_call_operand.vmem [shape: f32[64,128], index: 2, kind: input, shape index: {}]
  %s3 = inlined_call_operand.hbm [shape: f32[1,1], index: 3, kind: output, shape index: {}]
  %s4 = sld [smem:[#allocation0]]
  $region22: #{_forward_impl.1} parent=0
    _
  %s6 = ssub.s32 1, %s4
  %s7 = scalar_select 0, %s6, %s4
  $region1: #{_forward_impl.1} parent=0
    #allocation3 [shape = 'u8[512]{0}', space=vmem, size = 0x400, scoped, tag = 'output window, operand 0, single buffered']
    #allocation4 [shape = 's32[1]{0}', space=sflag, size = 0x4, scoped, tag = 'scoped memory for _forward_impl.1']
    %8 = vsyncpa [#allocation4], 0
    // Predicated region
    $region2: #{_forward_impl.1} parent=1 // pred_check
      _
    $region3: #{_forward_impl.1} parent=1 // pred_check_branch
      %10 = sbr.rel (0) target = $region5
    $region4: #{_forward_impl.1} parent=1 // pred_region
      _
    $region5: #{_forward_impl.1} parent=1 // pred_fallthru
      _
    // Predicated region
    $region6: #{_forward_impl.1} parent=1 // pred_check
      _
    $region7: #{_forward_impl.1} parent=1 // pred_check_branch
      %12 = sbr.rel (0) target = $region9
    $region8: #{_forward_impl.1} parent=1 // pred_region
      _
    $region9: #{_forward_impl.1} parent=1 // pred_fallthru
      _
    // Predicated region
    $region10: #{_forward_impl.1} parent=1 // pred_check
      _
    $region11: #{_forward_impl.1} parent=1 // pred_check_branch
      %14 = sbr.rel (0) target = $region13
    $region12: #{_forward_impl.1} parent=1 // pred_region
      _
    $region13: #{_forward_impl.1} parent=1 // pred_fallthru
      _
    %v15 = vld [vmem:[%s2] sm:$0xff]
    %v16 = vld [vmem:[%s2 + $0x8] sm:$0xff]
    %v17 = vld [vmem:[%s2 + $0x10] sm:$0xff]
    %v18 = vld [vmem:[%s2 + $0x18] sm:$0xff]
    %v19 = vld [vmem:[%s2 + $0x20] sm:$0xff]
    %v20 = vld [vmem:[%s2 + $0x28] sm:$0xff]
    %v21 = vld [vmem:[%s2 + $0x30] sm:$0xff]
    %v22 = vld [vmem:[%s2 + $0x38] sm:$0xff]
    %v23 = vld [vmem:[%s2] sm:$0x7f]
    %v24 = vld [vmem:[%s2 + $0x8] sm:$0x1]
    %v25 = vld [vmem:[%s0] sm:$0xff]
    %v26 = vld [vmem:[%s0 + $0x8] sm:$0xff]
    %v27 = vld [vmem:[%s0 + $0x10] sm:$0xff]
    %v28 = vld [vmem:[%s0 + $0x18] sm:$0xff]
    %v29 = vld [vmem:[%s0 + $0x20] sm:$0xff]
    %v30 = vld [vmem:[%s0 + $0x28] sm:$0xff]
    %v31 = vld [vmem:[%s0 + $0x30] sm:$0xff]
    %v32 = vld [vmem:[%s0 + $0x38] sm:$0xff]
    %v33 = vlaneseq
    %v34 = vshrl.u32 %v33, 7
    %v35 = vsub.s32 0, %v34
    %v36 = vrot.slane %v24, %v35
    %vm37 = vcmask 56320
    %v39 = vsel %vm37, %v25, 0
    %v42 = vsel %vm37, %v26, 0
    %v45 = vsel %vm37, %v27, 0
    %v48 = vsel %vm37, %v28, 0
    %v51 = vsel %vm37, %v29, 0
    %v54 = vsel %vm37, %v30, 0
    %v57 = vsel %vm37, %v31, 0
    %v60 = vsel %vm37, %v32, 0
    %vm62 = vcmask 1046528
    %v64 = vsel %vm62, %v23, 0
    %66 = vmatprep.subr.mxu0 0.0
    %67 = vmatpush1.msra.mxu0 %v64
    %68 = vmatprep.subr.mxu0 0.0
    %69 = vmatpush1.msra.mxu0 0.0
    %70 = vmatprep.subr.mxu0 0.0
    %71 = vmatpush1.msra.mxu0 0.0
    %72 = vmatprep.subr.mxu0 0.0
    %73 = vmatpush1.msra.mxu0 0.0
    %74 = vmatprep.subr.mxu0 0.0
    %75 = vmatpush1.msra.mxu0 0.0
    %76 = vmatprep.subr.mxu0 0.0
    %77 = vmatpush1.msra.mxu0 0.0
    %78 = vmatprep.subr.mxu0 0.0
    %79 = vmatpush1.msra.mxu0 0.0
    %80 = vmatprep.subr.mxu0 0.0
    %81 = vmatpush1.msra.mxu0 0.0
    %82 = vmatprep.subr.mxu0 0.0
    %83 = vmatpush1.msra.mxu0 0.0
    %84 = vmatprep.subr.mxu0 0.0
    %85 = vmatpush1.msra.mxu0 0.0
    %86 = vmatprep.subr.mxu0 0.0
    %87 = vmatpush1.msra.mxu0 0.0
    %88 = vmatprep.subr.mxu0 0.0
    %89 = vmatpush1.msra.mxu0 0.0
    %90 = vmatprep.subr.mxu0 0.0
    %91 = vmatpush1.msra.mxu0 0.0
    %92 = vmatprep.subr.mxu0 0.0
    %93 = vmatpush1.msra.mxu0 0.0
    %94 = vmatprep.subr.mxu0 0.0
    %95 = vmatpush1.msra.mxu0 0.0
    %96 = vmatprep.subr.mxu0 0.0
    %97 = vmatpush1.msra.mxu0 0.0
    %98 = vmatprep.subr.mxu0 0.0
    %99 = vmatpush1.msra.mxu0 0.0
    %100 = vmatprep.subr.mxu0 0.0
    %101 = vmatpush1.msra.mxu0 0.0
    %102 = vmatprep.subr.mxu0 0.0
    %103 = vmatpush1.msra.mxu0 0.0
    %104 = vmatprep.subr.mxu0 0.0
    %105 = vmatpush1.msra.mxu0 0.0
    %106 = vmatprep.subr.mxu0 0.0
    %107 = vmatpush1.msra.mxu0 0.0
    %108 = vmatprep.subr.mxu0 0.0
    %109 = vmatpush1.msra.mxu0 0.0
    %110 = vmatprep.subr.mxu0 0.0
    %111 = vmatpush1.msra.mxu0 0.0
    %112 = vmatprep.subr.mxu0 0.0
    %113 = vmatpush1.msra.mxu0 0.0
    %114 = vmatprep.subr.mxu0 0.0
    %115 = vmatpush1.msra.mxu0 0.0
    %116 = vmatprep.subr.mxu0 0.0
    %117 = vmatpush1.msra.mxu0 0.0
    %118 = vmatprep.subr.mxu0 0.0
    %119 = vmatpush1.msra.mxu0 0.0
    %120 = vmatprep.subr.mxu0 0.0
    %121 = vmatpush1.msra.mxu0 0.0
    %122 = vmatprep.subr.mxu0 0.0
    %123 = vmatpush1.msra.mxu0 0.0
    %124 = vmatprep.subr.mxu0 0.0
    %125 = vmatpush1.msra.mxu0 0.0
    %126 = vmatprep.subr.mxu0 0.0
    %127 = vmatpush1.msra.mxu0 0.0
    %128 = vmatprep.subr.mxu0 0.0
    %129 = vmatpush1.msra.mxu0 0.0
    %130 = vmatprep.mubr.f32.mxu0 0.0
    %131 = vmatmul.mubr.f32.gmra.mrb[0].mxu0 %v39
    %v132 = vpop.f32.mrb[0].mxu0
    %v133 = vadd.f32 %v36, %v132
    %v134 = vpop.f32.mrb[0].mxu0
    %135 = vmatprep.mubr.f32.mxu0 0.0
    %136 = vmatmul.mubr.f32.gmra.mrb[0].mxu0 %v42
    %v137 = vpop.f32.mrb[0].mxu0
    %v138 = vadd.f32 %v36, %v137
    %v139 = vpop.f32.mrb[0].mxu0
    %140 = vmatprep.mubr.f32.mxu0 0.0
    %141 = vmatmul.mubr.f32.gmra.mrb[0].mxu0 %v45
    %v142 = vpop.f32.mrb[0].mxu0
    %v143 = vadd.f32 %v36, %v142
    %v144 = vpop.f32.mrb[0].mxu0
    %145 = vmatprep.mubr.f32.mxu0 0.0
    %146 = vmatmul.mubr.f32.gmra.mrb[0].mxu0 %v48
    %v147 = vpop.f32.mrb[0].mxu0
    %v148 = vadd.f32 %v36, %v147
    %v149 = vpop.f32.mrb[0].mxu0
    %150 = vmatprep.mubr.f32.mxu0 0.0
    %151 = vmatmul.mubr.f32.gmra.mrb[0].mxu0 %v51
    %v152 = vpop.f32.mrb[0].mxu0
    %v153 = vadd.f32 %v36, %v152
    %v154 = vpop.f32.mrb[0].mxu0
    %155 = vmatprep.mubr.f32.mxu0 0.0
    %156 = vmatmul.mubr.f32.gmra.mrb[0].mxu0 %v54
    %v157 = vpop.f32.mrb[0].mxu0
    %v158 = vadd.f32 %v36, %v157
    %v159 = vpop.f32.mrb[0].mxu0
    %160 = vmatprep.mubr.f32.mxu0 0.0
    %161 = vmatmul.mubr.f32.gmra.mrb[0].mxu0 %v57
    %v162 = vpop.f32.mrb[0].mxu0
    %v163 = vadd.f32 %v36, %v162
    %v164 = vpop.f32.mrb[0].mxu0
    %165 = vmatprep.mubr.f32.mxu0 0.0
    %166 = vmatmul.mubr.f32.gmra.mrb[0].mxu0 %v60
    %v167 = vpop.f32.mrb[0].mxu0
    %v168 = vadd.f32 %v36, %v167
    %v169 = vpop.f32.mrb[0].mxu0
    %170 = vdwg.mxu0
    %v171 = vld [vmem:[%s2 + $0x9] sm:$0x1]
    %v172 = vrot.slane %v133, 6
    %v173 = vrot.slane %v138, 6
    %v174 = vrot.slane %v143, 6
    %v175 = vrot.slane %v148, 6
    %v176 = vrot.slane %v153, 6
    %v177 = vrot.slane %v158, 6
    %v178 = vrot.slane %v163, 6
    %v179 = vrot.slane %v168, 6
    %v180 = vlaneseq
    %v181 = vshrl.u32 %v180, 7
    %vm182 = vcmp.lt.s32.totalorder %v181, 2
    %v183 = vsel %vm182, %v178, %v179
    %v184 = vsel %vm182, %v177, %v178
    %v185 = vsel %vm182, %v176, %v177
    %v186 = vsel %vm182, %v175, %v176
    %v187 = vsel %vm182, %v174, %v175
    %v188 = vsel %vm182, %v173, %v174
    %v189 = vsel %vm182, %v172, %v173
    %v190 = vsel %vm182, %v179, %v172
    %192 = vset.pattern.permute.xlu0 96
    %193 = vperm.xlu0 %192, %v15
    %v194 = vpop.permute.xlu0 %193
    %197 = vset.pattern.permute.xlu0 96
    %198 = vperm.xlu0 %197, %v16
    %v199 = vpop.permute.xlu0 %198
    %202 = vset.pattern.permute.xlu0 96
    %203 = vperm.xlu0 %202, %v17
    %v204 = vpop.permute.xlu0 %203
    %207 = vset.pattern.permute.xlu0 96
    %208 = vperm.xlu0 %207, %v18
    %v209 = vpop.permute.xlu0 %208
    %212 = vset.pattern.permute.xlu0 96
    %213 = vperm.xlu0 %212, %v19
    %v214 = vpop.permute.xlu0 %213
    %217 = vset.pattern.permute.xlu0 96
    %218 = vperm.xlu0 %217, %v20
    %v219 = vpop.permute.xlu0 %218
    %222 = vset.pattern.permute.xlu0 96
    %223 = vperm.xlu0 %222, %v21
    %v224 = vpop.permute.xlu0 %223
    %227 = vset.pattern.permute.xlu0 96
    %228 = vperm.xlu0 %227, %v22
    %v229 = vpop.permute.xlu0 %228
    %v231 = vmul.f32 %v190, %v194
    %v232 = vmul.f32 %v189, %v199
    %v233 = vmul.f32 %v188, %v204
    %v234 = vmul.f32 %v187, %v209
    %v235 = vmul.f32 %v186, %v214
    %v236 = vmul.f32 %v185, %v219
    %v237 = vmul.f32 %v184, %v224
    %v238 = vmul.f32 %v183, %v229
    %v239 = vrot.slane %v133, 7
    %v240 = vrot.slane %v138, 7
    %v241 = vrot.slane %v143, 7
    %v242 = vrot.slane %v148, 7
    %v243 = vrot.slane %v153, 7
    %v244 = vrot.slane %v158, 7
    %v245 = vrot.slane %v163, 7
    %v246 = vrot.slane %v168, 7
    %vm247 = vcmp.lt.s32.totalorder %v181, 1
    %v248 = vsel %vm247, %v245, %v246
    %v249 = vsel %vm247, %v244, %v245
    %v250 = vsel %vm247, %v243, %v244
    %v251 = vsel %vm247, %v242, %v243
    %v252 = vsel %vm247, %v241, %v242
    %v253 = vsel %vm247, %v240, %v241
    %v254 = vsel %vm247, %v239, %v240
    %v255 = vsel %vm247, %v246, %v239
    %256 = vset.pattern.permute.xlu0 97
    %257 = vperm.xlu0 %256, %v15
    %v258 = vpop.permute.xlu0 %257
    %260 = vset.pattern.permute.xlu0 97
    %261 = vperm.xlu0 %260, %v16
    %v262 = vpop.permute.xlu0 %261
    %264 = vset.pattern.permute.xlu0 97
    %265 = vperm.xlu0 %264, %v17
    %v266 = vpop.permute.xlu0 %265
    %268 = vset.pattern.permute.xlu0 97
    %269 = vperm.xlu0 %268, %v18
    %v270 = vpop.permute.xlu0 %269
    %272 = vset.pattern.permute.xlu0 97
    %273 = vperm.xlu0 %272, %v19
    %v274 = vpop.permute.xlu0 %273
    %276 = vset.pattern.permute.xlu0 97
    %277 = vperm.xlu0 %276, %v20
    %v278 = vpop.permute.xlu0 %277
    %280 = vset.pattern.permute.xlu0 97
    %281 = vperm.xlu0 %280, %v21
    %v282 = vpop.permute.xlu0 %281
    %284 = vset.pattern.permute.xlu0 97
    %285 = vperm.xlu0 %284, %v22
    %v286 = vpop.permute.xlu0 %285
    %v288 = vmul.f32 %v255, %v258
    %v289 = vmul.f32 %v254, %v262
    %v290 = vmul.f32 %v253, %v266
    %v291 = vmul.f32 %v252, %v270
    %v292 = vmul.f32 %v251, %v274
    %v293 = vmul.f32 %v250, %v278
    %v294 = vmul.f32 %v249, %v282
    %v295 = vmul.f32 %v248, %v286
    %v296 = vrot.slane %v133, 1
    %v297 = vrot.slane %v138, 1
    %v298 = vrot.slane %v143, 1
    %v299 = vrot.slane %v148, 1
    %v300 = vrot.slane %v153, 1
    %v301 = vrot.slane %v158, 1
    %v302 = vrot.slane %v163, 1
    %v303 = vrot.slane %v168, 1
    %vm304 = vcmp.lt.s32.totalorder %v181, 7
    %v305 = vsel %vm304, %v302, %v303
    %v306 = vsel %vm304, %v301, %v302
    %v307 = vsel %vm304, %v300, %v301
    %v308 = vsel %vm304, %v299, %v300
    %v309 = vsel %vm304, %v298, %v299
    %v310 = vsel %vm304, %v297, %v298
    %v311 = vsel %vm304, %v296, %v297
    %v312 = vsel %vm304, %v303, %v296
    %313 = vset.pattern.permute.xlu0 99
    %314 = vperm.xlu0 %313, %v15
    %v315 = vpop.permute.xlu0 %314
    %317 = vset.pattern.permute.xlu0 99
    %318 = vperm.xlu0 %317, %v16
    %v319 = vpop.permute.xlu0 %318
    %321 = vset.pattern.permute.xlu0 99
    %322 = vperm.xlu0 %321, %v17
    %v323 = vpop.permute.xlu0 %322
    %325 = vset.pattern.permute.xlu0 99
    %326 = vperm.xlu0 %325, %v18
    %v327 = vpop.permute.xlu0 %326
    %329 = vset.pattern.permute.xlu0 99
    %330 = vperm.xlu0 %329, %v19
    %v331 = vpop.permute.xlu0 %330
    %333 = vset.pattern.permute.xlu0 99
    %334 = vperm.xlu0 %333, %v20
    %v335 = vpop.permute.xlu0 %334
    %337 = vset.pattern.permute.xlu0 99
    %338 = vperm.xlu0 %337, %v21
    %v339 = vpop.permute.xlu0 %338
    %341 = vset.pattern.permute.xlu0 99
    %342 = vperm.xlu0 %341, %v22
    %v343 = vpop.permute.xlu0 %342
    %v345 = vmul.f32 %v311, %v315
    %v346 = vmul.f32 %v310, %v319
    %v347 = vmul.f32 %v309, %v323
    %v348 = vmul.f32 %v308, %v327
    %v349 = vmul.f32 %v307, %v331
    %v350 = vmul.f32 %v306, %v335
    %v351 = vmul.f32 %v305, %v339
    %v352 = vmul.f32 %v312, %v343
    %v353 = vrot.slane %v133, 2
    %v354 = vrot.slane %v138, 2
    %v355 = vrot.slane %v143, 2
    %v356 = vrot.slane %v148, 2
    %v357 = vrot.slane %v153, 2
    %v358 = vrot.slane %v158, 2
    %v359 = vrot.slane %v163, 2
    %v360 = vrot.slane %v168, 2
    %vm361 = vcmp.lt.s32.totalorder %v181, 6
    %v362 = vsel %vm361, %v359, %v360
    %v363 = vsel %vm361, %v358, %v359
    %v364 = vsel %vm361, %v357, %v358
    %v365 = vsel %vm361, %v356, %v357
    %v366 = vsel %vm361, %v355, %v356
    %v367 = vsel %vm361, %v354, %v355
    %v368 = vsel %vm361, %v353, %v354
    %v369 = vsel %vm361, %v360, %v353
    %370 = vset.pattern.permute.xlu0 100
    %371 = vperm.xlu0 %370, %v15
    %v372 = vpop.permute.xlu0 %371
    %374 = vset.pattern.permute.xlu0 100
    %375 = vperm.xlu0 %374, %v16
    %v376 = vpop.permute.xlu0 %375
    %378 = vset.pattern.permute.xlu0 100
    %379 = vperm.xlu0 %378, %v17
    %v380 = vpop.permute.xlu0 %379
    %382 = vset.pattern.permute.xlu0 100
    %383 = vperm.xlu0 %382, %v18
    %v384 = vpop.permute.xlu0 %383
    %386 = vset.pattern.permute.xlu0 100
    %387 = vperm.xlu0 %386, %v19
    %v388 = vpop.permute.xlu0 %387
    %390 = vset.pattern.permute.xlu0 100
    %391 = vperm.xlu0 %390, %v20
    %v392 = vpop.permute.xlu0 %391
    %394 = vset.pattern.permute.xlu0 100
    %395 = vperm.xlu0 %394, %v21
    %v396 = vpop.permute.xlu0 %395
    %398 = vset.pattern.permute.xlu0 100
    %399 = vperm.xlu0 %398, %v22
    %v400 = vpop.permute.xlu0 %399
    %v402 = vmul.f32 %v368, %v372
    %v403 = vmul.f32 %v367, %v376
    %v404 = vmul.f32 %v366, %v380
    %v405 = vmul.f32 %v365, %v384
    %v406 = vmul.f32 %v364, %v388
    %v407 = vmul.f32 %v363, %v392
    %v408 = vmul.f32 %v362, %v396
    %v409 = vmul.f32 %v369, %v400
    %418 = vrot.lane.b32.xlu0 %v288, 64
    %v419 = vpop.permute.xlu0 %418
    %420 = vrot.lane.b32.xlu0 %v289, 64
    %v421 = vpop.permute.xlu0 %420
    %422 = vrot.lane.b32.xlu0 %v290, 64
    %v423 = vpop.permute.xlu0 %422
    %424 = vrot.lane.b32.xlu0 %v291, 64
    %v425 = vpop.permute.xlu0 %424
    %426 = vrot.lane.b32.xlu0 %v292, 64
    %v427 = vpop.permute.xlu0 %426
    %428 = vrot.lane.b32.xlu0 %v293, 64
    %v429 = vpop.permute.xlu0 %428
    %430 = vrot.lane.b32.xlu0 %v294, 64
    %v431 = vpop.permute.xlu0 %430
    %432 = vrot.lane.b32.xlu0 %v295, 64
    %v433 = vpop.permute.xlu0 %432
    %450 = vrot.lane.b32.xlu0 %v345, 64
    %v451 = vpop.permute.xlu0 %450
    %452 = vrot.lane.b32.xlu0 %v346, 64
    %v453 = vpop.permute.xlu0 %452
    %454 = vrot.lane.b32.xlu0 %v347, 64
    %v455 = vpop.permute.xlu0 %454
    %456 = vrot.lane.b32.xlu0 %v348, 64
    %v457 = vpop.permute.xlu0 %456
    %458 = vrot.lane.b32.xlu0 %v349, 64
    %v459 = vpop.permute.xlu0 %458
    %460 = vrot.lane.b32.xlu0 %v350, 64
    %v461 = vpop.permute.xlu0 %460
    %462 = vrot.lane.b32.xlu0 %v351, 64
    %v463 = vpop.permute.xlu0 %462
    %464 = vrot.lane.b32.xlu0 %v352, 64
    %v465 = vpop.permute.xlu0 %464
    %vm474 = vcmask 523264
    %v475 = vsel %vm474, %v231, %v419
    %v476 = vsel %vm474, %v232, %v421
    %v477 = vsel %vm474, %v233, %v423
    %v478 = vsel %vm474, %v234, %v425
    %v479 = vsel %vm474, %v235, %v427
    %v480 = vsel %vm474, %v236, %v429
    %v481 = vsel %vm474, %v237, %v431
    %v482 = vsel %vm474, %v238, %v433
    %v483 = vsel %vm474, %v133, %v451
    %v484 = vsel %vm474, %v138, %v453
    %v485 = vsel %vm474, %v143, %v455
    %v486 = vsel %vm474, %v148, %v457
    %v487 = vsel %vm474, %v153, %v459
    %v488 = vsel %vm474, %v158, %v461
    %v489 = vsel %vm474, %v163, %v463
    %v490 = vsel %vm474, %v168, %v465
    %v491 = vld [vmem:[%s1 + $0x280] sm:$0xff]
    %v492 = vld [vmem:[%s1 + $0x288] sm:$0xff]
    %v493 = vld [vmem:[%s1 + $0x290] sm:$0xff]
    %v494 = vld [vmem:[%s1 + $0x298] sm:$0xff]
    %v495 = vld [vmem:[%s1 + $0x2a0] sm:$0xff]
    %v496 = vld [vmem:[%s1 + $0x2a8] sm:$0xff]
    %v497 = vld [vmem:[%s1 + $0x2b0] sm:$0xff]
    %v498 = vld [vmem:[%s1 + $0x2b8] sm:$0xff]
    %v499 = vld [vmem:[%s1 + $0x2c0] sm:$0xff]
    %v500 = vld [vmem:[%s1 + $0x2c8] sm:$0xff]
    %v501 = vld [vmem:[%s1 + $0x2d0] sm:$0xff]
    %v502 = vld [vmem:[%s1 + $0x2d8] sm:$0xff]
    %v503 = vld [vmem:[%s1 + $0x2e0] sm:$0xff]
    %v504 = vld [vmem:[%s1 + $0x2e8] sm:$0xff]
    %v505 = vld [vmem:[%s1 + $0x2f0] sm:$0xff]
    %v506 = vld [vmem:[%s1 + $0x2f8] sm:$0xff]
    %v507 = vld [vmem:[%s1 + $0x300] sm:$0xff]
    %v508 = vld [vmem:[%s1 + $0x308] sm:$0xff]
    %v509 = vld [vmem:[%s1 + $0x310] sm:$0xff]
    %v510 = vld [vmem:[%s1 + $0x318] sm:$0xff]
    %v511 = vld [vmem:[%s1 + $0x320] sm:$0xff]
    %v512 = vld [vmem:[%s1 + $0x328] sm:$0xff]
    %v513 = vld [vmem:[%s1 + $0x330] sm:$0xff]
    %v514 = vld [vmem:[%s1 + $0x338] sm:$0xff]
    %v515 = vld [vmem:[%s1 + $0x340] sm:$0xff]
    %v516 = vld [vmem:[%s1 + $0x348] sm:$0xff]
    %v517 = vld [vmem:[%s1 + $0x350] sm:$0xff]
    %v518 = vld [vmem:[%s1 + $0x358] sm:$0xff]
    %v519 = vld [vmem:[%s1 + $0x360] sm:$0xff]
    %v520 = vld [vmem:[%s1 + $0x368] sm:$0xff]
    %v521 = vld [vmem:[%s1 + $0x370] sm:$0xff]
    %v522 = vld [vmem:[%s1 + $0x378] sm:$0xff]
    %v523 = vld [vmem:[%s1 + $0x380] sm:$0xff]
    %v524 = vld [vmem:[%s1 + $0x388] sm:$0xff]
    %v525 = vld [vmem:[%s1 + $0x390] sm:$0xff]
    %v526 = vld [vmem:[%s1 + $0x398] sm:$0xff]
    %v527 = vld [vmem:[%s1 + $0x3a0] sm:$0xff]
    %v528 = vld [vmem:[%s1 + $0x3a8] sm:$0xff]
    %v529 = vld [vmem:[%s1 + $0x3b0] sm:$0xff]
    %v530 = vld [vmem:[%s1 + $0x3b8] sm:$0xff]
    %v532 = vsel %vm474, %v402, 0
    %v535 = vsel %vm474, %v403, 0
    %v538 = vsel %vm474, %v404, 0
    %v541 = vsel %vm474, %v405, 0
    %v544 = vsel %vm474, %v406, 0
    %v547 = vsel %vm474, %v407, 0
    %v550 = vsel %vm474, %v408, 0
    %v553 = vsel %vm474, %v409, 0
    %555 = vmatprep.subr.mxu0 0.0
    %556 = vmatpush1.msra.mxu0 %v491
    %557 = vmatprep.subr.mxu0 0.0
    %558 = vmatpush1.msra.mxu0 %v492
    %559 = vmatprep.subr.mxu0 0.0
    %560 = vmatpush1.msra.mxu0 %v493
    %561 = vmatprep.subr.mxu0 0.0
    %562 = vmatpush1.msra.mxu0 %v494
    %563 = vmatprep.subr.mxu0 0.0
    %564 = vmatpush1.msra.mxu0 %v495
    %565 = vmatprep.subr.mxu0 0.0
    %566 = vmatpush1.msra.mxu0 %v496
    %567 = vmatprep.subr.mxu0 0.0
    %568 = vmatpush1.msra.mxu0 %v497
    %569 = vmatprep.subr.mxu0 0.0
    %570 = vmatpush1.msra.mxu0 %v498
    %571 = vmatprep.subr.mxu0 0.0
    %572 = vmatpush1.msra.mxu0 %v499
    %573 = vmatprep.subr.mxu0 0.0
    %574 = vmatpush1.msra.mxu0 %v500
    %575 = vmatprep.subr.mxu0 0.0
    %576 = vmatpush1.msra.mxu0 %v501
    %577 = vmatprep.subr.mxu0 0.0
    %578 = vmatpush1.msra.mxu0 %v502
    %579 = vmatprep.subr.mxu0 0.0
    %580 = vmatpush1.msra.mxu0 %v503
    %581 = vmatprep.subr.mxu0 0.0
    %582 = vmatpush1.msra.mxu0 %v504
    %583 = vmatprep.subr.mxu0 0.0
    %584 = vmatpush1.msra.mxu0 %v505
    %585 = vmatprep.subr.mxu0 0.0
    %586 = vmatpush1.msra.mxu0 %v506
    %587 = vmatprep.subr.mxu0 0.0
    %588 = vmatpush1.msra.mxu0 %v507
    %589 = vmatprep.subr.mxu0 0.0
    %590 = vmatpush1.msra.mxu0 %v508
    %591 = vmatprep.subr.mxu0 0.0
    %592 = vmatpush1.msra.mxu0 %v509
    %593 = vmatprep.subr.mxu0 0.0
    %594 = vmatpush1.msra.mxu0 %v510
    %595 = vmatprep.subr.mxu0 0.0
    %596 = vmatpush1.msra.mxu0 %v511
    %597 = vmatprep.subr.mxu0 0.0
    %598 = vmatpush1.msra.mxu0 %v512
    %599 = vmatprep.subr.mxu0 0.0
    %600 = vmatpush1.msra.mxu0 %v513
    %601 = vmatprep.subr.mxu0 0.0
    %602 = vmatpush1.msra.mxu0 %v514
    %603 = vmatprep.subr.mxu0 0.0
    %604 = vmatpush1.msra.mxu0 %v515
    %605 = vmatprep.subr.mxu0 0.0
    %606 = vmatpush1.msra.mxu0 %v516
    %607 = vmatprep.subr.mxu0 0.0
    %608 = vmatpush1.msra.mxu0 %v517
    %609 = vmatprep.subr.mxu0 0.0
    %610 = vmatpush1.msra.mxu0 %v518
    %611 = vmatprep.subr.mxu0 0.0
    %612 = vmatpush1.msra.mxu0 %v519
    %613 = vmatprep.subr.mxu0 0.0
    %614 = vmatpush1.msra.mxu0 %v520
    %615 = vmatprep.subr.mxu0 0.0
    %616 = vmatpush1.msra.mxu0 %v521
    %617 = vmatprep.subr.mxu0 0.0
    %618 = vmatpush1.msra.mxu0 %v522
    %619 = vmatprep.mubr.f32.mxu0 %v483
    %620 = vmatmul.mubr.f32.gmra.mrb[0].mxu0 %v475
    %v621 = vpop.f32.mrb[0].mxu0
    %v622 = vadd.f32 0.0, %v621
    %v623 = vpop.f32.mrb[0].mxu0
    %624 = vmatprep.mubr.f32.mxu0 %v484
    %625 = vmatmul.mubr.f32.gmra.mrb[0].mxu0 %v476
    %v626 = vpop.f32.mrb[0].mxu0
    %v627 = vadd.f32 0.0, %v626
    %v628 = vpop.f32.mrb[0].mxu0
    %629 = vmatprep.mubr.f32.mxu0 %v485
    %630 = vmatmul.mubr.f32.gmra.mrb[0].mxu0 %v477
    %v631 = vpop.f32.mrb[0].mxu0
    %v632 = vadd.f32 0.0, %v631
    %v633 = vpop.f32.mrb[0].mxu0
    %634 = vmatprep.mubr.f32.mxu0 %v486
    %635 = vmatmul.mubr.f32.gmra.mrb[0].mxu0 %v478
    %v636 = vpop.f32.mrb[0].mxu0
    %v637 = vadd.f32 0.0, %v636
    %v638 = vpop.f32.mrb[0].mxu0
    %639 = vmatprep.mubr.f32.mxu0 %v487
    %640 = vmatmul.mubr.f32.gmra.mrb[0].mxu0 %v479
    %v641 = vpop.f32.mrb[0].mxu0
    %v642 = vadd.f32 0.0, %v641
    %v643 = vpop.f32.mrb[0].mxu0
    %644 = vmatprep.mubr.f32.mxu0 %v488
    %645 = vmatmul.mubr.f32.gmra.mrb[0].mxu0 %v480
    %v646 = vpop.f32.mrb[0].mxu0
    %v647 = vadd.f32 0.0, %v646
    %v648 = vpop.f32.mrb[0].mxu0
    %649 = vmatprep.mubr.f32.mxu0 %v489
    %650 = vmatmul.mubr.f32.gmra.mrb[0].mxu0 %v481
    %v651 = vpop.f32.mrb[0].mxu0
    %v652 = vadd.f32 0.0, %v651
    %v653 = vpop.f32.mrb[0].mxu0
    %654 = vmatprep.mubr.f32.mxu0 %v490
    %655 = vmatmul.mubr.f32.gmra.mrb[0].mxu0 %v482
    %v656 = vpop.f32.mrb[0].mxu0
    %v657 = vadd.f32 0.0, %v656
    %v658 = vpop.f32.mrb[0].mxu0
    %659 = vdwg.mxu0
    %660 = vmatprep.subr.mxu0 0.0
    %661 = vmatpush1.msra.mxu0 %v523
    %662 = vmatprep.subr.mxu0 0.0
    %663 = vmatpush1.msra.mxu0 %v524
    %664 = vmatprep.subr.mxu0 0.0
    %665 = vmatpush1.msra.mxu0 %v525
    %666 = vmatprep.subr.mxu0 0.0
    %667 = vmatpush1.msra.mxu0 %v526
    %668 = vmatprep.subr.mxu0 0.0
    %669 = vmatpush1.msra.mxu0 %v527
    %670 = vmatprep.subr.mxu0 0.0
    %671 = vmatpush1.msra.mxu0 %v528
    %672 = vmatprep.subr.mxu0 0.0
    %673 = vmatpush1.msra.mxu0 %v529
    %674 = vmatprep.subr.mxu0 0.0
    %675 = vmatpush1.msra.mxu0 %v530
    %676 = vmatprep.subr.mxu0 0.0
    %677 = vmatpush1.msra.mxu0 0.0
    %678 = vmatprep.subr.mxu0 0.0
    %679 = vmatpush1.msra.mxu0 0.0
    %680 = vmatprep.subr.mxu0 0.0
    %681 = vmatpush1.msra.mxu0 0.0
    %682 = vmatprep.subr.mxu0 0.0
    %683 = vmatpush1.msra.mxu0 0.0
    %684 = vmatprep.subr.mxu0 0.0
    %685 = vmatpush1.msra.mxu0 0.0
    %686 = vmatprep.subr.mxu0 0.0
    %687 = vmatpush1.msra.mxu0 0.0
    %688 = vmatprep.subr.mxu0 0.0
    %689 = vmatpush1.msra.mxu0 0.0
    %690 = vmatprep.subr.mxu0 0.0
    %691 = vmatpush1.msra.mxu0 0.0
    %692 = vmatprep.subr.mxu0 0.0
    %693 = vmatpush1.msra.mxu0 0.0
    %694 = vmatprep.subr.mxu0 0.0
    %695 = vmatpush1.msra.mxu0 0.0
    %696 = vmatprep.subr.mxu0 0.0
    %697 = vmatpush1.msra.mxu0 0.0
    %698 = vmatprep.subr.mxu0 0.0
    %699 = vmatpush1.msra.mxu0 0.0
    %700 = vmatprep.subr.mxu0 0.0
    %701 = vmatpush1.msra.mxu0 0.0
    %702 = vmatprep.subr.mxu0 0.0
    %703 = vmatpush1.msra.mxu0 0.0
    %704 = vmatprep.subr.mxu0 0.0
    %705 = vmatpush1.msra.mxu0 0.0
    %706 = vmatprep.subr.mxu0 0.0
    %707 = vmatpush1.msra.mxu0 0.0
    %708 = vmatprep.subr.mxu0 0.0
    %709 = vmatpush1.msra.mxu0 0.0
    %710 = vmatprep.subr.mxu0 0.0
    %711 = vmatpush1.msra.mxu0 0.0
    %712 = vmatprep.subr.mxu0 0.0
    %713 = vmatpush1.msra.mxu0 0.0
    %714 = vmatprep.subr.mxu0 0.0
    %715 = vmatpush1.msra.mxu0 0.0
    %716 = vmatprep.subr.mxu0 0.0
    %717 = vmatpush1.msra.mxu0 0.0
    %718 = vmatprep.subr.mxu0 0.0
    %719 = vmatpush1.msra.mxu0 0.0
    %720 = vmatprep.subr.mxu0 0.0
    %721 = vmatpush1.msra.mxu0 0.0
    %722 = vmatprep.subr.mxu0 0.0
    %723 = vmatpush1.msra.mxu0 0.0
    %724 = vmatprep.mubr.f32.mxu0 0.0
    %725 = vmatmul.mubr.f32.gmra.mrb[0].mxu0 %v532
    %v726 = vpop.f32.mrb[0].mxu0
    %v727 = vadd.f32 %v622, %v726
    %v728 = vpop.f32.mrb[0].mxu0
    %729 = vmatprep.mubr.f32.mxu0 0.0
    %730 = vmatmul.mubr.f32.gmra.mrb[0].mxu0 %v535
    %v731 = vpop.f32.mrb[0].mxu0
    %v732 = vadd.f32 %v627, %v731
    %v733 = vpop.f32.mrb[0].mxu0
    %734 = vmatprep.mubr.f32.mxu0 0.0
    %735 = vmatmul.mubr.f32.gmra.mrb[0].mxu0 %v538
    %v736 = vpop.f32.mrb[0].mxu0
    %v737 = vadd.f32 %v632, %v736
    %v738 = vpop.f32.mrb[0].mxu0
    %739 = vmatprep.mubr.f32.mxu0 0.0
    %740 = vmatmul.mubr.f32.gmra.mrb[0].mxu0 %v541
    %v741 = vpop.f32.mrb[0].mxu0
    %v742 = vadd.f32 %v637, %v741
    %v743 = vpop.f32.mrb[0].mxu0
    %744 = vmatprep.mubr.f32.mxu0 0.0
    %745 = vmatmul.mubr.f32.gmra.mrb[0].mxu0 %v544
    %v746 = vpop.f32.mrb[0].mxu0
    %v747 = vadd.f32 %v642, %v746
    %v748 = vpop.f32.mrb[0].mxu0
    %749 = vmatprep.mubr.f32.mxu0 0.0
    %750 = vmatmul.mubr.f32.gmra.mrb[0].mxu0 %v547
    %v751 = vpop.f32.mrb[0].mxu0
    %v752 = vadd.f32 %v647, %v751
    %v753 = vpop.f32.mrb[0].mxu0
    %754 = vmatprep.mubr.f32.mxu0 0.0
    %755 = vmatmul.mubr.f32.gmra.mrb[0].mxu0 %v550
    %v756 = vpop.f32.mrb[0].mxu0
    %v757 = vadd.f32 %v652, %v756
    %v758 = vpop.f32.mrb[0].mxu0
    %759 = vmatprep.mubr.f32.mxu0 0.0
    %760 = vmatmul.mubr.f32.gmra.mrb[0].mxu0 %v553
    %v761 = vpop.f32.mrb[0].mxu0
    %v762 = vadd.f32 %v657, %v761
    %v763 = vpop.f32.mrb[0].mxu0
    %764 = vdwg.mxu0
    %v765 = vlaneseq
    %v766 = vshrl.u32 %v765, 7
    %v767 = vsub.s32 0, %v766
    %v768 = vrot.slane %v171, %v767
    %v769 = vadd.f32 %v768, %v727
    %v770 = vadd.f32 %v768, %v732
    %v771 = vadd.f32 %v768, %v737
    %v772 = vadd.f32 %v768, %v742
    %v773 = vadd.f32 %v768, %v747
    %v774 = vadd.f32 %v768, %v752
    %v775 = vadd.f32 %v768, %v757
    %v776 = vadd.f32 %v768, %v762
    %vm777 = vcmask 261120
    %778 = vst.msk [vmem:[#allocation2] sm:$0xff] %vm777, %v769
    %779 = vst.msk [vmem:[#allocation2 + $0x8] sm:$0xff] %vm777, %v770
    %780 = vst.msk [vmem:[#allocation2 + $0x10] sm:$0xff] %vm777, %v771
    %781 = vst.msk [vmem:[#allocation2 + $0x18] sm:$0xff] %vm777, %v772
    %782 = vst.msk [vmem:[#allocation2 + $0x20] sm:$0xff] %vm777, %v773
    %783 = vst.msk [vmem:[#allocation2 + $0x28] sm:$0xff] %vm777, %v774
    %784 = vst.msk [vmem:[#allocation2 + $0x30] sm:$0xff] %vm777, %v775
    %785 = vst.msk [vmem:[#allocation2 + $0x38] sm:$0xff] %vm777, %v776
    %v786 = vld [vmem:[%s1] sm:$0xff]
    %v787 = vld [vmem:[%s1 + $0x8] sm:$0xff]
    %v788 = vld [vmem:[%s1 + $0x10] sm:$0xff]
    %v789 = vld [vmem:[%s1 + $0x18] sm:$0xff]
    %v790 = vld [vmem:[%s1 + $0x20] sm:$0xff]
    %v791 = vld [vmem:[%s1 + $0x28] sm:$0xff]
    %v792 = vld [vmem:[%s1 + $0x30] sm:$0xff]
    %v793 = vld [vmem:[%s1 + $0x38] sm:$0xff]
    %v794 = vld [vmem:[%s1 + $0x40] sm:$0xff]
    %v795 = vld [vmem:[%s1 + $0x48] sm:$0xff]
    %v796 = vld [vmem:[%s1 + $0x50] sm:$0xff]
    %v797 = vld [vmem:[%s1 + $0x58] sm:$0xff]
    %v798 = vld [vmem:[%s1 + $0x60] sm:$0xff]
    %v799 = vld [vmem:[%s1 + $0x68] sm:$0xff]
    %v800 = vld [vmem:[%s1 + $0x70] sm:$0xff]
    %v801 = vld [vmem:[%s1 + $0x78] sm:$0xff]
    %v802 = vld [vmem:[%s1 + $0x80] sm:$0xff]
    %v803 = vld [vmem:[%s1 + $0x88] sm:$0xff]
    %v804 = vld [vmem:[%s1 + $0x90] sm:$0xff]
    %v805 = vld [vmem:[%s1 + $0x98] sm:$0xff]
    %v806 = vld [vmem:[%s1 + $0xa0] sm:$0xff]
    %v807 = vld [vmem:[%s1 + $0xa8] sm:$0xff]
    %v808 = vld [vmem:[%s1 + $0xb0] sm:$0xff]
    %v809 = vld [vmem:[%s1 + $0xb8] sm:$0xff]
    %v810 = vld [vmem:[%s1 + $0xc0] sm:$0xff]
    %v811 = vld [vmem:[%s1 + $0xc8] sm:$0xff]
    %v812 = vld [vmem:[%s1 + $0xd0] sm:$0xff]
    %v813 = vld [vmem:[%s1 + $0xd8] sm:$0xff]
    %v814 = vld [vmem:[%s1 + $0xe0] sm:$0xff]
    %v815 = vld [vmem:[%s1 + $0xe8] sm:$0xff]
    %v816 = vld [vmem:[%s1 + $0xf0] sm:$0xff]
    %v817 = vld [vmem:[%s1 + $0xf8] sm:$0xff]
    %v818 = vld [vmem:[%s1 + $0x100] sm:$0xff]
    %v819 = vld [vmem:[%s1 + $0x108] sm:$0xff]
    %v820 = vld [vmem:[%s1 + $0x110] sm:$0xff]
    %v821 = vld [vmem:[%s1 + $0x118] sm:$0xff]
    %v822 = vld [vmem:[%s1 + $0x120] sm:$0xff]
    %v823 = vld [vmem:[%s1 + $0x128] sm:$0xff]
    %v824 = vld [vmem:[%s1 + $0x130] sm:$0xff]
    %v825 = vld [vmem:[%s1 + $0x138] sm:$0xff]
    %826 = vmatprep.subr.mxu0 0.0
    %827 = vmatpush1.msra.mxu0 %v786
    %828 = vmatprep.subr.mxu0 0.0
    %829 = vmatpush1.msra.mxu0 %v787
    %830 = vmatprep.subr.mxu0 0.0
    %831 = vmatpush1.msra.mxu0 %v788
    %832 = vmatprep.subr.mxu0 0.0
    %833 = vmatpush1.msra.mxu0 %v789
    %834 = vmatprep.subr.mxu0 0.0
    %835 = vmatpush1.msra.mxu0 %v790
    %836 = vmatprep.subr.mxu0 0.0
    %837 = vmatpush1.msra.mxu0 %v791
    %838 = vmatprep.subr.mxu0 0.0
    %839 = vmatpush1.msra.mxu0 %v792
    %840 = vmatprep.subr.mxu0 0.0
    %841 = vmatpush1.msra.mxu0 %v793
    %842 = vmatprep.subr.mxu0 0.0
    %843 = vmatpush1.msra.mxu0 %v794
    %844 = vmatprep.subr.mxu0 0.0
    %845 = vmatpush1.msra.mxu0 %v795
    %846 = vmatprep.subr.mxu0 0.0
    %847 = vmatpush1.msra.mxu0 %v796
    %848 = vmatprep.subr.mxu0 0.0
    %849 = vmatpush1.msra.mxu0 %v797
    %850 = vmatprep.subr.mxu0 0.0
    %851 = vmatpush1.msra.mxu0 %v798
    %852 = vmatprep.subr.mxu0 0.0
    %853 = vmatpush1.msra.mxu0 %v799
    %854 = vmatprep.subr.mxu0 0.0
    %855 = vmatpush1.msra.mxu0 %v800
    %856 = vmatprep.subr.mxu0 0.0
    %857 = vmatpush1.msra.mxu0 %v801
    %858 = vmatprep.subr.mxu0 0.0
    %859 = vmatpush1.msra.mxu0 %v802
    %860 = vmatprep.subr.mxu0 0.0
    %861 = vmatpush1.msra.mxu0 %v803
    %862 = vmatprep.subr.mxu0 0.0
    %863 = vmatpush1.msra.mxu0 %v804
    %864 = vmatprep.subr.mxu0 0.0
    %865 = vmatpush1.msra.mxu0 %v805
    %866 = vmatprep.subr.mxu0 0.0
    %867 = vmatpush1.msra.mxu0 %v806
    %868 = vmatprep.subr.mxu0 0.0
    %869 = vmatpush1.msra.mxu0 %v807
    %870 = vmatprep.subr.mxu0 0.0
    %871 = vmatpush1.msra.mxu0 %v808
    %872 = vmatprep.subr.mxu0 0.0
    %873 = vmatpush1.msra.mxu0 %v809
    %874 = vmatprep.subr.mxu0 0.0
    %875 = vmatpush1.msra.mxu0 %v810
    %876 = vmatprep.subr.mxu0 0.0
    %877 = vmatpush1.msra.mxu0 %v811
    %878 = vmatprep.subr.mxu0 0.0
    %879 = vmatpush1.msra.mxu0 %v812
    %880 = vmatprep.subr.mxu0 0.0
    %881 = vmatpush1.msra.mxu0 %v813
    %882 = vmatprep.subr.mxu0 0.0
    %883 = vmatpush1.msra.mxu0 %v814
    %884 = vmatprep.subr.mxu0 0.0
    %885 = vmatpush1.msra.mxu0 %v815
    %886 = vmatprep.subr.mxu0 0.0
    %887 = vmatpush1.msra.mxu0 %v816
    %888 = vmatprep.subr.mxu0 0.0
    %889 = vmatpush1.msra.mxu0 %v817
    %890 = vmatprep.mubr.f32.mxu0 %v483
    %891 = vmatmul.mubr.f32.gmra.mrb[0].mxu0 %v475
    %v892 = vpop.f32.mrb[0].mxu0
    %v893 = vadd.f32 0.0, %v892
    %v894 = vpop.f32.mrb[0].mxu0
    %895 = vmatprep.mubr.f32.mxu0 %v484
    %896 = vmatmul.mubr.f32.gmra.mrb[0].mxu0 %v476
    %v897 = vpop.f32.mrb[0].mxu0
    %v898 = vadd.f32 0.0, %v897
    %v899 = vpop.f32.mrb[0].mxu0
    %900 = vmatprep.mubr.f32.mxu0 %v485
    %901 = vmatmul.mubr.f32.gmra.mrb[0].mxu0 %v477
    %v902 = vpop.f32.mrb[0].mxu0
    %v903 = vadd.f32 0.0, %v902
    %v904 = vpop.f32.mrb[0].mxu0
    %905 = vmatprep.mubr.f32.mxu0 %v486
    %906 = vmatmul.mubr.f32.gmra.mrb[0].mxu0 %v478
    %v907 = vpop.f32.mrb[0].mxu0
    %v908 = vadd.f32 0.0, %v907
    %v909 = vpop.f32.mrb[0].mxu0
    %910 = vmatprep.mubr.f32.mxu0 %v487
    %911 = vmatmul.mubr.f32.gmra.mrb[0].mxu0 %v479
    %v912 = vpop.f32.mrb[0].mxu0
    %v913 = vadd.f32 0.0, %v912
    %v914 = vpop.f32.mrb[0].mxu0
    %915 = vmatprep.mubr.f32.mxu0 %v488
    %916 = vmatmul.mubr.f32.gmra.mrb[0].mxu0 %v480
    %v917 = vpop.f32.mrb[0].mxu0
    %v918 = vadd.f32 0.0, %v917
    %v919 = vpop.f32.mrb[0].mxu0
    %920 = vdwg.mxu0
    %921 = vmatprep.subr.mxu0 0.0
    %922 = vmatpush1.msra.mxu0 %v818
    %923 = vmatprep.subr.mxu0 0.0
    %924 = vmatpush1.msra.mxu0 %v819
    %925 = vmatprep.subr.mxu0 0.0
    %926 = vmatpush1.msra.mxu0 %v820
    %927 = vmatprep.subr.mxu0 0.0
    %928 = vmatpush1.msra.mxu0 %v821
    %929 = vmatprep.subr.mxu0 0.0
    %930 = vmatpush1.msra.mxu0 %v822
    %931 = vmatprep.subr.mxu0 0.0
    %932 = vmatpush1.msra.mxu0 %v823
    %933 = vmatprep.subr.mxu0 0.0
    %934 = vmatpush1.msra.mxu0 %v824
    %935 = vmatprep.subr.mxu0 0.0
    %936 = vmatpush1.msra.mxu0 %v825
    %937 = vmatprep.subr.mxu0 0.0
    %938 = vmatpush1.msra.mxu0 0.0
    %939 = vmatprep.subr.mxu0 0.0
    %940 = vmatpush1.msra.mxu0 0.0
    %941 = vmatprep.subr.mxu0 0.0
    %942 = vmatpush1.msra.mxu0 0.0
    %943 = vmatprep.subr.mxu0 0.0
    %944 = vmatpush1.msra.mxu0 0.0
    %945 = vmatprep.subr.mxu0 0.0
    %946 = vmatpush1.msra.mxu0 0.0
    %947 = vmatprep.subr.mxu0 0.0
    %948 = vmatpush1.msra.mxu0 0.0
    %949 = vmatprep.subr.mxu0 0.0
    %950 = vmatpush1.msra.mxu0 0.0
    %951 = vmatprep.subr.mxu0 0.0
    %952 = vmatpush1.msra.mxu0 0.0
    %953 = vmatprep.subr.mxu0 0.0
    %954 = vmatpush1.msra.mxu0 0.0
    %955 = vmatprep.subr.mxu0 0.0
    %956 = vmatpush1.msra.mxu0 0.0
    %957 = vmatprep.subr.mxu0 0.0
    %958 = vmatpush1.msra.mxu0 0.0
    %959 = vmatprep.subr.mxu0 0.0
    %960 = vmatpush1.msra.mxu0 0.0
    %961 = vmatprep.subr.mxu0 0.0
    %962 = vmatpush1.msra.mxu0 0.0
    %963 = vmatprep.subr.mxu0 0.0
    %964 = vmatpush1.msra.mxu0 0.0
    %965 = vmatprep.subr.mxu0 0.0
    %966 = vmatpush1.msra.mxu0 0.0
    %967 = vmatprep.subr.mxu0 0.0
    %968 = vmatpush1.msra.mxu0 0.0
    %969 = vmatprep.subr.mxu0 0.0
    %970 = vmatpush1.msra.mxu0 0.0
    %971 = vmatprep.subr.mxu0 0.0
    %972 = vmatpush1.msra.mxu0 0.0
    %973 = vmatprep.subr.mxu0 0.0
    %974 = vmatpush1.msra.mxu0 0.0
    %975 = vmatprep.subr.mxu0 0.0
    %976 = vmatpush1.msra.mxu0 0.0
    %977 = vmatprep.subr.mxu0 0.0
    %978 = vmatpush1.msra.mxu0 0.0
    %979 = vmatprep.subr.mxu0 0.0
    %980 = vmatpush1.msra.mxu0 0.0
    %981 = vmatprep.subr.mxu0 0.0
    %982 = vmatpush1.msra.mxu0 0.0
    %983 = vmatprep.subr.mxu0 0.0
    %984 = vmatpush1.msra.mxu0 0.0
    %985 = vmatprep.mubr.f32.mxu0 0.0
    %986 = vmatmul.mubr.f32.gmra.mrb[0].mxu0 %v532
    %v987 = vpop.f32.mrb[0].mxu0
    %v988 = vadd.f32 %v893, %v987
    %v989 = vpop.f32.mrb[0].mxu0
    %990 = vmatprep.mubr.f32.mxu0 0.0
    %991 = vmatmul.mubr.f32.gmra.mrb[0].mxu0 %v535
    %v992 = vpop.f32.mrb[0].mxu0
    %v993 = vadd.f32 %v898, %v992
    %v994 = vpop.f32.mrb[0].mxu0
    %995 = vmatprep.mubr.f32.mxu0 0.0
    %996 = vmatmul.mubr.f32.gmra.mrb[0].mxu0 %v538
    %v997 = vpop.f32.mrb[0].mxu0
    %v998 = vadd.f32 %v903, %v997
    %v999 = vpop.f32.mrb[0].mxu0
    %1000 = vmatprep.mubr.f32.mxu0 0.0
    %1001 = vmatmul.mubr.f32.gmra.mrb[0].mxu0 %v541
    %v1002 = vpop.f32.mrb[0].mxu0
    %v1003 = vadd.f32 %v908, %v1002
    %v1004 = vpop.f32.mrb[0].mxu0
    %1005 = vmatprep.mubr.f32.mxu0 0.0
    %1006 = vmatmul.mubr.f32.gmra.mrb[0].mxu0 %v544
    %v1007 = vpop.f32.mrb[0].mxu0
    %v1008 = vadd.f32 %v913, %v1007
    %v1009 = vpop.f32.mrb[0].mxu0
    %1010 = vmatprep.mubr.f32.mxu0 0.0
    %1011 = vmatmul.mubr.f32.gmra.mrb[0].mxu0 %v547
    %v1012 = vpop.f32.mrb[0].mxu0
    %v1013 = vadd.f32 %v918, %v1012
    %v1014 = vpop.f32.mrb[0].mxu0
    %1015 = vdwg.mxu0
    %v1016 = vld [vmem:[#allocation2 + $0x10] sm:$0xff]
    %v1017 = vld [vmem:[#allocation2 + $0x18] sm:$0xff]
    %v1018 = vld [vmem:[#allocation2 + $0x20] sm:$0xff]
    %v1019 = vld [vmem:[#allocation2 + $0x28] sm:$0xff]
    %v1020 = vld [vmem:[#allocation2 + $0x30] sm:$0xff]
    %v1021 = vld [vmem:[#allocation2 + $0x38] sm:$0xff]
    %v1022 = vadd.f32 %v1016, %v988
    %v1023 = vadd.f32 %v1017, %v993
    %v1024 = vadd.f32 %v1018, %v998
    %v1025 = vadd.f32 %v1019, %v1003
    %v1026 = vadd.f32 %v1020, %v1008
    %v1027 = vadd.f32 %v1021, %v1013
    %1028 = vst.msk [vmem:[#allocation2 + $0x10] sm:$0xff] %vm777, %v1022
    %1029 = vst.msk [vmem:[#allocation2 + $0x18] sm:$0xff] %vm777, %v1023
    %1030 = vst.msk [vmem:[#allocation2 + $0x20] sm:$0xff] %vm777, %v1024
    %1031 = vst.msk [vmem:[#allocation2 + $0x28] sm:$0xff] %vm777, %v1025
    %1032 = vst.msk [vmem:[#allocation2 + $0x30] sm:$0xff] %vm777, %v1026
    %1033 = vst.msk [vmem:[#allocation2 + $0x38] sm:$0xff] %vm777, %v1027
    %v1034 = vld [vmem:[%s1 + $0x140] sm:$0xff]
    %v1035 = vld [vmem:[%s1 + $0x148] sm:$0xff]
    %v1036 = vld [vmem:[%s1 + $0x150] sm:$0xff]
    %v1037 = vld [vmem:[%s1 + $0x158] sm:$0xff]
    %v1038 = vld [vmem:[%s1 + $0x160] sm:$0xff]
    %v1039 = vld [vmem:[%s1 + $0x168] sm:$0xff]
    %v1040 = vld [vmem:[%s1 + $0x170] sm:$0xff]
    %v1041 = vld [vmem:[%s1 + $0x178] sm:$0xff]
    %v1042 = vld [vmem:[%s1 + $0x180] sm:$0xff]
    %v1043 = vld [vmem:[%s1 + $0x188] sm:$0xff]
    %v1044 = vld [vmem:[%s1 + $0x190] sm:$0xff]
    %v1045 = vld [vmem:[%s1 + $0x198] sm:$0xff]
    %v1046 = vld [vmem:[%s1 + $0x1a0] sm:$0xff]
    %v1047 = vld [vmem:[%s1 + $0x1a8] sm:$0xff]
    %v1048 = vld [vmem:[%s1 + $0x1b0] sm:$0xff]
    %v1049 = vld [vmem:[%s1 + $0x1b8] sm:$0xff]
    %v1050 = vld [vmem:[%s1 + $0x1c0] sm:$0xff]
    %v1051 = vld [vmem:[%s1 + $0x1c8] sm:$0xff]
    %v1052 = vld [vmem:[%s1 + $0x1d0] sm:$0xff]
    %v1053 = vld [vmem:[%s1 + $0x1d8] sm:$0xff]
    %v1054 = vld [vmem:[%s1 + $0x1e0] sm:$0xff]
    %v1055 = vld [vmem:[%s1 + $0x1e8] sm:$0xff]
    %v1056 = vld [vmem:[%s1 + $0x1f0] sm:$0xff]
    %v1057 = vld [vmem:[%s1 + $0x1f8] sm:$0xff]
    %v1058 = vld [vmem:[%s1 + $0x200] sm:$0xff]
    %v1059 = vld [vmem:[%s1 + $0x208] sm:$0xff]
    %v1060 = vld [vmem:[%s1 + $0x210] sm:$0xff]
    %v1061 = vld [vmem:[%s1 + $0x218] sm:$0xff]
    %v1062 = vld [vmem:[%s1 + $0x220] sm:$0xff]
    %v1063 = vld [vmem:[%s1 + $0x228] sm:$0xff]
    %v1064 = vld [vmem:[%s1 + $0x230] sm:$0xff]
    %v1065 = vld [vmem:[%s1 + $0x238] sm:$0xff]
    %v1066 = vld [vmem:[%s1 + $0x240] sm:$0xff]
    %v1067 = vld [vmem:[%s1 + $0x248] sm:$0xff]
    %v1068 = vld [vmem:[%s1 + $0x250] sm:$0xff]
    %v1069 = vld [vmem:[%s1 + $0x258] sm:$0xff]
    %v1070 = vld [vmem:[%s1 + $0x260] sm:$0xff]
    %v1071 = vld [vmem:[%s1 + $0x268] sm:$0xff]
    %v1072 = vld [vmem:[%s1 + $0x270] sm:$0xff]
    %v1073 = vld [vmem:[%s1 + $0x278] sm:$0xff]
    %1074 = vmatprep.subr.mxu0 0.0
    %1075 = vmatpush1.msra.mxu0 %v1034
    %1076 = vmatprep.subr.mxu0 0.0
    %1077 = vmatpush1.msra.mxu0 %v1035
    %1078 = vmatprep.subr.mxu0 0.0
    %1079 = vmatpush1.msra.mxu0 %v1036
    %1080 = vmatprep.subr.mxu0 0.0
    %1081 = vmatpush1.msra.mxu0 %v1037
    %1082 = vmatprep.subr.mxu0 0.0
    %1083 = vmatpush1.msra.mxu0 %v1038
    %1084 = vmatprep.subr.mxu0 0.0
    %1085 = vmatpush1.msra.mxu0 %v1039
    %1086 = vmatprep.subr.mxu0 0.0
    %1087 = vmatpush1.msra.mxu0 %v1040
    %1088 = vmatprep.subr.mxu0 0.0
    %1089 = vmatpush1.msra.mxu0 %v1041
    %1090 = vmatprep.subr.mxu0 0.0
    %1091 = vmatpush1.msra.mxu0 %v1042
    %1092 = vmatprep.subr.mxu0 0.0
    %1093 = vmatpush1.msra.mxu0 %v1043
    %1094 = vmatprep.subr.mxu0 0.0
    %1095 = vmatpush1.msra.mxu0 %v1044
    %1096 = vmatprep.subr.mxu0 0.0
    %1097 = vmatpush1.msra.mxu0 %v1045
    %1098 = vmatprep.subr.mxu0 0.0
    %1099 = vmatpush1.msra.mxu0 %v1046
    %1100 = vmatprep.subr.mxu0 0.0
    %1101 = vmatpush1.msra.mxu0 %v1047
    %1102 = vmatprep.subr.mxu0 0.0
    %1103 = vmatpush1.msra.mxu0 %v1048
    %1104 = vmatprep.subr.mxu0 0.0
    %1105 = vmatpush1.msra.mxu0 %v1049
    %1106 = vmatprep.subr.mxu0 0.0
    %1107 = vmatpush1.msra.mxu0 %v1050
    %1108 = vmatprep.subr.mxu0 0.0
    %1109 = vmatpush1.msra.mxu0 %v1051
    %1110 = vmatprep.subr.mxu0 0.0
    %1111 = vmatpush1.msra.mxu0 %v1052
    %1112 = vmatprep.subr.mxu0 0.0
    %1113 = vmatpush1.msra.mxu0 %v1053
    %1114 = vmatprep.subr.mxu0 0.0
    %1115 = vmatpush1.msra.mxu0 %v1054
    %1116 = vmatprep.subr.mxu0 0.0
    %1117 = vmatpush1.msra.mxu0 %v1055
    %1118 = vmatprep.subr.mxu0 0.0
    %1119 = vmatpush1.msra.mxu0 %v1056
    %1120 = vmatprep.subr.mxu0 0.0
    %1121 = vmatpush1.msra.mxu0 %v1057
    %1122 = vmatprep.subr.mxu0 0.0
    %1123 = vmatpush1.msra.mxu0 %v1058
    %1124 = vmatprep.subr.mxu0 0.0
    %1125 = vmatpush1.msra.mxu0 %v1059
    %1126 = vmatprep.subr.mxu0 0.0
    %1127 = vmatpush1.msra.mxu0 %v1060
    %1128 = vmatprep.subr.mxu0 0.0
    %1129 = vmatpush1.msra.mxu0 %v1061
    %1130 = vmatprep.subr.mxu0 0.0
    %1131 = vmatpush1.msra.mxu0 %v1062
    %1132 = vmatprep.subr.mxu0 0.0
    %1133 = vmatpush1.msra.mxu0 %v1063
    %1134 = vmatprep.subr.mxu0 0.0
    %1135 = vmatpush1.msra.mxu0 %v1064
    %1136 = vmatprep.subr.mxu0 0.0
    %1137 = vmatpush1.msra.mxu0 %v1065
    %1138 = vmatprep.mubr.f32.mxu0 %v483
    %1139 = vmatmul.mubr.f32.gmra.mrb[0].mxu0 %v475
    %v1140 = vpop.f32.mrb[0].mxu0
    %v1141 = vadd.f32 0.0, %v1140
    %v1142 = vpop.f32.mrb[0].mxu0
    %1143 = vmatprep.mubr.f32.mxu0 %v484
    %1144 = vmatmul.mubr.f32.gmra.mrb[0].mxu0 %v476
    %v1145 = vpop.f32.mrb[0].mxu0
    %v1146 = vadd.f32 0.0, %v1145
    %v1147 = vpop.f32.mrb[0].mxu0
    %1148 = vmatprep.mubr.f32.mxu0 %v485
    %1149 = vmatmul.mubr.f32.gmra.mrb[0].mxu0 %v477
    %v1150 = vpop.f32.mrb[0].mxu0
    %v1151 = vadd.f32 0.0, %v1150
    %v1152 = vpop.f32.mrb[0].mxu0
    %1153 = vmatprep.mubr.f32.mxu0 %v486
    %1154 = vmatmul.mubr.f32.gmra.mrb[0].mxu0 %v478
    %v1155 = vpop.f32.mrb[0].mxu0
    %v1156 = vadd.f32 0.0, %v1155
    %v1157 = vpop.f32.mrb[0].mxu0
    %1158 = vmatprep.mubr.f32.mxu0 %v487
    %1159 = vmatmul.mubr.f32.gmra.mrb[0].mxu0 %v479
    %v1160 = vpop.f32.mrb[0].mxu0
    %v1161 = vadd.f32 0.0, %v1160
    %v1162 = vpop.f32.mrb[0].mxu0
    %1163 = vmatprep.mubr.f32.mxu0 %v488
    %1164 = vmatmul.mubr.f32.gmra.mrb[0].mxu0 %v480
    %v1165 = vpop.f32.mrb[0].mxu0
    %v1166 = vadd.f32 0.0, %v1165
    %v1167 = vpop.f32.mrb[0].mxu0
    %1168 = vmatprep.mubr.f32.mxu0 %v489
    %1169 = vmatmul.mubr.f32.gmra.mrb[0].mxu0 %v481
    %v1170 = vpop.f32.mrb[0].mxu0
    %v1171 = vadd.f32 0.0, %v1170
    %v1172 = vpop.f32.mrb[0].mxu0
    %1173 = vdwg.mxu0
    %1174 = vmatprep.subr.mxu0 0.0
    %1175 = vmatpush1.msra.mxu0 %v1066
    %1176 = vmatprep.subr.mxu0 0.0
    %1177 = vmatpush1.msra.mxu0 %v1067
    %1178 = vmatprep.subr.mxu0 0.0
    %1179 = vmatpush1.msra.mxu0 %v1068
    %1180 = vmatprep.subr.mxu0 0.0
    %1181 = vmatpush1.msra.mxu0 %v1069
    %1182 = vmatprep.subr.mxu0 0.0
    %1183 = vmatpush1.msra.mxu0 %v1070
    %1184 = vmatprep.subr.mxu0 0.0
    %1185 = vmatpush1.msra.mxu0 %v1071
    %1186 = vmatprep.subr.mxu0 0.0
    %1187 = vmatpush1.msra.mxu0 %v1072
    %1188 = vmatprep.subr.mxu0 0.0
    %1189 = vmatpush1.msra.mxu0 %v1073
    %1190 = vmatprep.subr.mxu0 0.0
    %1191 = vmatpush1.msra.mxu0 0.0
    %1192 = vmatprep.subr.mxu0 0.0
    %1193 = vmatpush1.msra.mxu0 0.0
    %1194 = vmatprep.subr.mxu0 0.0
    %1195 = vmatpush1.msra.mxu0 0.0
    %1196 = vmatprep.subr.mxu0 0.0
    %1197 = vmatpush1.msra.mxu0 0.0
    %1198 = vmatprep.subr.mxu0 0.0
    %1199 = vmatpush1.msra.mxu0 0.0
    %1200 = vmatprep.subr.mxu0 0.0
    %1201 = vmatpush1.msra.mxu0 0.0
    %1202 = vmatprep.subr.mxu0 0.0
    %1203 = vmatpush1.msra.mxu0 0.0
    %1204 = vmatprep.subr.mxu0 0.0
    %1205 = vmatpush1.msra.mxu0 0.0
    %1206 = vmatprep.subr.mxu0 0.0
    %1207 = vmatpush1.msra.mxu0 0.0
    %1208 = vmatprep.subr.mxu0 0.0
    %1209 = vmatpush1.msra.mxu0 0.0
    %1210 = vmatprep.subr.mxu0 0.0
    %1211 = vmatpush1.msra.mxu0 0.0
    %1212 = vmatprep.subr.mxu0 0.0
    %1213 = vmatpush1.msra.mxu0 0.0
    %1214 = vmatprep.subr.mxu0 0.0
    %1215 = vmatpush1.msra.mxu0 0.0
    %1216 = vmatprep.subr.mxu0 0.0
    %1217 = vmatpush1.msra.mxu0 0.0
    %1218 = vmatprep.subr.mxu0 0.0
    %1219 = vmatpush1.msra.mxu0 0.0
    %1220 = vmatprep.subr.mxu0 0.0
    %1221 = vmatpush1.msra.mxu0 0.0
    %1222 = vmatprep.subr.mxu0 0.0
    %1223 = vmatpush1.msra.mxu0 0.0
    %1224 = vmatprep.subr.mxu0 0.0
    %1225 = vmatpush1.msra.mxu0 0.0
    %1226 = vmatprep.subr.mxu0 0.0
    %1227 = vmatpush1.msra.mxu0 0.0
    %1228 = vmatprep.subr.mxu0 0.0
    %1229 = vmatpush1.msra.mxu0 0.0
    %1230 = vmatprep.subr.mxu0 0.0
    %1231 = vmatpush1.msra.mxu0 0.0
    %1232 = vmatprep.subr.mxu0 0.0
    %1233 = vmatpush1.msra.mxu0 0.0
    %1234 = vmatprep.subr.mxu0 0.0
    %1235 = vmatpush1.msra.mxu0 0.0
    %1236 = vmatprep.subr.mxu0 0.0
    %1237 = vmatpush1.msra.mxu0 0.0
    %1238 = vmatprep.mubr.f32.mxu0 0.0
    %1239 = vmatmul.mubr.f32.gmra.mrb[0].mxu0 %v532
    %v1240 = vpop.f32.mrb[0].mxu0
    %v1241 = vadd.f32 %v1141, %v1240
    %v1242 = vpop.f32.mrb[0].mxu0
    %1243 = vmatprep.mubr.f32.mxu0 0.0
    %1244 = vmatmul.mubr.f32.gmra.mrb[0].mxu0 %v535
    %v1245 = vpop.f32.mrb[0].mxu0
    %v1246 = vadd.f32 %v1146, %v1245
    %v1247 = vpop.f32.mrb[0].mxu0
    %1248 = vmatprep.mubr.f32.mxu0 0.0
    %1249 = vmatmul.mubr.f32.gmra.mrb[0].mxu0 %v538
    %v1250 = vpop.f32.mrb[0].mxu0
    %v1251 = vadd.f32 %v1151, %v1250
    %v1252 = vpop.f32.mrb[0].mxu0
    %1253 = vmatprep.mubr.f32.mxu0 0.0
    %1254 = vmatmul.mubr.f32.gmra.mrb[0].mxu0 %v541
    %v1255 = vpop.f32.mrb[0].mxu0
    %v1256 = vadd.f32 %v1156, %v1255
    %v1257 = vpop.f32.mrb[0].mxu0
    %1258 = vmatprep.mubr.f32.mxu0 0.0
    %1259 = vmatmul.mubr.f32.gmra.mrb[0].mxu0 %v544
    %v1260 = vpop.f32.mrb[0].mxu0
    %v1261 = vadd.f32 %v1161, %v1260
    %v1262 = vpop.f32.mrb[0].mxu0
    %1263 = vmatprep.mubr.f32.mxu0 0.0
    %1264 = vmatmul.mubr.f32.gmra.mrb[0].mxu0 %v547
    %v1265 = vpop.f32.mrb[0].mxu0
    %v1266 = vadd.f32 %v1166, %v1265
    %v1267 = vpop.f32.mrb[0].mxu0
    %1268 = vmatprep.mubr.f32.mxu0 0.0
    %1269 = vmatmul.mubr.f32.gmra.mrb[0].mxu0 %v550
    %v1270 = vpop.f32.mrb[0].mxu0
    %v1271 = vadd.f32 %v1171, %v1270
    %v1272 = vpop.f32.mrb[0].mxu0
    %1273 = vdwg.mxu0
    %v1274 = vld [vmem:[#allocation2 + $0x8] sm:$0xff]
    %v1275 = vld [vmem:[#allocation2 + $0x10] sm:$0xff]
    %v1276 = vld [vmem:[#allocation2 + $0x18] sm:$0xff]
    %v1277 = vld [vmem:[#allocation2 + $0x20] sm:$0xff]
    %v1278 = vld [vmem:[#allocation2 + $0x28] sm:$0xff]
    %v1279 = vld [vmem:[#allocation2 + $0x30] sm:$0xff]
    %v1280 = vld [vmem:[#allocation2 + $0x38] sm:$0xff]
    %v1281 = vadd.f32 %v1274, %v1241
    %v1282 = vadd.f32 %v1275, %v1246
    %v1283 = vadd.f32 %v1276, %v1251
    %v1284 = vadd.f32 %v1277, %v1256
    %v1285 = vadd.f32 %v1278, %v1261
    %v1286 = vadd.f32 %v1279, %v1266
    %v1287 = vadd.f32 %v1280, %v1271
    %1288 = vst.msk [vmem:[#allocation2 + $0x8] sm:$0xff] %vm777, %v1281
    %1289 = vst.msk [vmem:[#allocation2 + $0x10] sm:$0xff] %vm777, %v1282
    %1290 = vst.msk [vmem:[#allocation2 + $0x18] sm:$0xff] %vm777, %v1283
    %1291 = vst.msk [vmem:[#allocation2 + $0x20] sm:$0xff] %vm777, %v1284
    %1292 = vst.msk [vmem:[#allocation2 + $0x28] sm:$0xff] %vm777, %v1285
    %1293 = vst.msk [vmem:[#allocation2 + $0x30] sm:$0xff] %vm777, %v1286
    %1294 = vst.msk [vmem:[#allocation2 + $0x38] sm:$0xff] %vm777, %v1287
    %v1295 = vld [vmem:[%s1 + $0x3c0] sm:$0xff]
    %v1296 = vld [vmem:[%s1 + $0x3c8] sm:$0xff]
    %v1297 = vld [vmem:[%s1 + $0x3d0] sm:$0xff]
    %v1298 = vld [vmem:[%s1 + $0x3d8] sm:$0xff]
    %v1299 = vld [vmem:[%s1 + $0x3e0] sm:$0xff]
    %v1300 = vld [vmem:[%s1 + $0x3e8] sm:$0xff]
    %v1301 = vld [vmem:[%s1 + $0x3f0] sm:$0xff]
    %v1302 = vld [vmem:[%s1 + $0x3f8] sm:$0xff]
    %v1303 = vld [vmem:[%s1 + $0x400] sm:$0xff]
    %v1304 = vld [vmem:[%s1 + $0x408] sm:$0xff]
    %v1305 = vld [vmem:[%s1 + $0x410] sm:$0xff]
    %v1306 = vld [vmem:[%s1 + $0x418] sm:$0xff]
    %v1307 = vld [vmem:[%s1 + $0x420] sm:$0xff]
    %v1308 = vld [vmem:[%s1 + $0x428] sm:$0xff]
    %v1309 = vld [vmem:[%s1 + $0x430] sm:$0xff]
    %v1310 = vld [vmem:[%s1 + $0x438] sm:$0xff]
    %v1311 = vld [vmem:[%s1 + $0x440] sm:$0xff]
    %v1312 = vld [vmem:[%s1 + $0x448] sm:$0xff]
    %v1313 = vld [vmem:[%s1 + $0x450] sm:$0xff]
    %v1314 = vld [vmem:[%s1 + $0x458] sm:$0xff]
    %v1315 = vld [vmem:[%s1 + $0x460] sm:$0xff]
    %v1316 = vld [vmem:[%s1 + $0x468] sm:$0xff]
    %v1317 = vld [vmem:[%s1 + $0x470] sm:$0xff]
    %v1318 = vld [vmem:[%s1 + $0x478] sm:$0xff]
    %v1319 = vld [vmem:[%s1 + $0x480] sm:$0xff]
    %v1320 = vld [vmem:[%s1 + $0x488] sm:$0xff]
    %v1321 = vld [vmem:[%s1 + $0x490] sm:$0xff]
    %v1322 = vld [vmem:[%s1 + $0x498] sm:$0xff]
    %v1323 = vld [vmem:[%s1 + $0x4a0] sm:$0xff]
    %v1324 = vld [vmem:[%s1 + $0x4a8] sm:$0xff]
    %v1325 = vld [vmem:[%s1 + $0x4b0] sm:$0xff]
    %v1326 = vld [vmem:[%s1 + $0x4b8] sm:$0xff]
    %v1327 = vld [vmem:[%s1 + $0x4c0] sm:$0xff]
    %v1328 = vld [vmem:[%s1 + $0x4c8] sm:$0xff]
    %v1329 = vld [vmem:[%s1 + $0x4d0] sm:$0xff]
    %v1330 = vld [vmem:[%s1 + $0x4d8] sm:$0xff]
    %v1331 = vld [vmem:[%s1 + $0x4e0] sm:$0xff]
    %v1332 = vld [vmem:[%s1 + $0x4e8] sm:$0xff]
    %v1333 = vld [vmem:[%s1 + $0x4f0] sm:$0xff]
    %v1334 = vld [vmem:[%s1 + $0x4f8] sm:$0xff]
    %1335 = vmatprep.subr.mxu0 0.0
    %1336 = vmatpush1.msra.mxu0 %v1295
    %1337 = vmatprep.subr.mxu0 0.0
    %1338 = vmatpush1.msra.mxu0 %v1296
    %1339 = vmatprep.subr.mxu0 0.0
    %1340 = vmatpush1.msra.mxu0 %v1297
    %1341 = vmatprep.subr.mxu0 0.0
    %1342 = vmatpush1.msra.mxu0 %v1298
    %1343 = vmatprep.subr.mxu0 0.0
    %1344 = vmatpush1.msra.mxu0 %v1299
    %1345 = vmatprep.subr.mxu0 0.0
    %1346 = vmatpush1.msra.mxu0 %v1300
    %1347 = vmatprep.subr.mxu0 0.0
    %1348 = vmatpush1.msra.mxu0 %v1301
    %1349 = vmatprep.subr.mxu0 0.0
    %1350 = vmatpush1.msra.mxu0 %v1302
    %1351 = vmatprep.subr.mxu0 0.0
    %1352 = vmatpush1.msra.mxu0 %v1303
    %1353 = vmatprep.subr.mxu0 0.0
    %1354 = vmatpush1.msra.mxu0 %v1304
    %1355 = vmatprep.subr.mxu0 0.0
    %1356 = vmatpush1.msra.mxu0 %v1305
    %1357 = vmatprep.subr.mxu0 0.0
    %1358 = vmatpush1.msra.mxu0 %v1306
    %1359 = vmatprep.subr.mxu0 0.0
    %1360 = vmatpush1.msra.mxu0 %v1307
    %1361 = vmatprep.subr.mxu0 0.0
    %1362 = vmatpush1.msra.mxu0 %v1308
    %1363 = vmatprep.subr.mxu0 0.0
    %1364 = vmatpush1.msra.mxu0 %v1309
    %1365 = vmatprep.subr.mxu0 0.0
    %1366 = vmatpush1.msra.mxu0 %v1310
    %1367 = vmatprep.subr.mxu0 0.0
    %1368 = vmatpush1.msra.mxu0 %v1311
    %1369 = vmatprep.subr.mxu0 0.0
    %1370 = vmatpush1.msra.mxu0 %v1312
    %1371 = vmatprep.subr.mxu0 0.0
    %1372 = vmatpush1.msra.mxu0 %v1313
    %1373 = vmatprep.subr.mxu0 0.0
    %1374 = vmatpush1.msra.mxu0 %v1314
    %1375 = vmatprep.subr.mxu0 0.0
    %1376 = vmatpush1.msra.mxu0 %v1315
    %1377 = vmatprep.subr.mxu0 0.0
    %1378 = vmatpush1.msra.mxu0 %v1316
    %1379 = vmatprep.subr.mxu0 0.0
    %1380 = vmatpush1.msra.mxu0 %v1317
    %1381 = vmatprep.subr.mxu0 0.0
    %1382 = vmatpush1.msra.mxu0 %v1318
    %1383 = vmatprep.subr.mxu0 0.0
    %1384 = vmatpush1.msra.mxu0 %v1319
    %1385 = vmatprep.subr.mxu0 0.0
    %1386 = vmatpush1.msra.mxu0 %v1320
    %1387 = vmatprep.subr.mxu0 0.0
    %1388 = vmatpush1.msra.mxu0 %v1321
    %1389 = vmatprep.subr.mxu0 0.0
    %1390 = vmatpush1.msra.mxu0 %v1322
    %1391 = vmatprep.subr.mxu0 0.0
    %1392 = vmatpush1.msra.mxu0 %v1323
    %1393 = vmatprep.subr.mxu0 0.0
    %1394 = vmatpush1.msra.mxu0 %v1324
    %1395 = vmatprep.subr.mxu0 0.0
    %1396 = vmatpush1.msra.mxu0 %v1325
    %1397 = vmatprep.subr.mxu0 0.0
    %1398 = vmatpush1.msra.mxu0 %v1326
    %1399 = vmatprep.mubr.f32.mxu0 %v484
    %1400 = vmatmul.mubr.f32.gmra.mrb[0].mxu0 %v476
    %v1401 = vpop.f32.mrb[0].mxu0
    %v1402 = vadd.f32 0.0, %v1401
    %v1403 = vpop.f32.mrb[0].mxu0
    %1404 = vmatprep.mubr.f32.mxu0 %v485
    %1405 = vmatmul.mubr.f32.gmra.mrb[0].mxu0 %v477
    %v1406 = vpop.f32.mrb[0].mxu0
    %v1407 = vadd.f32 0.0, %v1406
    %v1408 = vpop.f32.mrb[0].mxu0
    %1409 = vmatprep.mubr.f32.mxu0 %v486
    %1410 = vmatmul.mubr.f32.gmra.mrb[0].mxu0 %v478
    %v1411 = vpop.f32.mrb[0].mxu0
    %v1412 = vadd.f32 0.0, %v1411
    %v1413 = vpop.f32.mrb[0].mxu0
    %1414 = vmatprep.mubr.f32.mxu0 %v487
    %1415 = vmatmul.mubr.f32.gmra.mrb[0].mxu0 %v479
    %v1416 = vpop.f32.mrb[0].mxu0
    %v1417 = vadd.f32 0.0, %v1416
    %v1418 = vpop.f32.mrb[0].mxu0
    %1419 = vmatprep.mubr.f32.mxu0 %v488
    %1420 = vmatmul.mubr.f32.gmra.mrb[0].mxu0 %v480
    %v1421 = vpop.f32.mrb[0].mxu0
    %v1422 = vadd.f32 0.0, %v1421
    %v1423 = vpop.f32.mrb[0].mxu0
    %1424 = vmatprep.mubr.f32.mxu0 %v489
    %1425 = vmatmul.mubr.f32.gmra.mrb[0].mxu0 %v481
    %v1426 = vpop.f32.mrb[0].mxu0
    %v1427 = vadd.f32 0.0, %v1426
    %v1428 = vpop.f32.mrb[0].mxu0
    %1429 = vmatprep.mubr.f32.mxu0 %v490
    %1430 = vmatmul.mubr.f32.gmra.mrb[0].mxu0 %v482
    %v1431 = vpop.f32.mrb[0].mxu0
    %v1432 = vadd.f32 0.0, %v1431
    %v1433 = vpop.f32.mrb[0].mxu0
    %1434 = vdwg.mxu0
    %1435 = vmatprep.subr.mxu0 0.0
    %1436 = vmatpush1.msra.mxu0 %v1327
    %1437 = vmatprep.subr.mxu0 0.0
    %1438 = vmatpush1.msra.mxu0 %v1328
    %1439 = vmatprep.subr.mxu0 0.0
    %1440 = vmatpush1.msra.mxu0 %v1329
    %1441 = vmatprep.subr.mxu0 0.0
    %1442 = vmatpush1.msra.mxu0 %v1330
    %1443 = vmatprep.subr.mxu0 0.0
    %1444 = vmatpush1.msra.mxu0 %v1331
    %1445 = vmatprep.subr.mxu0 0.0
    %1446 = vmatpush1.msra.mxu0 %v1332
    %1447 = vmatprep.subr.mxu0 0.0
    %1448 = vmatpush1.msra.mxu0 %v1333
    %1449 = vmatprep.subr.mxu0 0.0
    %1450 = vmatpush1.msra.mxu0 %v1334
    %1451 = vmatprep.subr.mxu0 0.0
    %1452 = vmatpush1.msra.mxu0 0.0
    %1453 = vmatprep.subr.mxu0 0.0
    %1454 = vmatpush1.msra.mxu0 0.0
    %1455 = vmatprep.subr.mxu0 0.0
    %1456 = vmatpush1.msra.mxu0 0.0
    %1457 = vmatprep.subr.mxu0 0.0
    %1458 = vmatpush1.msra.mxu0 0.0
    %1459 = vmatprep.subr.mxu0 0.0
    %1460 = vmatpush1.msra.mxu0 0.0
    %1461 = vmatprep.subr.mxu0 0.0
    %1462 = vmatpush1.msra.mxu0 0.0
    %1463 = vmatprep.subr.mxu0 0.0
    %1464 = vmatpush1.msra.mxu0 0.0
    %1465 = vmatprep.subr.mxu0 0.0
    %1466 = vmatpush1.msra.mxu0 0.0
    %1467 = vmatprep.subr.mxu0 0.0
    %1468 = vmatpush1.msra.mxu0 0.0
    %1469 = vmatprep.subr.mxu0 0.0
    %1470 = vmatpush1.msra.mxu0 0.0
    %1471 = vmatprep.subr.mxu0 0.0
    %1472 = vmatpush1.msra.mxu0 0.0
    %1473 = vmatprep.subr.mxu0 0.0
    %1474 = vmatpush1.msra.mxu0 0.0
    %1475 = vmatprep.subr.mxu0 0.0
    %1476 = vmatpush1.msra.mxu0 0.0
    %1477 = vmatprep.subr.mxu0 0.0
    %1478 = vmatpush1.msra.mxu0 0.0
    %1479 = vmatprep.subr.mxu0 0.0
    %1480 = vmatpush1.msra.mxu0 0.0
    %1481 = vmatprep.subr.mxu0 0.0
    %1482 = vmatpush1.msra.mxu0 0.0
    %1483 = vmatprep.subr.mxu0 0.0
    %1484 = vmatpush1.msra.mxu0 0.0
    %1485 = vmatprep.subr.mxu0 0.0
    %1486 = vmatpush1.msra.mxu0 0.0
    %1487 = vmatprep.subr.mxu0 0.0
    %1488 = vmatpush1.msra.mxu0 0.0
    %1489 = vmatprep.subr.mxu0 0.0
    %1490 = vmatpush1.msra.mxu0 0.0
    %1491 = vmatprep.subr.mxu0 0.0
    %1492 = vmatpush1.msra.mxu0 0.0
    %1493 = vmatprep.subr.mxu0 0.0
    %1494 = vmatpush1.msra.mxu0 0.0
    %1495 = vmatprep.subr.mxu0 0.0
    %1496 = vmatpush1.msra.mxu0 0.0
    %1497 = vmatprep.subr.mxu0 0.0
    %1498 = vmatpush1.msra.mxu0 0.0
    %1499 = vmatprep.mubr.f32.mxu0 0.0
    %1500 = vmatmul.mubr.f32.gmra.mrb[0].mxu0 %v535
    %v1501 = vpop.f32.mrb[0].mxu0
    %v1502 = vadd.f32 %v1402, %v1501
    %v1503 = vpop.f32.mrb[0].mxu0
    %1504 = vmatprep.mubr.f32.mxu0 0.0
    %1505 = vmatmul.mubr.f32.gmra.mrb[0].mxu0 %v538
    %v1506 = vpop.f32.mrb[0].mxu0
    %v1507 = vadd.f32 %v1407, %v1506
    %v1508 = vpop.f32.mrb[0].mxu0
    %1509 = vmatprep.mubr.f32.mxu0 0.0
    %1510 = vmatmul.mubr.f32.gmra.mrb[0].mxu0 %v541
    %v1511 = vpop.f32.mrb[0].mxu0
    %v1512 = vadd.f32 %v1412, %v1511
    %v1513 = vpop.f32.mrb[0].mxu0
    %1514 = vmatprep.mubr.f32.mxu0 0.0
    %1515 = vmatmul.mubr.f32.gmra.mrb[0].mxu0 %v544
    %v1516 = vpop.f32.mrb[0].mxu0
    %v1517 = vadd.f32 %v1417, %v1516
    %v1518 = vpop.f32.mrb[0].mxu0
    %1519 = vmatprep.mubr.f32.mxu0 0.0
    %1520 = vmatmul.mubr.f32.gmra.mrb[0].mxu0 %v547
    %v1521 = vpop.f32.mrb[0].mxu0
    %v1522 = vadd.f32 %v1422, %v1521
    %v1523 = vpop.f32.mrb[0].mxu0
    %1524 = vmatprep.mubr.f32.mxu0 0.0
    %1525 = vmatmul.mubr.f32.gmra.mrb[0].mxu0 %v550
    %v1526 = vpop.f32.mrb[0].mxu0
    %v1527 = vadd.f32 %v1427, %v1526
    %v1528 = vpop.f32.mrb[0].mxu0
    %1529 = vmatprep.mubr.f32.mxu0 0.0
    %1530 = vmatmul.mubr.f32.gmra.mrb[0].mxu0 %v553
    %v1531 = vpop.f32.mrb[0].mxu0
    %v1532 = vadd.f32 %v1432, %v1531
    %v1533 = vpop.f32.mrb[0].mxu0
    %1534 = vdwg.mxu0
    %v1535 = vld [vmem:[#allocation2] sm:$0xff]
    %v1536 = vld [vmem:[#allocation2 + $0x8] sm:$0xff]
    %v1537 = vld [vmem:[#allocation2 + $0x10] sm:$0xff]
    %v1538 = vld [vmem:[#allocation2 + $0x18] sm:$0xff]
    %v1539 = vld [vmem:[#allocation2 + $0x20] sm:$0xff]
    %v1540 = vld [vmem:[#allocation2 + $0x28] sm:$0xff]
    %v1541 = vld [vmem:[#allocation2 + $0x30] sm:$0xff]
    %v1542 = vadd.f32 %v1535, %v1502
    %v1543 = vadd.f32 %v1536, %v1507
    %v1544 = vadd.f32 %v1537, %v1512
    %v1545 = vadd.f32 %v1538, %v1517
    %v1546 = vadd.f32 %v1539, %v1522
    %v1547 = vadd.f32 %v1540, %v1527
    %v1548 = vadd.f32 %v1541, %v1532
    %1549 = vst.msk [vmem:[#allocation2] sm:$0xff] %vm777, %v1542
    %1550 = vst.msk [vmem:[#allocation2 + $0x8] sm:$0xff] %vm777, %v1543
    %1551 = vst.msk [vmem:[#allocation2 + $0x10] sm:$0xff] %vm777, %v1544
    %1552 = vst.msk [vmem:[#allocation2 + $0x18] sm:$0xff] %vm777, %v1545
    %1553 = vst.msk [vmem:[#allocation2 + $0x20] sm:$0xff] %vm777, %v1546
    %1554 = vst.msk [vmem:[#allocation2 + $0x28] sm:$0xff] %vm777, %v1547
    %1555 = vst.msk [vmem:[#allocation2 + $0x30] sm:$0xff] %vm777, %v1548
    %v1556 = vld [vmem:[%s1 + $0x500] sm:$0xff]
    %v1557 = vld [vmem:[%s1 + $0x508] sm:$0xff]
    %v1558 = vld [vmem:[%s1 + $0x510] sm:$0xff]
    %v1559 = vld [vmem:[%s1 + $0x518] sm:$0xff]
    %v1560 = vld [vmem:[%s1 + $0x520] sm:$0xff]
    %v1561 = vld [vmem:[%s1 + $0x528] sm:$0xff]
    %v1562 = vld [vmem:[%s1 + $0x530] sm:$0xff]
    %v1563 = vld [vmem:[%s1 + $0x538] sm:$0xff]
    %v1564 = vld [vmem:[%s1 + $0x540] sm:$0xff]
    %v1565 = vld [vmem:[%s1 + $0x548] sm:$0xff]
    %v1566 = vld [vmem:[%s1 + $0x550] sm:$0xff]
    %v1567 = vld [vmem:[%s1 + $0x558] sm:$0xff]
    %v1568 = vld [vmem:[%s1 + $0x560] sm:$0xff]
    %v1569 = vld [vmem:[%s1 + $0x568] sm:$0xff]
    %v1570 = vld [vmem:[%s1 + $0x570] sm:$0xff]
    %v1571 = vld [vmem:[%s1 + $0x578] sm:$0xff]
    %v1572 = vld [vmem:[%s1 + $0x580] sm:$0xff]
    %v1573 = vld [vmem:[%s1 + $0x588] sm:$0xff]
    %v1574 = vld [vmem:[%s1 + $0x590] sm:$0xff]
    %v1575 = vld [vmem:[%s1 + $0x598] sm:$0xff]
    %v1576 = vld [vmem:[%s1 + $0x5a0] sm:$0xff]
    %v1577 = vld [vmem:[%s1 + $0x5a8] sm:$0xff]
    %v1578 = vld [vmem:[%s1 + $0x5b0] sm:$0xff]
    %v1579 = vld [vmem:[%s1 + $0x5b8] sm:$0xff]
    %v1580 = vld [vmem:[%s1 + $0x5c0] sm:$0xff]
    %v1581 = vld [vmem:[%s1 + $0x5c8] sm:$0xff]
    %v1582 = vld [vmem:[%s1 + $0x5d0] sm:$0xff]
    %v1583 = vld [vmem:[%s1 + $0x5d8] sm:$0xff]
    %v1584 = vld [vmem:[%s1 + $0x5e0] sm:$0xff]
    %v1585 = vld [vmem:[%s1 + $0x5e8] sm:$0xff]
    %v1586 = vld [vmem:[%s1 + $0x5f0] sm:$0xff]
    %v1587 = vld [vmem:[%s1 + $0x5f8] sm:$0xff]
    %v1588 = vld [vmem:[%s1 + $0x600] sm:$0xff]
    %v1589 = vld [vmem:[%s1 + $0x608] sm:$0xff]
    %v1590 = vld [vmem:[%s1 + $0x610] sm:$0xff]
    %v1591 = vld [vmem:[%s1 + $0x618] sm:$0xff]
    %v1592 = vld [vmem:[%s1 + $0x620] sm:$0xff]
    %v1593 = vld [vmem:[%s1 + $0x628] sm:$0xff]
    %v1594 = vld [vmem:[%s1 + $0x630] sm:$0xff]
    %v1595 = vld [vmem:[%s1 + $0x638] sm:$0xff]
    %1596 = vmatprep.subr.mxu0 0.0
    %1597 = vmatpush1.msra.mxu0 %v1556
    %1598 = vmatprep.subr.mxu0 0.0
    %1599 = vmatpush1.msra.mxu0 %v1557
    %1600 = vmatprep.subr.mxu0 0.0
    %1601 = vmatpush1.msra.mxu0 %v1558
    %1602 = vmatprep.subr.mxu0 0.0
    %1603 = vmatpush1.msra.mxu0 %v1559
    %1604 = vmatprep.subr.mxu0 0.0
    %1605 = vmatpush1.msra.mxu0 %v1560
    %1606 = vmatprep.subr.mxu0 0.0
    %1607 = vmatpush1.msra.mxu0 %v1561
    %1608 = vmatprep.subr.mxu0 0.0
    %1609 = vmatpush1.msra.mxu0 %v1562
    %1610 = vmatprep.subr.mxu0 0.0
    %1611 = vmatpush1.msra.mxu0 %v1563
    %1612 = vmatprep.subr.mxu0 0.0
    %1613 = vmatpush1.msra.mxu0 %v1564
    %1614 = vmatprep.subr.mxu0 0.0
    %1615 = vmatpush1.msra.mxu0 %v1565
    %1616 = vmatprep.subr.mxu0 0.0
    %1617 = vmatpush1.msra.mxu0 %v1566
    %1618 = vmatprep.subr.mxu0 0.0
    %1619 = vmatpush1.msra.mxu0 %v1567
    %1620 = vmatprep.subr.mxu0 0.0
    %1621 = vmatpush1.msra.mxu0 %v1568
    %1622 = vmatprep.subr.mxu0 0.0
    %1623 = vmatpush1.msra.mxu0 %v1569
    %1624 = vmatprep.subr.mxu0 0.0
    %1625 = vmatpush1.msra.mxu0 %v1570
    %1626 = vmatprep.subr.mxu0 0.0
    %1627 = vmatpush1.msra.mxu0 %v1571
    %1628 = vmatprep.subr.mxu0 0.0
    %1629 = vmatpush1.msra.mxu0 %v1572
    %1630 = vmatprep.subr.mxu0 0.0
    %1631 = vmatpush1.msra.mxu0 %v1573
    %1632 = vmatprep.subr.mxu0 0.0
    %1633 = vmatpush1.msra.mxu0 %v1574
    %1634 = vmatprep.subr.mxu0 0.0
    %1635 = vmatpush1.msra.mxu0 %v1575
    %1636 = vmatprep.subr.mxu0 0.0
    %1637 = vmatpush1.msra.mxu0 %v1576
    %1638 = vmatprep.subr.mxu0 0.0
    %1639 = vmatpush1.msra.mxu0 %v1577
    %1640 = vmatprep.subr.mxu0 0.0
    %1641 = vmatpush1.msra.mxu0 %v1578
    %1642 = vmatprep.subr.mxu0 0.0
    %1643 = vmatpush1.msra.mxu0 %v1579
    %1644 = vmatprep.subr.mxu0 0.0
    %1645 = vmatpush1.msra.mxu0 %v1580
    %1646 = vmatprep.subr.mxu0 0.0
    %1647 = vmatpush1.msra.mxu0 %v1581
    %1648 = vmatprep.subr.mxu0 0.0
    %1649 = vmatpush1.msra.mxu0 %v1582
    %1650 = vmatprep.subr.mxu0 0.0
    %1651 = vmatpush1.msra.mxu0 %v1583
    %1652 = vmatprep.subr.mxu0 0.0
    %1653 = vmatpush1.msra.mxu0 %v1584
    %1654 = vmatprep.subr.mxu0 0.0
    %1655 = vmatpush1.msra.mxu0 %v1585
    %1656 = vmatprep.subr.mxu0 0.0
    %1657 = vmatpush1.msra.mxu0 %v1586
    %1658 = vmatprep.subr.mxu0 0.0
    %1659 = vmatpush1.msra.mxu0 %v1587
    %1660 = vmatprep.mubr.f32.mxu0 %v485
    %1661 = vmatmul.mubr.f32.gmra.mrb[0].mxu0 %v477
    %v1662 = vpop.f32.mrb[0].mxu0
    %v1663 = vadd.f32 0.0, %v1662
    %v1664 = vpop.f32.mrb[0].mxu0
    %1665 = vmatprep.mubr.f32.mxu0 %v486
    %1666 = vmatmul.mubr.f32.gmra.mrb[0].mxu0 %v478
    %v1667 = vpop.f32.mrb[0].mxu0
    %v1668 = vadd.f32 0.0, %v1667
    %v1669 = vpop.f32.mrb[0].mxu0
    %1670 = vmatprep.mubr.f32.mxu0 %v487
    %1671 = vmatmul.mubr.f32.gmra.mrb[0].mxu0 %v479
    %v1672 = vpop.f32.mrb[0].mxu0
    %v1673 = vadd.f32 0.0, %v1672
    %v1674 = vpop.f32.mrb[0].mxu0
    %1675 = vmatprep.mubr.f32.mxu0 %v488
    %1676 = vmatmul.mubr.f32.gmra.mrb[0].mxu0 %v480
    %v1677 = vpop.f32.mrb[0].mxu0
    %v1678 = vadd.f32 0.0, %v1677
    %v1679 = vpop.f32.mrb[0].mxu0
    %1680 = vmatprep.mubr.f32.mxu0 %v489
    %1681 = vmatmul.mubr.f32.gmra.mrb[0].mxu0 %v481
    %v1682 = vpop.f32.mrb[0].mxu0
    %v1683 = vadd.f32 0.0, %v1682
    %v1684 = vpop.f32.mrb[0].mxu0
    %1685 = vmatprep.mubr.f32.mxu0 %v490
    %1686 = vmatmul.mubr.f32.gmra.mrb[0].mxu0 %v482
    %v1687 = vpop.f32.mrb[0].mxu0
    %v1688 = vadd.f32 0.0, %v1687
    %v1689 = vpop.f32.mrb[0].mxu0
    %1690 = vdwg.mxu0
    %1691 = vmatprep.subr.mxu0 0.0
    %1692 = vmatpush1.msra.mxu0 %v1588
    %1693 = vmatprep.subr.mxu0 0.0
    %1694 = vmatpush1.msra.mxu0 %v1589
    %1695 = vmatprep.subr.mxu0 0.0
    %1696 = vmatpush1.msra.mxu0 %v1590
    %1697 = vmatprep.subr.mxu0 0.0
    %1698 = vmatpush1.msra.mxu0 %v1591
    %1699 = vmatprep.subr.mxu0 0.0
    %1700 = vmatpush1.msra.mxu0 %v1592
    %1701 = vmatprep.subr.mxu0 0.0
    %1702 = vmatpush1.msra.mxu0 %v1593
    %1703 = vmatprep.subr.mxu0 0.0
    %1704 = vmatpush1.msra.mxu0 %v1594
    %1705 = vmatprep.subr.mxu0 0.0
    %1706 = vmatpush1.msra.mxu0 %v1595
    %1707 = vmatprep.subr.mxu0 0.0
    %1708 = vmatpush1.msra.mxu0 0.0
    %1709 = vmatprep.subr.mxu0 0.0
    %1710 = vmatpush1.msra.mxu0 0.0
    %1711 = vmatprep.subr.mxu0 0.0
    %1712 = vmatpush1.msra.mxu0 0.0
    %1713 = vmatprep.subr.mxu0 0.0
    %1714 = vmatpush1.msra.mxu0 0.0
    %1715 = vmatprep.subr.mxu0 0.0
    %1716 = vmatpush1.msra.mxu0 0.0
    %1717 = vmatprep.subr.mxu0 0.0
    %1718 = vmatpush1.msra.mxu0 0.0
    %1719 = vmatprep.subr.mxu0 0.0
    %1720 = vmatpush1.msra.mxu0 0.0
    %1721 = vmatprep.subr.mxu0 0.0
    %1722 = vmatpush1.msra.mxu0 0.0
    %1723 = vmatprep.subr.mxu0 0.0
    %1724 = vmatpush1.msra.mxu0 0.0
    %1725 = vmatprep.subr.mxu0 0.0
    %1726 = vmatpush1.msra.mxu0 0.0
    %1727 = vmatprep.subr.mxu0 0.0
    %1728 = vmatpush1.msra.mxu0 0.0
    %1729 = vmatprep.subr.mxu0 0.0
    %1730 = vmatpush1.msra.mxu0 0.0
    %1731 = vmatprep.subr.mxu0 0.0
    %1732 = vmatpush1.msra.mxu0 0.0
    %1733 = vmatprep.subr.mxu0 0.0
    %1734 = vmatpush1.msra.mxu0 0.0
    %1735 = vmatprep.subr.mxu0 0.0
    %1736 = vmatpush1.msra.mxu0 0.0
    %1737 = vmatprep.subr.mxu0 0.0
    %1738 = vmatpush1.msra.mxu0 0.0
    %1739 = vmatprep.subr.mxu0 0.0
    %1740 = vmatpush1.msra.mxu0 0.0
    %1741 = vmatprep.subr.mxu0 0.0
    %1742 = vmatpush1.msra.mxu0 0.0
    %1743 = vmatprep.subr.mxu0 0.0
    %1744 = vmatpush1.msra.mxu0 0.0
    %1745 = vmatprep.subr.mxu0 0.0
    %1746 = vmatpush1.msra.mxu0 0.0
    %1747 = vmatprep.subr.mxu0 0.0
    %1748 = vmatpush1.msra.mxu0 0.0
    %1749 = vmatprep.subr.mxu0 0.0
    %1750 = vmatpush1.msra.mxu0 0.0
    %1751 = vmatprep.subr.mxu0 0.0
    %1752 = vmatpush1.msra.mxu0 0.0
    %1753 = vmatprep.subr.mxu0 0.0
    %1754 = vmatpush1.msra.mxu0 0.0
    %1755 = vmatprep.mubr.f32.mxu0 0.0
    %1756 = vmatmul.mubr.f32.gmra.mrb[0].mxu0 %v538
    %v1757 = vpop.f32.mrb[0].mxu0
    %v1758 = vadd.f32 %v1663, %v1757
    %v1759 = vpop.f32.mrb[0].mxu0
    %1760 = vmatprep.mubr.f32.mxu0 0.0
    %1761 = vmatmul.mubr.f32.gmra.mrb[0].mxu0 %v541
    %v1762 = vpop.f32.mrb[0].mxu0
    %v1763 = vadd.f32 %v1668, %v1762
    %v1764 = vpop.f32.mrb[0].mxu0
    %1765 = vmatprep.mubr.f32.mxu0 0.0
    %1766 = vmatmul.mubr.f32.gmra.mrb[0].mxu0 %v544
    %v1767 = vpop.f32.mrb[0].mxu0
    %v1768 = vadd.f32 %v1673, %v1767
    %v1769 = vpop.f32.mrb[0].mxu0
    %1770 = vmatprep.mubr.f32.mxu0 0.0
    %1771 = vmatmul.mubr.f32.gmra.mrb[0].mxu0 %v547
    %v1772 = vpop.f32.mrb[0].mxu0
    %v1773 = vadd.f32 %v1678, %v1772
    %v1774 = vpop.f32.mrb[0].mxu0
    %1775 = vmatprep.mubr.f32.mxu0 0.0
    %1776 = vmatmul.mubr.f32.gmra.mrb[0].mxu0 %v550
    %v1777 = vpop.f32.mrb[0].mxu0
    %v1778 = vadd.f32 %v1683, %v1777
    %v1779 = vpop.f32.mrb[0].mxu0
    %1780 = vmatprep.mubr.f32.mxu0 0.0
    %1781 = vmatmul.mubr.f32.gmra.mrb[0].mxu0 %v553
    %v1782 = vpop.f32.mrb[0].mxu0
    %v1783 = vadd.f32 %v1688, %v1782
    %v1784 = vpop.f32.mrb[0].mxu0
    %1785 = vdwg.mxu0
    %v1786 = vld [vmem:[#allocation2] sm:$0xff]
    %v1787 = vld [vmem:[#allocation2 + $0x8] sm:$0xff]
    %v1788 = vld [vmem:[#allocation2 + $0x10] sm:$0xff]
    %v1789 = vld [vmem:[#allocation2 + $0x18] sm:$0xff]
    %v1790 = vld [vmem:[#allocation2 + $0x20] sm:$0xff]
    %v1791 = vld [vmem:[#allocation2 + $0x28] sm:$0xff]
    %v1792 = vadd.f32 %v1786, %v1758
    %v1793 = vadd.f32 %v1787, %v1763
    %v1794 = vadd.f32 %v1788, %v1768
    %v1795 = vadd.f32 %v1789, %v1773
    %v1796 = vadd.f32 %v1790, %v1778
    %v1797 = vadd.f32 %v1791, %v1783
    %1798 = vst.msk [vmem:[#allocation2] sm:$0xff] %vm777, %v1792
    %1799 = vst.msk [vmem:[#allocation2 + $0x8] sm:$0xff] %vm777, %v1793
    %1800 = vst.msk [vmem:[#allocation2 + $0x10] sm:$0xff] %vm777, %v1794
    %1801 = vst.msk [vmem:[#allocation2 + $0x18] sm:$0xff] %vm777, %v1795
    %1802 = vst.msk [vmem:[#allocation2 + $0x20] sm:$0xff] %vm777, %v1796
    %1803 = vst.msk [vmem:[#allocation2 + $0x28] sm:$0xff] %vm777, %v1797
    %v1804 = vld [vmem:[#allocation2] sm:$0xff]
    %v1805 = vld [vmem:[#allocation2 + $0x8] sm:$0xff]
    %v1806 = vld [vmem:[#allocation2 + $0x10] sm:$0xff]
    %v1807 = vld [vmem:[#allocation2 + $0x18] sm:$0xff]
    %v1808 = vld [vmem:[#allocation2 + $0x20] sm:$0xff]
    %v1809 = vld [vmem:[#allocation2 + $0x28] sm:$0xff]
    %v1810 = vld [vmem:[#allocation2 + $0x30] sm:$0xff]
    %v1811 = vld [vmem:[#allocation2 + $0x38] sm:$0xff]
    %v1812 = vmax.f32 %v1804, 0.0
    %v1813 = vmax.f32 %v1805, 0.0
    %v1814 = vmax.f32 %v1806, 0.0
    %v1815 = vmax.f32 %v1807, 0.0
    %v1816 = vmax.f32 %v1808, 0.0
    %v1817 = vmax.f32 %v1809, 0.0
    %v1818 = vmax.f32 %v1810, 0.0
    %v1819 = vmax.f32 %v1811, 0.0
    %v1820 = vld [vmem:[%s2 + $0xa] sm:$0x1]
    %v1821 = vrot.slane %v1812, 6
    %v1822 = vrot.slane %v1813, 6
    %v1823 = vrot.slane %v1814, 6
    %v1824 = vrot.slane %v1815, 6
    %v1825 = vrot.slane %v1816, 6
    %v1826 = vrot.slane %v1817, 6
    %v1827 = vrot.slane %v1818, 6
    %v1828 = vrot.slane %v1819, 6
    %v1829 = vsel %vm182, %v1827, %v1828
    %v1830 = vsel %vm182, %v1826, %v1827
    %v1831 = vsel %vm182, %v1825, %v1826
    %v1832 = vsel %vm182, %v1824, %v1825
    %v1833 = vsel %vm182, %v1823, %v1824
    %v1834 = vsel %vm182, %v1822, %v1823
    %v1835 = vsel %vm182, %v1821, %v1822
    %v1836 = vsel %vm182, %v1828, %v1821
    %v1837 = vmul.f32 %v1836, %v194
    %v1838 = vmul.f32 %v1835, %v199
    %v1839 = vmul.f32 %v1834, %v204
    %v1840 = vmul.f32 %v1833, %v209
    %v1841 = vmul.f32 %v1832, %v214
    %v1842 = vmul.f32 %v1831, %v219
    %v1843 = vmul.f32 %v1830, %v224
    %v1844 = vmul.f32 %v1829, %v229
    %v1845 = vrot.slane %v1812, 7
    %v1846 = vrot.slane %v1813, 7
    %v1847 = vrot.slane %v1814, 7
    %v1848 = vrot.slane %v1815, 7
    %v1849 = vrot.slane %v1816, 7
    %v1850 = vrot.slane %v1817, 7
    %v1851 = vrot.slane %v1818, 7
    %v1852 = vrot.slane %v1819, 7
    %v1853 = vsel %vm247, %v1851, %v1852
    %v1854 = vsel %vm247, %v1850, %v1851
    %v1855 = vsel %vm247, %v1849, %v1850
    %v1856 = vsel %vm247, %v1848, %v1849
    %v1857 = vsel %vm247, %v1847, %v1848
    %v1858 = vsel %vm247, %v1846, %v1847
    %v1859 = vsel %vm247, %v1845, %v1846
    %v1860 = vsel %vm247, %v1852, %v1845
    %v1861 = vmul.f32 %v1860, %v258
    %v1862 = vmul.f32 %v1859, %v262
    %v1863 = vmul.f32 %v1858, %v266
    %v1864 = vmul.f32 %v1857, %v270
    %v1865 = vmul.f32 %v1856, %v274
    %v1866 = vmul.f32 %v1855, %v278
    %v1867 = vmul.f32 %v1854, %v282
    %v1868 = vmul.f32 %v1853, %v286
    %v1869 = vrot.slane %v1812, 1
    %v1870 = vrot.slane %v1813, 1
    %v1871 = vrot.slane %v1814, 1
    %v1872 = vrot.slane %v1815, 1
    %v1873 = vrot.slane %v1816, 1
    %v1874 = vrot.slane %v1817, 1
    %v1875 = vrot.slane %v1818, 1
    %v1876 = vrot.slane %v1819, 1
    %v1877 = vsel %vm304, %v1875, %v1876
    %v1878 = vsel %vm304, %v1874, %v1875
    %v1879 = vsel %vm304, %v1873, %v1874
    %v1880 = vsel %vm304, %v1872, %v1873
    %v1881 = vsel %vm304, %v1871, %v1872
    %v1882 = vsel %vm304, %v1870, %v1871
    %v1883 = vsel %vm304, %v1869, %v1870
    %v1884 = vsel %vm304, %v1876, %v1869
    %v1885 = vmul.f32 %v1883, %v315
    %v1886 = vmul.f32 %v1882, %v319
    %v1887 = vmul.f32 %v1881, %v323
    %v1888 = vmul.f32 %v1880, %v327
    %v1889 = vmul.f32 %v1879, %v331
    %v1890 = vmul.f32 %v1878, %v335
    %v1891 = vmul.f32 %v1877, %v339
    %v1892 = vmul.f32 %v1884, %v343
    %v1893 = vrot.slane %v1812, 2
    %v1894 = vrot.slane %v1813, 2
    %v1895 = vrot.slane %v1814, 2
    %v1896 = vrot.slane %v1815, 2
    %v1897 = vrot.slane %v1816, 2
    %v1898 = vrot.slane %v1817, 2
    %v1899 = vrot.slane %v1818, 2
    %v1900 = vrot.slane %v1819, 2
    %v1901 = vsel %vm361, %v1899, %v1900
    %v1902 = vsel %vm361, %v1898, %v1899
    %v1903 = vsel %vm361, %v1897, %v1898
    %v1904 = vsel %vm361, %v1896, %v1897
    %v1905 = vsel %vm361, %v1895, %v1896
    %v1906 = vsel %vm361, %v1894, %v1895
    %v1907 = vsel %vm361, %v1893, %v1894
    %v1908 = vsel %vm361, %v1900, %v1893
    %v1909 = vmul.f32 %v1907, %v372
    %v1910 = vmul.f32 %v1906, %v376
    %v1911 = vmul.f32 %v1905, %v380
    %v1912 = vmul.f32 %v1904, %v384
    %v1913 = vmul.f32 %v1903, %v388
    %v1914 = vmul.f32 %v1902, %v392
    %v1915 = vmul.f32 %v1901, %v396
    %v1916 = vmul.f32 %v1908, %v400
    %1925 = vrot.lane.b32.xlu0 %v1861, 32
    %v1926 = vpop.permute.xlu0 %1925
    %1927 = vrot.lane.b32.xlu0 %v1862, 32
    %v1928 = vpop.permute.xlu0 %1927
    %1929 = vrot.lane.b32.xlu0 %v1863, 32
    %v1930 = vpop.permute.xlu0 %1929
    %1931 = vrot.lane.b32.xlu0 %v1864, 32
    %v1932 = vpop.permute.xlu0 %1931
    %1933 = vrot.lane.b32.xlu0 %v1865, 32
    %v1934 = vpop.permute.xlu0 %1933
    %1935 = vrot.lane.b32.xlu0 %v1866, 32
    %v1936 = vpop.permute.xlu0 %1935
    %1937 = vrot.lane.b32.xlu0 %v1867, 32
    %v1938 = vpop.permute.xlu0 %1937
    %1939 = vrot.lane.b32.xlu0 %v1868, 32
    %v1940 = vpop.permute.xlu0 %1939
    %1957 = vrot.lane.b32.xlu0 %v1812, 64
    %v1958 = vpop.permute.xlu0 %1957
    %1959 = vrot.lane.b32.xlu0 %v1813, 64
    %v1960 = vpop.permute.xlu0 %1959
    %1961 = vrot.lane.b32.xlu0 %v1814, 64
    %v1962 = vpop.permute.xlu0 %1961
    %1963 = vrot.lane.b32.xlu0 %v1815, 64
    %v1964 = vpop.permute.xlu0 %1963
    %1965 = vrot.lane.b32.xlu0 %v1816, 64
    %v1966 = vpop.permute.xlu0 %1965
    %1967 = vrot.lane.b32.xlu0 %v1817, 64
    %v1968 = vpop.permute.xlu0 %1967
    %1969 = vrot.lane.b32.xlu0 %v1818, 64
    %v1970 = vpop.permute.xlu0 %1969
    %1971 = vrot.lane.b32.xlu0 %v1819, 64
    %v1972 = vpop.permute.xlu0 %1971
    %1989 = vrot.lane.b32.xlu0 %v1885, 96
    %v1990 = vpop.permute.xlu0 %1989
    %1991 = vrot.lane.b32.xlu0 %v1886, 96
    %v1992 = vpop.permute.xlu0 %1991
    %1993 = vrot.lane.b32.xlu0 %v1887, 96
    %v1994 = vpop.permute.xlu0 %1993
    %1995 = vrot.lane.b32.xlu0 %v1888, 96
    %v1996 = vpop.permute.xlu0 %1995
    %1997 = vrot.lane.b32.xlu0 %v1889, 96
    %v1998 = vpop.permute.xlu0 %1997
    %1999 = vrot.lane.b32.xlu0 %v1890, 96
    %v2000 = vpop.permute.xlu0 %1999
    %2001 = vrot.lane.b32.xlu0 %v1891, 96
    %v2002 = vpop.permute.xlu0 %2001
    %2003 = vrot.lane.b32.xlu0 %v1892, 96
    %v2004 = vpop.permute.xlu0 %2003
    %v2013 = vsel %vm777, %v1837, %v1926
    %v2014 = vsel %vm777, %v1838, %v1928
    %v2015 = vsel %vm777, %v1839, %v1930
    %v2016 = vsel %vm777, %v1840, %v1932
    %v2017 = vsel %vm777, %v1841, %v1934
    %v2018 = vsel %vm777, %v1842, %v1936
    %v2019 = vsel %vm777, %v1843, %v1938
    %v2020 = vsel %vm777, %v1844, %v1940
    %v2021 = vsel %vm474, %v2013, %v1958
    %v2022 = vsel %vm474, %v2014, %v1960
    %v2023 = vsel %vm474, %v2015, %v1962
    %v2024 = vsel %vm474, %v2016, %v1964
    %v2025 = vsel %vm474, %v2017, %v1966
    %v2026 = vsel %vm474, %v2018, %v1968
    %v2027 = vsel %vm474, %v2019, %v1970
    %v2028 = vsel %vm474, %v2020, %v1972
    %vm2029 = vcmask 785408
    %v2030 = vsel %vm2029, %v2021, %v1990
    %v2031 = vsel %vm2029, %v2022, %v1992
    %v2032 = vsel %vm2029, %v2023, %v1994
    %v2033 = vsel %vm2029, %v2024, %v1996
    %v2034 = vsel %vm2029, %v2025, %v1998
    %v2035 = vsel %vm2029, %v2026, %v2000
    %v2036 = vsel %vm2029, %v2027, %v2002
    %v2037 = vsel %vm2029, %v2028, %v2004
    %v2038 = vld [vmem:[%s1 + $0x780] sm:$0xff]
    %v2039 = vld [vmem:[%s1 + $0x788] sm:$0xff]
    %v2040 = vld [vmem:[%s1 + $0x790] sm:$0xff]
    %v2041 = vld [vmem:[%s1 + $0x798] sm:$0xff]
    %v2042 = vld [vmem:[%s1 + $0x7a0] sm:$0xff]
    %v2043 = vld [vmem:[%s1 + $0x7a8] sm:$0xff]
    %v2044 = vld [vmem:[%s1 + $0x7b0] sm:$0xff]
    %v2045 = vld [vmem:[%s1 + $0x7b8] sm:$0xff]
    %v2046 = vld [vmem:[%s1 + $0x7c0] sm:$0xff]
    %v2047 = vld [vmem:[%s1 + $0x7c8] sm:$0xff]
    %v2048 = vld [vmem:[%s1 + $0x7d0] sm:$0xff]
    %v2049 = vld [vmem:[%s1 + $0x7d8] sm:$0xff]
    %v2050 = vld [vmem:[%s1 + $0x7e0] sm:$0xff]
    %v2051 = vld [vmem:[%s1 + $0x7e8] sm:$0xff]
    %v2052 = vld [vmem:[%s1 + $0x7f0] sm:$0xff]
    %v2053 = vld [vmem:[%s1 + $0x7f8] sm:$0xff]
    %v2054 = vld [vmem:[%s1 + $0x800] sm:$0xff]
    %v2055 = vld [vmem:[%s1 + $0x808] sm:$0xff]
    %v2056 = vld [vmem:[%s1 + $0x810] sm:$0xff]
    %v2057 = vld [vmem:[%s1 + $0x818] sm:$0xff]
    %v2059 = vsel %vm777, %v1909, 0
    %v2062 = vsel %vm777, %v1910, 0
    %v2065 = vsel %vm777, %v1911, 0
    %v2068 = vsel %vm777, %v1912, 0
    %v2071 = vsel %vm777, %v1913, 0
    %v2074 = vsel %vm777, %v1914, 0
    %v2077 = vsel %vm777, %v1915, 0
    %v2080 = vsel %vm777, %v1916, 0
    %2082 = vmatprep.subr.mxu0 0.0
    %2083 = vmatpush1.msra.mxu0 %v2038
    %2084 = vmatprep.subr.mxu0 0.0
    %2085 = vmatpush1.msra.mxu0 %v2039
    %2086 = vmatprep.subr.mxu0 0.0
    %2087 = vmatpush1.msra.mxu0 %v2040
    %2088 = vmatprep.subr.mxu0 0.0
    %2089 = vmatpush1.msra.mxu0 %v2041
    %2090 = vmatprep.subr.mxu0 0.0
    %2091 = vmatpush1.msra.mxu0 %v2042
    %2092 = vmatprep.subr.mxu0 0.0
    %2093 = vmatpush1.msra.mxu0 %v2043
    %2094 = vmatprep.subr.mxu0 0.0
    %2095 = vmatpush1.msra.mxu0 %v2044
    %2096 = vmatprep.subr.mxu0 0.0
    %2097 = vmatpush1.msra.mxu0 %v2045
    %2098 = vmatprep.subr.mxu0 0.0
    %2099 = vmatpush1.msra.mxu0 %v2046
    %2100 = vmatprep.subr.mxu0 0.0
    %2101 = vmatpush1.msra.mxu0 %v2047
    %2102 = vmatprep.subr.mxu0 0.0
    %2103 = vmatpush1.msra.mxu0 %v2048
    %2104 = vmatprep.subr.mxu0 0.0
    %2105 = vmatpush1.msra.mxu0 %v2049
    %2106 = vmatprep.subr.mxu0 0.0
    %2107 = vmatpush1.msra.mxu0 %v2050
    %2108 = vmatprep.subr.mxu0 0.0
    %2109 = vmatpush1.msra.mxu0 %v2051
    %2110 = vmatprep.subr.mxu0 0.0
    %2111 = vmatpush1.msra.mxu0 %v2052
    %2112 = vmatprep.subr.mxu0 0.0
    %2113 = vmatpush1.msra.mxu0 %v2053
    %2114 = vmatprep.subr.mxu0 0.0
    %2115 = vmatpush1.msra.mxu0 %v2054
    %2116 = vmatprep.subr.mxu0 0.0
    %2117 = vmatpush1.msra.mxu0 %v2055
    %2118 = vmatprep.subr.mxu0 0.0
    %2119 = vmatpush1.msra.mxu0 %v2056
    %2120 = vmatprep.subr.mxu0 0.0
    %2121 = vmatpush1.msra.mxu0 %v2057
    %2122 = vmatprep.subr.mxu0 0.0
    %2123 = vmatpush1.msra.mxu0 0.0
    %2124 = vmatprep.subr.mxu0 0.0
    %2125 = vmatpush1.msra.mxu0 0.0
    %2126 = vmatprep.subr.mxu0 0.0
    %2127 = vmatpush1.msra.mxu0 0.0
    %2128 = vmatprep.subr.mxu0 0.0
    %2129 = vmatpush1.msra.mxu0 0.0
    %2130 = vmatprep.subr.mxu0 0.0
    %2131 = vmatpush1.msra.mxu0 0.0
    %2132 = vmatprep.subr.mxu0 0.0
    %2133 = vmatpush1.msra.mxu0 0.0
    %2134 = vmatprep.subr.mxu0 0.0
    %2135 = vmatpush1.msra.mxu0 0.0
    %2136 = vmatprep.subr.mxu0 0.0
    %2137 = vmatpush1.msra.mxu0 0.0
    %2138 = vmatprep.subr.mxu0 0.0
    %2139 = vmatpush1.msra.mxu0 0.0
    %2140 = vmatprep.subr.mxu0 0.0
    %2141 = vmatpush1.msra.mxu0 0.0
    %2142 = vmatprep.subr.mxu0 0.0
    %2143 = vmatpush1.msra.mxu0 0.0
    %2144 = vmatprep.subr.mxu0 0.0
    %2145 = vmatpush1.msra.mxu0 0.0
    %2146 = vmatprep.mubr.f32.mxu0 %v2059
    %2147 = vmatmul.mubr.f32.gmra.mrb[0].mxu0 %v2030
    %v2148 = vpop.f32.mrb[0].mxu0
    %v2149 = vadd.f32 0.0, %v2148
    %v2150 = vpop.f32.mrb[0].mxu0
    %2151 = vmatprep.mubr.f32.mxu0 %v2062
    %2152 = vmatmul.mubr.f32.gmra.mrb[0].mxu0 %v2031
    %v2153 = vpop.f32.mrb[0].mxu0
    %v2154 = vadd.f32 0.0, %v2153
    %v2155 = vpop.f32.mrb[0].mxu0
    %2156 = vmatprep.mubr.f32.mxu0 %v2065
    %2157 = vmatmul.mubr.f32.gmra.mrb[0].mxu0 %v2032
    %v2158 = vpop.f32.mrb[0].mxu0
    %v2159 = vadd.f32 0.0, %v2158
    %v2160 = vpop.f32.mrb[0].mxu0
    %2161 = vmatprep.mubr.f32.mxu0 %v2068
    %2162 = vmatmul.mubr.f32.gmra.mrb[0].mxu0 %v2033
    %v2163 = vpop.f32.mrb[0].mxu0
    %v2164 = vadd.f32 0.0, %v2163
    %v2165 = vpop.f32.mrb[0].mxu0
    %2166 = vmatprep.mubr.f32.mxu0 %v2071
    %2167 = vmatmul.mubr.f32.gmra.mrb[0].mxu0 %v2034
    %v2168 = vpop.f32.mrb[0].mxu0
    %v2169 = vadd.f32 0.0, %v2168
    %v2170 = vpop.f32.mrb[0].mxu0
    %2171 = vmatprep.mubr.f32.mxu0 %v2074
    %2172 = vmatmul.mubr.f32.gmra.mrb[0].mxu0 %v2035
    %v2173 = vpop.f32.mrb[0].mxu0
    %v2174 = vadd.f32 0.0, %v2173
    %v2175 = vpop.f32.mrb[0].mxu0
    %2176 = vmatprep.mubr.f32.mxu0 %v2077
    %2177 = vmatmul.mubr.f32.gmra.mrb[0].mxu0 %v2036
    %v2178 = vpop.f32.mrb[0].mxu0
    %v2179 = vadd.f32 0.0, %v2178
    %v2180 = vpop.f32.mrb[0].mxu0
    %2181 = vmatprep.mubr.f32.mxu0 %v2080
    %2182 = vmatmul.mubr.f32.gmra.mrb[0].mxu0 %v2037
    %v2183 = vpop.f32.mrb[0].mxu0
    %v2184 = vadd.f32 0.0, %v2183
    %v2185 = vpop.f32.mrb[0].mxu0
    %2186 = vdwg.mxu0
    %v2187 = vlaneseq
    %v2188 = vshrl.u32 %v2187, 7
    %v2189 = vsub.s32 0, %v2188
    %v2190 = vrot.slane %v1820, %v2189
    %v2191 = vadd.f32 %v2190, %v2149
    %v2192 = vadd.f32 %v2190, %v2154
    %v2193 = vadd.f32 %v2190, %v2159
    %v2194 = vadd.f32 %v2190, %v2164
    %v2195 = vadd.f32 %v2190, %v2169
    %v2196 = vadd.f32 %v2190, %v2174
    %v2197 = vadd.f32 %v2190, %v2179
    %v2198 = vadd.f32 %v2190, %v2184
    %2199 = vst.msk [vmem:[#allocation2] sm:$0xff] %vm777, %v2191
    %2200 = vst.msk [vmem:[#allocation2 + $0x8] sm:$0xff] %vm777, %v2192
    %2201 = vst.msk [vmem:[#allocation2 + $0x10] sm:$0xff] %vm777, %v2193
    %2202 = vst.msk [vmem:[#allocation2 + $0x18] sm:$0xff] %vm777, %v2194
    %2203 = vst.msk [vmem:[#allocation2 + $0x20] sm:$0xff] %vm777, %v2195
    %2204 = vst.msk [vmem:[#allocation2 + $0x28] sm:$0xff] %vm777, %v2196
    %2205 = vst.msk [vmem:[#allocation2 + $0x30] sm:$0xff] %vm777, %v2197
    %2206 = vst.msk [vmem:[#allocation2 + $0x38] sm:$0xff] %vm777, %v2198
    %v2207 = vld [vmem:[%s1 + $0x640] sm:$0xff]
    %v2208 = vld [vmem:[%s1 + $0x648] sm:$0xff]
    %v2209 = vld [vmem:[%s1 + $0x650] sm:$0xff]
    %v2210 = vld [vmem:[%s1 + $0x658] sm:$0xff]
    %v2211 = vld [vmem:[%s1 + $0x660] sm:$0xff]
    %v2212 = vld [vmem:[%s1 + $0x668] sm:$0xff]
    %v2213 = vld [vmem:[%s1 + $0x670] sm:$0xff]
    %v2214 = vld [vmem:[%s1 + $0x678] sm:$0xff]
    %v2215 = vld [vmem:[%s1 + $0x680] sm:$0xff]
    %v2216 = vld [vmem:[%s1 + $0x688] sm:$0xff]
    %v2217 = vld [vmem:[%s1 + $0x690] sm:$0xff]
    %v2218 = vld [vmem:[%s1 + $0x698] sm:$0xff]
    %v2219 = vld [vmem:[%s1 + $0x6a0] sm:$0xff]
    %v2220 = vld [vmem:[%s1 + $0x6a8] sm:$0xff]
    %v2221 = vld [vmem:[%s1 + $0x6b0] sm:$0xff]
    %v2222 = vld [vmem:[%s1 + $0x6b8] sm:$0xff]
    %v2223 = vld [vmem:[%s1 + $0x6c0] sm:$0xff]
    %v2224 = vld [vmem:[%s1 + $0x6c8] sm:$0xff]
    %v2225 = vld [vmem:[%s1 + $0x6d0] sm:$0xff]
    %v2226 = vld [vmem:[%s1 + $0x6d8] sm:$0xff]
    %2227 = vmatprep.subr.mxu0 0.0
    %2228 = vmatpush1.msra.mxu0 %v2207
    %2229 = vmatprep.subr.mxu0 0.0
    %2230 = vmatpush1.msra.mxu0 %v2208
    %2231 = vmatprep.subr.mxu0 0.0
    %2232 = vmatpush1.msra.mxu0 %v2209
    %2233 = vmatprep.subr.mxu0 0.0
    %2234 = vmatpush1.msra.mxu0 %v2210
    %2235 = vmatprep.subr.mxu0 0.0
    %2236 = vmatpush1.msra.mxu0 %v2211
    %2237 = vmatprep.subr.mxu0 0.0
    %2238 = vmatpush1.msra.mxu0 %v2212
    %2239 = vmatprep.subr.mxu0 0.0
    %2240 = vmatpush1.msra.mxu0 %v2213
    %2241 = vmatprep.subr.mxu0 0.0
    %2242 = vmatpush1.msra.mxu0 %v2214
    %2243 = vmatprep.subr.mxu0 0.0
    %2244 = vmatpush1.msra.mxu0 %v2215
    %2245 = vmatprep.subr.mxu0 0.0
    %2246 = vmatpush1.msra.mxu0 %v2216
    %2247 = vmatprep.subr.mxu0 0.0
    %2248 = vmatpush1.msra.mxu0 %v2217
    %2249 = vmatprep.subr.mxu0 0.0
    %2250 = vmatpush1.msra.mxu0 %v2218
    %2251 = vmatprep.subr.mxu0 0.0
    %2252 = vmatpush1.msra.mxu0 %v2219
    %2253 = vmatprep.subr.mxu0 0.0
    %2254 = vmatpush1.msra.mxu0 %v2220
    %2255 = vmatprep.subr.mxu0 0.0
    %2256 = vmatpush1.msra.mxu0 %v2221
    %2257 = vmatprep.subr.mxu0 0.0
    %2258 = vmatpush1.msra.mxu0 %v2222
    %2259 = vmatprep.subr.mxu0 0.0
    %2260 = vmatpush1.msra.mxu0 %v2223
    %2261 = vmatprep.subr.mxu0 0.0
    %2262 = vmatpush1.msra.mxu0 %v2224
    %2263 = vmatprep.subr.mxu0 0.0
    %2264 = vmatpush1.msra.mxu0 %v2225
    %2265 = vmatprep.subr.mxu0 0.0
    %2266 = vmatpush1.msra.mxu0 %v2226
    %2267 = vmatprep.subr.mxu0 0.0
    %2268 = vmatpush1.msra.mxu0 0.0
    %2269 = vmatprep.subr.mxu0 0.0
    %2270 = vmatpush1.msra.mxu0 0.0
    %2271 = vmatprep.subr.mxu0 0.0
    %2272 = vmatpush1.msra.mxu0 0.0
    %2273 = vmatprep.subr.mxu0 0.0
    %2274 = vmatpush1.msra.mxu0 0.0
    %2275 = vmatprep.subr.mxu0 0.0
    %2276 = vmatpush1.msra.mxu0 0.0
    %2277 = vmatprep.subr.mxu0 0.0
    %2278 = vmatpush1.msra.mxu0 0.0
    %2279 = vmatprep.subr.mxu0 0.0
    %2280 = vmatpush1.msra.mxu0 0.0
    %2281 = vmatprep.subr.mxu0 0.0
    %2282 = vmatpush1.msra.mxu0 0.0
    %2283 = vmatprep.subr.mxu0 0.0
    %2284 = vmatpush1.msra.mxu0 0.0
    %2285 = vmatprep.subr.mxu0 0.0
    %2286 = vmatpush1.msra.mxu0 0.0
    %2287 = vmatprep.subr.mxu0 0.0
    %2288 = vmatpush1.msra.mxu0 0.0
    %2289 = vmatprep.subr.mxu0 0.0
    %2290 = vmatpush1.msra.mxu0 0.0
    %2291 = vmatprep.mubr.f32.mxu0 %v2059
    %2292 = vmatmul.mubr.f32.gmra.mrb[0].mxu0 %v2030
    %v2293 = vpop.f32.mrb[0].mxu0
    %v2294 = vadd.f32 0.0, %v2293
    %v2295 = vpop.f32.mrb[0].mxu0
    %2296 = vmatprep.mubr.f32.mxu0 %v2062
    %2297 = vmatmul.mubr.f32.gmra.mrb[0].mxu0 %v2031
    %v2298 = vpop.f32.mrb[0].mxu0
    %v2299 = vadd.f32 0.0, %v2298
    %v2300 = vpop.f32.mrb[0].mxu0
    %2301 = vmatprep.mubr.f32.mxu0 %v2065
    %2302 = vmatmul.mubr.f32.gmra.mrb[0].mxu0 %v2032
    %v2303 = vpop.f32.mrb[0].mxu0
    %v2304 = vadd.f32 0.0, %v2303
    %v2305 = vpop.f32.mrb[0].mxu0
    %2306 = vmatprep.mubr.f32.mxu0 %v2068
    %2307 = vmatmul.mubr.f32.gmra.mrb[0].mxu0 %v2033
    %v2308 = vpop.f32.mrb[0].mxu0
    %v2309 = vadd.f32 0.0, %v2308
    %v2310 = vpop.f32.mrb[0].mxu0
    %2311 = vmatprep.mubr.f32.mxu0 %v2071
    %2312 = vmatmul.mubr.f32.gmra.mrb[0].mxu0 %v2034
    %v2313 = vpop.f32.mrb[0].mxu0
    %v2314 = vadd.f32 0.0, %v2313
    %v2315 = vpop.f32.mrb[0].mxu0
    %2316 = vmatprep.mubr.f32.mxu0 %v2074
    %2317 = vmatmul.mubr.f32.gmra.mrb[0].mxu0 %v2035
    %v2318 = vpop.f32.mrb[0].mxu0
    %v2319 = vadd.f32 0.0, %v2318
    %v2320 = vpop.f32.mrb[0].mxu0
    %2321 = vdwg.mxu0
    %v2322 = vld [vmem:[#allocation2 + $0x10] sm:$0xff]
    %v2323 = vld [vmem:[#allocation2 + $0x18] sm:$0xff]
    %v2324 = vld [vmem:[#allocation2 + $0x20] sm:$0xff]
    %v2325 = vld [vmem:[#allocation2 + $0x28] sm:$0xff]
    %v2326 = vld [vmem:[#allocation2 + $0x30] sm:$0xff]
    %v2327 = vld [vmem:[#allocation2 + $0x38] sm:$0xff]
    %v2328 = vadd.f32 %v2322, %v2294
    %v2329 = vadd.f32 %v2323, %v2299
    %v2330 = vadd.f32 %v2324, %v2304
    %v2331 = vadd.f32 %v2325, %v2309
    %v2332 = vadd.f32 %v2326, %v2314
    %v2333 = vadd.f32 %v2327, %v2319
    %2334 = vst.msk [vmem:[#allocation2 + $0x10] sm:$0xff] %vm777, %v2328
    %2335 = vst.msk [vmem:[#allocation2 + $0x18] sm:$0xff] %vm777, %v2329
    %2336 = vst.msk [vmem:[#allocation2 + $0x20] sm:$0xff] %vm777, %v2330
    %2337 = vst.msk [vmem:[#allocation2 + $0x28] sm:$0xff] %vm777, %v2331
    %2338 = vst.msk [vmem:[#allocation2 + $0x30] sm:$0xff] %vm777, %v2332
    %2339 = vst.msk [vmem:[#allocation2 + $0x38] sm:$0xff] %vm777, %v2333
    %v2340 = vld [vmem:[%s1 + $0x6e0] sm:$0xff]
    %v2341 = vld [vmem:[%s1 + $0x6e8] sm:$0xff]
    %v2342 = vld [vmem:[%s1 + $0x6f0] sm:$0xff]
    %v2343 = vld [vmem:[%s1 + $0x6f8] sm:$0xff]
    %v2344 = vld [vmem:[%s1 + $0x700] sm:$0xff]
    %v2345 = vld [vmem:[%s1 + $0x708] sm:$0xff]
    %v2346 = vld [vmem:[%s1 + $0x710] sm:$0xff]
    %v2347 = vld [vmem:[%s1 + $0x718] sm:$0xff]
    %v2348 = vld [vmem:[%s1 + $0x720] sm:$0xff]
    %v2349 = vld [vmem:[%s1 + $0x728] sm:$0xff]
    %v2350 = vld [vmem:[%s1 + $0x730] sm:$0xff]
    %v2351 = vld [vmem:[%s1 + $0x738] sm:$0xff]
    %v2352 = vld [vmem:[%s1 + $0x740] sm:$0xff]
    %v2353 = vld [vmem:[%s1 + $0x748] sm:$0xff]
    %v2354 = vld [vmem:[%s1 + $0x750] sm:$0xff]
    %v2355 = vld [vmem:[%s1 + $0x758] sm:$0xff]
    %v2356 = vld [vmem:[%s1 + $0x760] sm:$0xff]
    %v2357 = vld [vmem:[%s1 + $0x768] sm:$0xff]
    %v2358 = vld [vmem:[%s1 + $0x770] sm:$0xff]
    %v2359 = vld [vmem:[%s1 + $0x778] sm:$0xff]
    %2360 = vmatprep.subr.mxu0 0.0
    %2361 = vmatpush1.msra.mxu0 %v2340
    %2362 = vmatprep.subr.mxu0 0.0
    %2363 = vmatpush1.msra.mxu0 %v2341
    %2364 = vmatprep.subr.mxu0 0.0
    %2365 = vmatpush1.msra.mxu0 %v2342
    %2366 = vmatprep.subr.mxu0 0.0
    %2367 = vmatpush1.msra.mxu0 %v2343
    %2368 = vmatprep.subr.mxu0 0.0
    %2369 = vmatpush1.msra.mxu0 %v2344
    %2370 = vmatprep.subr.mxu0 0.0
    %2371 = vmatpush1.msra.mxu0 %v2345
    %2372 = vmatprep.subr.mxu0 0.0
    %2373 = vmatpush1.msra.mxu0 %v2346
    %2374 = vmatprep.subr.mxu0 0.0
    %2375 = vmatpush1.msra.mxu0 %v2347
    %2376 = vmatprep.subr.mxu0 0.0
    %2377 = vmatpush1.msra.mxu0 %v2348
    %2378 = vmatprep.subr.mxu0 0.0
    %2379 = vmatpush1.msra.mxu0 %v2349
    %2380 = vmatprep.subr.mxu0 0.0
    %2381 = vmatpush1.msra.mxu0 %v2350
    %2382 = vmatprep.subr.mxu0 0.0
    %2383 = vmatpush1.msra.mxu0 %v2351
    %2384 = vmatprep.subr.mxu0 0.0
    %2385 = vmatpush1.msra.mxu0 %v2352
    %2386 = vmatprep.subr.mxu0 0.0
    %2387 = vmatpush1.msra.mxu0 %v2353
    %2388 = vmatprep.subr.mxu0 0.0
    %2389 = vmatpush1.msra.mxu0 %v2354
    %2390 = vmatprep.subr.mxu0 0.0
    %2391 = vmatpush1.msra.mxu0 %v2355
    %2392 = vmatprep.subr.mxu0 0.0
    %2393 = vmatpush1.msra.mxu0 %v2356
    %2394 = vmatprep.subr.mxu0 0.0
    %2395 = vmatpush1.msra.mxu0 %v2357
    %2396 = vmatprep.subr.mxu0 0.0
    %2397 = vmatpush1.msra.mxu0 %v2358
    %2398 = vmatprep.subr.mxu0 0.0
    %2399 = vmatpush1.msra.mxu0 %v2359
    %2400 = vmatprep.subr.mxu0 0.0
    %2401 = vmatpush1.msra.mxu0 0.0
    %2402 = vmatprep.subr.mxu0 0.0
    %2403 = vmatpush1.msra.mxu0 0.0
    %2404 = vmatprep.subr.mxu0 0.0
    %2405 = vmatpush1.msra.mxu0 0.0
    %2406 = vmatprep.subr.mxu0 0.0
    %2407 = vmatpush1.msra.mxu0 0.0
    %2408 = vmatprep.subr.mxu0 0.0
    %2409 = vmatpush1.msra.mxu0 0.0
    %2410 = vmatprep.subr.mxu0 0.0
    %2411 = vmatpush1.msra.mxu0 0.0
    %2412 = vmatprep.subr.mxu0 0.0
    %2413 = vmatpush1.msra.mxu0 0.0
    %2414 = vmatprep.subr.mxu0 0.0
    %2415 = vmatpush1.msra.mxu0 0.0
    %2416 = vmatprep.subr.mxu0 0.0
    %2417 = vmatpush1.msra.mxu0 0.0
    %2418 = vmatprep.subr.mxu0 0.0
    %2419 = vmatpush1.msra.mxu0 0.0
    %2420 = vmatprep.subr.mxu0 0.0
    %2421 = vmatpush1.msra.mxu0 0.0
    %2422 = vmatprep.subr.mxu0 0.0
    %2423 = vmatpush1.msra.mxu0 0.0
    %2424 = vmatprep.mubr.f32.mxu0 %v2059
    %2425 = vmatmul.mubr.f32.gmra.mrb[0].mxu0 %v2030
    %v2426 = vpop.f32.mrb[0].mxu0
    %v2427 = vadd.f32 0.0, %v2426
    %v2428 = vpop.f32.mrb[0].mxu0
    %2429 = vmatprep.mubr.f32.mxu0 %v2062
    %2430 = vmatmul.mubr.f32.gmra.mrb[0].mxu0 %v2031
    %v2431 = vpop.f32.mrb[0].mxu0
    %v2432 = vadd.f32 0.0, %v2431
    %v2433 = vpop.f32.mrb[0].mxu0
    %2434 = vmatprep.mubr.f32.mxu0 %v2065
    %2435 = vmatmul.mubr.f32.gmra.mrb[0].mxu0 %v2032
    %v2436 = vpop.f32.mrb[0].mxu0
    %v2437 = vadd.f32 0.0, %v2436
    %v2438 = vpop.f32.mrb[0].mxu0
    %2439 = vmatprep.mubr.f32.mxu0 %v2068
    %2440 = vmatmul.mubr.f32.gmra.mrb[0].mxu0 %v2033
    %v2441 = vpop.f32.mrb[0].mxu0
    %v2442 = vadd.f32 0.0, %v2441
    %v2443 = vpop.f32.mrb[0].mxu0
    %2444 = vmatprep.mubr.f32.mxu0 %v2071
    %2445 = vmatmul.mubr.f32.gmra.mrb[0].mxu0 %v2034
    %v2446 = vpop.f32.mrb[0].mxu0
    %v2447 = vadd.f32 0.0, %v2446
    %v2448 = vpop.f32.mrb[0].mxu0
    %2449 = vmatprep.mubr.f32.mxu0 %v2074
    %2450 = vmatmul.mubr.f32.gmra.mrb[0].mxu0 %v2035
    %v2451 = vpop.f32.mrb[0].mxu0
    %v2452 = vadd.f32 0.0, %v2451
    %v2453 = vpop.f32.mrb[0].mxu0
    %2454 = vmatprep.mubr.f32.mxu0 %v2077
    %2455 = vmatmul.mubr.f32.gmra.mrb[0].mxu0 %v2036
    %v2456 = vpop.f32.mrb[0].mxu0
    %v2457 = vadd.f32 0.0, %v2456
    %v2458 = vpop.f32.mrb[0].mxu0
    %2459 = vdwg.mxu0
    %v2460 = vld [vmem:[#allocation2 + $0x8] sm:$0xff]
    %v2461 = vld [vmem:[#allocation2 + $0x10] sm:$0xff]
    %v2462 = vld [vmem:[#allocation2 + $0x18] sm:$0xff]
    %v2463 = vld [vmem:[#allocation2 + $0x20] sm:$0xff]
    %v2464 = vld [vmem:[#allocation2 + $0x28] sm:$0xff]
    %v2465 = vld [vmem:[#allocation2 + $0x30] sm:$0xff]
    %v2466 = vld [vmem:[#allocation2 + $0x38] sm:$0xff]
    %v2467 = vadd.f32 %v2460, %v2427
    %v2468 = vadd.f32 %v2461, %v2432
    %v2469 = vadd.f32 %v2462, %v2437
    %v2470 = vadd.f32 %v2463, %v2442
    %v2471 = vadd.f32 %v2464, %v2447
    %v2472 = vadd.f32 %v2465, %v2452
    %v2473 = vadd.f32 %v2466, %v2457
    %2474 = vst.msk [vmem:[#allocation2 + $0x8] sm:$0xff] %vm777, %v2467
    %2475 = vst.msk [vmem:[#allocation2 + $0x10] sm:$0xff] %vm777, %v2468
    %2476 = vst.msk [vmem:[#allocation2 + $0x18] sm:$0xff] %vm777, %v2469
    %2477 = vst.msk [vmem:[#allocation2 + $0x20] sm:$0xff] %vm777, %v2470
    %2478 = vst.msk [vmem:[#allocation2 + $0x28] sm:$0xff] %vm777, %v2471
    %2479 = vst.msk [vmem:[#allocation2 + $0x30] sm:$0xff] %vm777, %v2472
    %2480 = vst.msk [vmem:[#allocation2 + $0x38] sm:$0xff] %vm777, %v2473
    %v2481 = vld [vmem:[%s1 + $0x820] sm:$0xff]
    %v2482 = vld [vmem:[%s1 + $0x828] sm:$0xff]
    %v2483 = vld [vmem:[%s1 + $0x830] sm:$0xff]
    %v2484 = vld [vmem:[%s1 + $0x838] sm:$0xff]
    %v2485 = vld [vmem:[%s1 + $0x840] sm:$0xff]
    %v2486 = vld [vmem:[%s1 + $0x848] sm:$0xff]
    %v2487 = vld [vmem:[%s1 + $0x850] sm:$0xff]
    %v2488 = vld [vmem:[%s1 + $0x858] sm:$0xff]
    %v2489 = vld [vmem:[%s1 + $0x860] sm:$0xff]
    %v2490 = vld [vmem:[%s1 + $0x868] sm:$0xff]
    %v2491 = vld [vmem:[%s1 + $0x870] sm:$0xff]
    %v2492 = vld [vmem:[%s1 + $0x878] sm:$0xff]
    %v2493 = vld [vmem:[%s1 + $0x880] sm:$0xff]
    %v2494 = vld [vmem:[%s1 + $0x888] sm:$0xff]
    %v2495 = vld [vmem:[%s1 + $0x890] sm:$0xff]
    %v2496 = vld [vmem:[%s1 + $0x898] sm:$0xff]
    %v2497 = vld [vmem:[%s1 + $0x8a0] sm:$0xff]
    %v2498 = vld [vmem:[%s1 + $0x8a8] sm:$0xff]
    %v2499 = vld [vmem:[%s1 + $0x8b0] sm:$0xff]
    %v2500 = vld [vmem:[%s1 + $0x8b8] sm:$0xff]
    %2501 = vmatprep.subr.mxu0 0.0
    %2502 = vmatpush1.msra.mxu0 %v2481
    %2503 = vmatprep.subr.mxu0 0.0
    %2504 = vmatpush1.msra.mxu0 %v2482
    %2505 = vmatprep.subr.mxu0 0.0
    %2506 = vmatpush1.msra.mxu0 %v2483
    %2507 = vmatprep.subr.mxu0 0.0
    %2508 = vmatpush1.msra.mxu0 %v2484
    %2509 = vmatprep.subr.mxu0 0.0
    %2510 = vmatpush1.msra.mxu0 %v2485
    %2511 = vmatprep.subr.mxu0 0.0
    %2512 = vmatpush1.msra.mxu0 %v2486
    %2513 = vmatprep.subr.mxu0 0.0
    %2514 = vmatpush1.msra.mxu0 %v2487
    %2515 = vmatprep.subr.mxu0 0.0
    %2516 = vmatpush1.msra.mxu0 %v2488
    %2517 = vmatprep.subr.mxu0 0.0
    %2518 = vmatpush1.msra.mxu0 %v2489
    %2519 = vmatprep.subr.mxu0 0.0
    %2520 = vmatpush1.msra.mxu0 %v2490
    %2521 = vmatprep.subr.mxu0 0.0
    %2522 = vmatpush1.msra.mxu0 %v2491
    %2523 = vmatprep.subr.mxu0 0.0
    %2524 = vmatpush1.msra.mxu0 %v2492
    %2525 = vmatprep.subr.mxu0 0.0
    %2526 = vmatpush1.msra.mxu0 %v2493
    %2527 = vmatprep.subr.mxu0 0.0
    %2528 = vmatpush1.msra.mxu0 %v2494
    %2529 = vmatprep.subr.mxu0 0.0
    %2530 = vmatpush1.msra.mxu0 %v2495
    %2531 = vmatprep.subr.mxu0 0.0
    %2532 = vmatpush1.msra.mxu0 %v2496
    %2533 = vmatprep.subr.mxu0 0.0
    %2534 = vmatpush1.msra.mxu0 %v2497
    %2535 = vmatprep.subr.mxu0 0.0
    %2536 = vmatpush1.msra.mxu0 %v2498
    %2537 = vmatprep.subr.mxu0 0.0
    %2538 = vmatpush1.msra.mxu0 %v2499
    %2539 = vmatprep.subr.mxu0 0.0
    %2540 = vmatpush1.msra.mxu0 %v2500
    %2541 = vmatprep.subr.mxu0 0.0
    %2542 = vmatpush1.msra.mxu0 0.0
    %2543 = vmatprep.subr.mxu0 0.0
    %2544 = vmatpush1.msra.mxu0 0.0
    %2545 = vmatprep.subr.mxu0 0.0
    %2546 = vmatpush1.msra.mxu0 0.0
    %2547 = vmatprep.subr.mxu0 0.0
    %2548 = vmatpush1.msra.mxu0 0.0
    %2549 = vmatprep.subr.mxu0 0.0
    %2550 = vmatpush1.msra.mxu0 0.0
    %2551 = vmatprep.subr.mxu0 0.0
    %2552 = vmatpush1.msra.mxu0 0.0
    %2553 = vmatprep.subr.mxu0 0.0
    %2554 = vmatpush1.msra.mxu0 0.0
    %2555 = vmatprep.subr.mxu0 0.0
    %2556 = vmatpush1.msra.mxu0 0.0
    %2557 = vmatprep.subr.mxu0 0.0
    %2558 = vmatpush1.msra.mxu0 0.0
    %2559 = vmatprep.subr.mxu0 0.0
    %2560 = vmatpush1.msra.mxu0 0.0
    %2561 = vmatprep.subr.mxu0 0.0
    %2562 = vmatpush1.msra.mxu0 0.0
    %2563 = vmatprep.subr.mxu0 0.0
    %2564 = vmatpush1.msra.mxu0 0.0
    %2565 = vmatprep.mubr.f32.mxu0 %v2062
    %2566 = vmatmul.mubr.f32.gmra.mrb[0].mxu0 %v2031
    %v2567 = vpop.f32.mrb[0].mxu0
    %v2568 = vadd.f32 0.0, %v2567
    %v2569 = vpop.f32.mrb[0].mxu0
    %2570 = vmatprep.mubr.f32.mxu0 %v2065
    %2571 = vmatmul.mubr.f32.gmra.mrb[0].mxu0 %v2032
    %v2572 = vpop.f32.mrb[0].mxu0
    %v2573 = vadd.f32 0.0, %v2572
    %v2574 = vpop.f32.mrb[0].mxu0
    %2575 = vmatprep.mubr.f32.mxu0 %v2068
    %2576 = vmatmul.mubr.f32.gmra.mrb[0].mxu0 %v2033
    %v2577 = vpop.f32.mrb[0].mxu0
    %v2578 = vadd.f32 0.0, %v2577
    %v2579 = vpop.f32.mrb[0].mxu0
    %2580 = vmatprep.mubr.f32.mxu0 %v2071
    %2581 = vmatmul.mubr.f32.gmra.mrb[0].mxu0 %v2034
    %v2582 = vpop.f32.mrb[0].mxu0
    %v2583 = vadd.f32 0.0, %v2582
    %v2584 = vpop.f32.mrb[0].mxu0
    %2585 = vmatprep.mubr.f32.mxu0 %v2074
    %2586 = vmatmul.mubr.f32.gmra.mrb[0].mxu0 %v2035
    %v2587 = vpop.f32.mrb[0].mxu0
    %v2588 = vadd.f32 0.0, %v2587
    %v2589 = vpop.f32.mrb[0].mxu0
    %2590 = vmatprep.mubr.f32.mxu0 %v2077
    %2591 = vmatmul.mubr.f32.gmra.mrb[0].mxu0 %v2036
    %v2592 = vpop.f32.mrb[0].mxu0
    %v2593 = vadd.f32 0.0, %v2592
    %v2594 = vpop.f32.mrb[0].mxu0
    %2595 = vmatprep.mubr.f32.mxu0 %v2080
    %2596 = vmatmul.mubr.f32.gmra.mrb[0].mxu0 %v2037
    %v2597 = vpop.f32.mrb[0].mxu0
    %v2598 = vadd.f32 0.0, %v2597
    %v2599 = vpop.f32.mrb[0].mxu0
    %2600 = vdwg.mxu0
    %v2601 = vld [vmem:[#allocation2] sm:$0xff]
    %v2602 = vld [vmem:[#allocation2 + $0x8] sm:$0xff]
    %v2603 = vld [vmem:[#allocation2 + $0x10] sm:$0xff]
    %v2604 = vld [vmem:[#allocation2 + $0x18] sm:$0xff]
    %v2605 = vld [vmem:[#allocation2 + $0x20] sm:$0xff]
    %v2606 = vld [vmem:[#allocation2 + $0x28] sm:$0xff]
    %v2607 = vld [vmem:[#allocation2 + $0x30] sm:$0xff]
    %v2608 = vadd.f32 %v2601, %v2568
    %v2609 = vadd.f32 %v2602, %v2573
    %v2610 = vadd.f32 %v2603, %v2578
    %v2611 = vadd.f32 %v2604, %v2583
    %v2612 = vadd.f32 %v2605, %v2588
    %v2613 = vadd.f32 %v2606, %v2593
    %v2614 = vadd.f32 %v2607, %v2598
    %2615 = vst.msk [vmem:[#allocation2] sm:$0xff] %vm777, %v2608
    %2616 = vst.msk [vmem:[#allocation2 + $0x8] sm:$0xff] %vm777, %v2609
    %2617 = vst.msk [vmem:[#allocation2 + $0x10] sm:$0xff] %vm777, %v2610
    %2618 = vst.msk [vmem:[#allocation2 + $0x18] sm:$0xff] %vm777, %v2611
    %2619 = vst.msk [vmem:[#allocation2 + $0x20] sm:$0xff] %vm777, %v2612
    %2620 = vst.msk [vmem:[#allocation2 + $0x28] sm:$0xff] %vm777, %v2613
    %2621 = vst.msk [vmem:[#allocation2 + $0x30] sm:$0xff] %vm777, %v2614
    %v2622 = vld [vmem:[%s1 + $0x8c0] sm:$0xff]
    %v2623 = vld [vmem:[%s1 + $0x8c8] sm:$0xff]
    %v2624 = vld [vmem:[%s1 + $0x8d0] sm:$0xff]
    %v2625 = vld [vmem:[%s1 + $0x8d8] sm:$0xff]
    %v2626 = vld [vmem:[%s1 + $0x8e0] sm:$0xff]
    %v2627 = vld [vmem:[%s1 + $0x8e8] sm:$0xff]
    %v2628 = vld [vmem:[%s1 + $0x8f0] sm:$0xff]
    %v2629 = vld [vmem:[%s1 + $0x8f8] sm:$0xff]
    %v2630 = vld [vmem:[%s1 + $0x900] sm:$0xff]
    %v2631 = vld [vmem:[%s1 + $0x908] sm:$0xff]
    %v2632 = vld [vmem:[%s1 + $0x910] sm:$0xff]
    %v2633 = vld [vmem:[%s1 + $0x918] sm:$0xff]
    %v2634 = vld [vmem:[%s1 + $0x920] sm:$0xff]
    %v2635 = vld [vmem:[%s1 + $0x928] sm:$0xff]
    %v2636 = vld [vmem:[%s1 + $0x930] sm:$0xff]
    %v2637 = vld [vmem:[%s1 + $0x938] sm:$0xff]
    %v2638 = vld [vmem:[%s1 + $0x940] sm:$0xff]
    %v2639 = vld [vmem:[%s1 + $0x948] sm:$0xff]
    %v2640 = vld [vmem:[%s1 + $0x950] sm:$0xff]
    %v2641 = vld [vmem:[%s1 + $0x958] sm:$0xff]
    %2642 = vmatprep.subr.mxu0 0.0
    %2643 = vmatpush1.msra.mxu0 %v2622
    %2644 = vmatprep.subr.mxu0 0.0
    %2645 = vmatpush1.msra.mxu0 %v2623
    %2646 = vmatprep.subr.mxu0 0.0
    %2647 = vmatpush1.msra.mxu0 %v2624
    %2648 = vmatprep.subr.mxu0 0.0
    %2649 = vmatpush1.msra.mxu0 %v2625
    %2650 = vmatprep.subr.mxu0 0.0
    %2651 = vmatpush1.msra.mxu0 %v2626
    %2652 = vmatprep.subr.mxu0 0.0
    %2653 = vmatpush1.msra.mxu0 %v2627
    %2654 = vmatprep.subr.mxu0 0.0
    %2655 = vmatpush1.msra.mxu0 %v2628
    %2656 = vmatprep.subr.mxu0 0.0
    %2657 = vmatpush1.msra.mxu0 %v2629
    %2658 = vmatprep.subr.mxu0 0.0
    %2659 = vmatpush1.msra.mxu0 %v2630
    %2660 = vmatprep.subr.mxu0 0.0
    %2661 = vmatpush1.msra.mxu0 %v2631
    %2662 = vmatprep.subr.mxu0 0.0
    %2663 = vmatpush1.msra.mxu0 %v2632
    %2664 = vmatprep.subr.mxu0 0.0
    %2665 = vmatpush1.msra.mxu0 %v2633
    %2666 = vmatprep.subr.mxu0 0.0
    %2667 = vmatpush1.msra.mxu0 %v2634
    %2668 = vmatprep.subr.mxu0 0.0
    %2669 = vmatpush1.msra.mxu0 %v2635
    %2670 = vmatprep.subr.mxu0 0.0
    %2671 = vmatpush1.msra.mxu0 %v2636
    %2672 = vmatprep.subr.mxu0 0.0
    %2673 = vmatpush1.msra.mxu0 %v2637
    %2674 = vmatprep.subr.mxu0 0.0
    %2675 = vmatpush1.msra.mxu0 %v2638
    %2676 = vmatprep.subr.mxu0 0.0
    %2677 = vmatpush1.msra.mxu0 %v2639
    %2678 = vmatprep.subr.mxu0 0.0
    %2679 = vmatpush1.msra.mxu0 %v2640
    %2680 = vmatprep.subr.mxu0 0.0
    %2681 = vmatpush1.msra.mxu0 %v2641
    %2682 = vmatprep.subr.mxu0 0.0
    %2683 = vmatpush1.msra.mxu0 0.0
    %2684 = vmatprep.subr.mxu0 0.0
    %2685 = vmatpush1.msra.mxu0 0.0
    %2686 = vmatprep.subr.mxu0 0.0
    %2687 = vmatpush1.msra.mxu0 0.0
    %2688 = vmatprep.subr.mxu0 0.0
    %2689 = vmatpush1.msra.mxu0 0.0
    %2690 = vmatprep.subr.mxu0 0.0
    %2691 = vmatpush1.msra.mxu0 0.0
    %2692 = vmatprep.subr.mxu0 0.0
    %2693 = vmatpush1.msra.mxu0 0.0
    %2694 = vmatprep.subr.mxu0 0.0
    %2695 = vmatpush1.msra.mxu0 0.0
    %2696 = vmatprep.subr.mxu0 0.0
    %2697 = vmatpush1.msra.mxu0 0.0
    %2698 = vmatprep.subr.mxu0 0.0
    %2699 = vmatpush1.msra.mxu0 0.0
    %2700 = vmatprep.subr.mxu0 0.0
    %2701 = vmatpush1.msra.mxu0 0.0
    %2702 = vmatprep.subr.mxu0 0.0
    %2703 = vmatpush1.msra.mxu0 0.0
    %2704 = vmatprep.subr.mxu0 0.0
    %2705 = vmatpush1.msra.mxu0 0.0
    %2706 = vmatprep.mubr.f32.mxu0 %v2065
    %2707 = vmatmul.mubr.f32.gmra.mrb[0].mxu0 %v2032
    %v2708 = vpop.f32.mrb[0].mxu0
    %v2709 = vadd.f32 0.0, %v2708
    %v2710 = vpop.f32.mrb[0].mxu0
    %2711 = vmatprep.mubr.f32.mxu0 %v2068
    %2712 = vmatmul.mubr.f32.gmra.mrb[0].mxu0 %v2033
    %v2713 = vpop.f32.mrb[0].mxu0
    %v2714 = vadd.f32 0.0, %v2713
    %v2715 = vpop.f32.mrb[0].mxu0
    %2716 = vmatprep.mubr.f32.mxu0 %v2071
    %2717 = vmatmul.mubr.f32.gmra.mrb[0].mxu0 %v2034
    %v2718 = vpop.f32.mrb[0].mxu0
    %v2719 = vadd.f32 0.0, %v2718
    %v2720 = vpop.f32.mrb[0].mxu0
    %2721 = vmatprep.mubr.f32.mxu0 %v2074
    %2722 = vmatmul.mubr.f32.gmra.mrb[0].mxu0 %v2035
    %v2723 = vpop.f32.mrb[0].mxu0
    %v2724 = vadd.f32 0.0, %v2723
    %v2725 = vpop.f32.mrb[0].mxu0
    %2726 = vmatprep.mubr.f32.mxu0 %v2077
    %2727 = vmatmul.mubr.f32.gmra.mrb[0].mxu0 %v2036
    %v2728 = vpop.f32.mrb[0].mxu0
    %v2729 = vadd.f32 0.0, %v2728
    %v2730 = vpop.f32.mrb[0].mxu0
    %2731 = vmatprep.mubr.f32.mxu0 %v2080
    %2732 = vmatmul.mubr.f32.gmra.mrb[0].mxu0 %v2037
    %v2733 = vpop.f32.mrb[0].mxu0
    %v2734 = vadd.f32 0.0, %v2733
    %v2735 = vpop.f32.mrb[0].mxu0
    %2736 = vdwg.mxu0
    %v2737 = vld [vmem:[#allocation2] sm:$0xff]
    %v2738 = vld [vmem:[#allocation2 + $0x8] sm:$0xff]
    %v2739 = vld [vmem:[#allocation2 + $0x10] sm:$0xff]
    %v2740 = vld [vmem:[#allocation2 + $0x18] sm:$0xff]
    %v2741 = vld [vmem:[#allocation2 + $0x20] sm:$0xff]
    %v2742 = vld [vmem:[#allocation2 + $0x28] sm:$0xff]
    %v2743 = vadd.f32 %v2737, %v2709
    %v2744 = vadd.f32 %v2738, %v2714
    %v2745 = vadd.f32 %v2739, %v2719
    %v2746 = vadd.f32 %v2740, %v2724
    %v2747 = vadd.f32 %v2741, %v2729
    %v2748 = vadd.f32 %v2742, %v2734
    %2749 = vst.msk [vmem:[#allocation2] sm:$0xff] %vm777, %v2743
    %2750 = vst.msk [vmem:[#allocation2 + $0x8] sm:$0xff] %vm777, %v2744
    %2751 = vst.msk [vmem:[#allocation2 + $0x10] sm:$0xff] %vm777, %v2745
    %2752 = vst.msk [vmem:[#allocation2 + $0x18] sm:$0xff] %vm777, %v2746
    %2753 = vst.msk [vmem:[#allocation2 + $0x20] sm:$0xff] %vm777, %v2747
    %2754 = vst.msk [vmem:[#allocation2 + $0x28] sm:$0xff] %vm777, %v2748
    %v2755 = vld [vmem:[#allocation2] sm:$0xff]
    %v2756 = vld [vmem:[#allocation2 + $0x8] sm:$0xff]
    %v2757 = vld [vmem:[#allocation2 + $0x10] sm:$0xff]
    %v2758 = vld [vmem:[#allocation2 + $0x18] sm:$0xff]
    %v2759 = vld [vmem:[#allocation2 + $0x20] sm:$0xff]
    %v2760 = vld [vmem:[#allocation2 + $0x28] sm:$0xff]
    %v2761 = vld [vmem:[#allocation2 + $0x30] sm:$0xff]
    %v2762 = vld [vmem:[#allocation2 + $0x38] sm:$0xff]
    %v2763 = vmax.f32 %v2755, 0.0
    %v2764 = vmax.f32 %v2756, 0.0
    %v2765 = vmax.f32 %v2757, 0.0
    %v2766 = vmax.f32 %v2758, 0.0
    %v2767 = vmax.f32 %v2759, 0.0
    %v2768 = vmax.f32 %v2760, 0.0
    %v2769 = vmax.f32 %v2761, 0.0
    %v2770 = vmax.f32 %v2762, 0.0
    %v2771 = vld [vmem:[%s2] sm:$0xff]
    %v2772 = vld [vmem:[%s2 + $0x8] sm:$0xff]
    %v2773 = vld [vmem:[%s2 + $0x10] sm:$0xff]
    %v2774 = vld [vmem:[%s2 + $0x18] sm:$0xff]
    %v2775 = vld [vmem:[%s2 + $0x20] sm:$0xff]
    %v2776 = vld [vmem:[%s2 + $0x28] sm:$0xff]
    %v2777 = vld [vmem:[%s2 + $0x30] sm:$0xff]
    %v2778 = vld [vmem:[%s2 + $0x38] sm:$0xff]
    %v2779 = vld [vmem:[%s2 + $0xb] sm:$0x1]
    %2788 = vrot.lane.b32.xlu0 %v2771, 64
    %v2789 = vpop.permute.xlu0 %2788
    %2790 = vrot.lane.b32.xlu0 %v2772, 64
    %v2791 = vpop.permute.xlu0 %2790
    %2792 = vrot.lane.b32.xlu0 %v2773, 64
    %v2793 = vpop.permute.xlu0 %2792
    %2794 = vrot.lane.b32.xlu0 %v2774, 64
    %v2795 = vpop.permute.xlu0 %2794
    %2796 = vrot.lane.b32.xlu0 %v2775, 64
    %v2797 = vpop.permute.xlu0 %2796
    %2798 = vrot.lane.b32.xlu0 %v2776, 64
    %v2799 = vpop.permute.xlu0 %2798
    %2800 = vrot.lane.b32.xlu0 %v2777, 64
    %v2801 = vpop.permute.xlu0 %2800
    %2802 = vrot.lane.b32.xlu0 %v2778, 64
    %v2803 = vpop.permute.xlu0 %2802
    %v2812 = vmul.f32 %v2763, %v2789
    %v2813 = vmul.f32 %v2764, %v2791
    %v2814 = vmul.f32 %v2765, %v2793
    %v2815 = vmul.f32 %v2766, %v2795
    %v2816 = vmul.f32 %v2767, %v2797
    %v2817 = vmul.f32 %v2768, %v2799
    %v2818 = vmul.f32 %v2769, %v2801
    %v2819 = vmul.f32 %v2770, %v2803
    %v2820 = vsel %vm777, %v2812, 0.0
    %v2821 = vsel %vm777, %v2813, 0.0
    %v2822 = vadd.f32 %v2820, %v2821
    %v2823 = vsel %vm777, %v2814, 0.0
    %v2824 = vadd.f32 %v2822, %v2823
    %v2825 = vsel %vm777, %v2815, 0.0
    %v2826 = vadd.f32 %v2824, %v2825
    %v2827 = vsel %vm777, %v2816, 0.0
    %v2828 = vadd.f32 %v2826, %v2827
    %v2829 = vsel %vm777, %v2817, 0.0
    %v2830 = vadd.f32 %v2828, %v2829
    %v2831 = vsel %vm777, %v2818, 0.0
    %v2832 = vadd.f32 %v2830, %v2831
    %v2833 = vsel %vm777, %v2819, 0.0
    %v2834 = vadd.f32 %v2832, %v2833
    %2835 = vadd.xlane.f32.xlu0 %v2834
    %v2836 = vpop.xlane.xlu0 %2835
    %v2837 = vrot.slane %v2836, 4
    %v2838 = vadd.f32 %v2836, %v2837
    %v2839 = vrot.slane %v2838, 2
    %v2840 = vadd.f32 %v2838, %v2839
    %v2841 = vrot.slane %v2840, 1
    %v2842 = vadd.f32 %v2840, %v2841
    %s2843 = vtos %v2842
    %v2844 = vstv %s2843
    %v2845 = vadd.f32 %v2844, %v2779
    %vm2846 = vcmask 0
    %2847 = vst.msk [vmem:[#allocation3] sm:$0x1] %vm2846, %v2845
    // Predicated region
    $region14: #{_forward_impl.1} parent=1 // pred_check
      _
    $region15: #{_forward_impl.1} parent=1 // pred_check_branch
      %2849 = sbr.rel (0) target = $region17
    $region16: #{_forward_impl.1} parent=1 // pred_region
      %s2851 = ssub.s32 16, 16
      %2852 = vsyncadd [#allocation4], %s2851
      %s2854 = sshll.u32 [#allocation3], 4
      %s2855 = int_to_ptr.vmem [resolvable:$true] %s2854
      %2857 = dma.vmem_to_hbm [thread:$0]  %s2855, 16, %s3, [#allocation4]
    $region17: #{_forward_impl.1} parent=1 // pred_fallthru
      _
    // Predicated region
    $region18: #{_forward_impl.1} parent=1 // pred_check
      _
    $region19: #{_forward_impl.1} parent=1 // pred_check_branch
      %2859 = sbr.rel (0) target = $region21
    $region20: #{_forward_impl.1} parent=1 // pred_region
      %2860 = dma.done [#allocation4], 16
    $region21: #{_forward_impl.1} parent=1 // pred_fallthru
      _
    %2861 = vsyncpa [#allocation4], 1

</llo_original>
